<compile_context>
chip_gen: v7x
topology: tpu7x:2x2x1
jax: 0.10.0
libtpu: 0.0.40
codegen_flags: <defaults>
</compile_context>

<pallas_src>
import functools

import jax
import jax.numpy as jnp
import numpy as np
from jax.experimental import pallas as pl
from jax.experimental.pallas import tpu as pltpu

EPS = 1e-5
LANES = 128


def _round_up(x, m):
    return -(-x // m) * m


def _padded_bytes(shape, itemsize=4):
    """Approx VMEM footprint: minor dim pads to 128 lanes, 2nd-minor to 8 sublanes."""
    if len(shape) == 1:
        return _round_up(shape[0], LANES) * itemsize
    lead = 1
    for d in shape[:-2]:
        lead *= d
    return lead * _round_up(shape[-2], 8) * _round_up(shape[-1], LANES) * itemsize


def _vmem_capacity_bytes():
    try:
        return int(pltpu.get_tpu_info().vmem_capacity_bytes)
    except Exception:
        return 64 * 1024 * 1024  # conservative fallback (v7x per-core VMEM)


# --------------------------------------------------------------------------------------
# Kernels
# --------------------------------------------------------------------------------------
def _conv_stats_kernel(*refs, H, W, Cp, k, pre_affine):
    """One grid step = one image.

    Direct per-tap accumulation conv (k*k lane-dense MXU matmuls, no im2col scatter),
    conv output written in *padded* channel-minor layout with a zero halo ring so the
    next stage consumes it with no wrapper re-pad, plus per-image partial BN moments
    (sum, sum-of-squares) written to their own output block.

    If `pre_affine`, the input slab is first normalized with the previous BN's folded
    scale/shift and ReLU'd (the halo ring is re-zeroed with a resident mask).
    """
    if pre_affine:
        a_ref, w_ref, sc_ref, sh_ref, mask_ref, out_ref, stats_ref = refs
    else:
        a_ref, w_ref, out_ref, stats_ref = refs

    p = k // 2
    Hp, Wp = H + 2 * p, W + 2 * p
    M = H * W

    if pre_affine:
        a = jnp.maximum(a_ref[0] * sc_ref[...] + sh_ref[...], 0.0)
        a = a * mask_ref[...]                       # keep the halo ring exactly zero

        def window(dh, dw):
            return a[dh:dh + H, dw:dw + W, :]
    else:
        def window(dh, dw):
            return a_ref[0, dh:dh + H, dw:dw + W, :]

    # Direct tap accumulation: every operand is a full 128-lane tile (Cp padded in the
    # wrapper) -> no masked stores, no materialized patch matrix.
    acc = jnp.zeros((M, Cp), jnp.float32)
    for dh in range(k):
        for dw in range(k):
            win = window(dh, dw).reshape(M, Cp)
            acc = acc + jnp.dot(win, w_ref[dh * k + dw],
                                preferred_element_type=jnp.float32)
    # NOTE: conv bias omitted on purpose; training-mode BN's mean subtraction cancels it.

    # Single-pass partial BN moments for this image (combined across images in XLA).
    stats_ref[0, 0:1, :] = jnp.sum(acc, axis=0, keepdims=True)
    stats_ref[0, 1:2, :] = jnp.sum(acc * acc, axis=0, keepdims=True)

    # Store the conv output directly in padded layout with a zero halo ring.
    out_ref[0, p:p + H, p:p + W, :] = acc.reshape(H, W, Cp)
    if p:
        zrow = jnp.zeros((p, Wp, Cp), jnp.float32)
        zcol = jnp.zeros((Hp, p, Cp), jnp.float32)
        out_ref[0, 0:p, :, :] = zrow
        out_ref[0, p + H:Hp, :, :] = zrow
        out_ref[0, :, 0:p, :] = zcol
        out_ref[0, :, p + W:Wp, :] = zcol


def _bn_residual_kernel(h_ref, x_ref, sc_ref, sh_ref, o_ref, *, H, W, p):
    """Final BN affine + residual add; one image per grid step, lane-dense stores."""
    h = h_ref[0, p:p + H, p:p + W, :]
    x = x_ref[0, p:p + H, p:p + W, :]
    o_ref[0] = h * sc_ref[...] + sh_ref[...] + x


# --------------------------------------------------------------------------------------
# pallas_call builders
# --------------------------------------------------------------------------------------
def _conv_stats_call(a_pad, w_taps, pre, *, N, H, W, Cp, k, vmem_limit):
    p = k // 2
    Hp, Wp = H + 2 * p, W + 2 * p
    kernel = functools.partial(_conv_stats_kernel, H=H, W=W, Cp=Cp, k=k,
                               pre_affine=pre is not None)
    in_specs = [
        pl.BlockSpec((1, Hp, Wp, Cp), lambda n: (n, 0, 0, 0)),   # activation slab
        pl.BlockSpec((k * k, Cp, Cp), lambda n: (0, 0, 0)),      # weights (resident)
    ]
    args = [a_pad, w_taps]
    if pre is not None:
        scale, shift, ring_mask = pre
        in_specs += [
            pl.BlockSpec((1, Cp), lambda n: (0, 0)),             # folded BN scale
            pl.BlockSpec((1, Cp), lambda n: (0, 0)),             # folded BN shift
            pl.BlockSpec((Hp, Wp, 1), lambda n: (0, 0, 0)),      # halo ring mask
        ]
        args += [scale, shift, ring_mask]

    out_shape = (jax.ShapeDtypeStruct((N, Hp, Wp, Cp), jnp.float32),
                 jax.ShapeDtypeStruct((N, 2, Cp), jnp.float32))
    out_specs = (pl.BlockSpec((1, Hp, Wp, Cp), lambda n: (n, 0, 0, 0)),
                 pl.BlockSpec((1, 2, Cp), lambda n: (n, 0, 0)))

    flops = 2 * N * (H * W) * (k * k) * Cp * Cp
    bytes_accessed = 4 * (a_pad.size + w_taps.size + N * Hp * Wp * Cp + N * 2 * Cp)
    cost = pl.CostEstimate(flops=int(flops), transcendentals=0,
                           bytes_accessed=int(bytes_accessed))

    return pl.pallas_call(
        kernel,
        out_shape=out_shape,
        grid=(N,),
        in_specs=in_specs,
        out_specs=out_specs,
        compiler_params=pltpu.CompilerParams(
            dimension_semantics=("parallel",), vmem_limit_bytes=vmem_limit),
        cost_estimate=cost,
    )(*args)


def _finalize_bn(stats, gamma_p, beta_p, count):
    """Combine per-image (sum, sumsq) partials into a per-channel scale/shift FMA."""
    s = jnp.sum(stats[:, 0, :], axis=0)
    sq = jnp.sum(stats[:, 1, :], axis=0)
    mean = s / count
    var = jnp.maximum(sq / count - mean * mean, 0.0)   # biased (training-mode) variance
    scale = gamma_p * jax.lax.rsqrt(var + EPS)
    shift = beta_p - mean * scale
    return scale.reshape(1, -1), shift.reshape(1, -1)


def resblock_pallas(x_nchw, params):
    """ResBlock forward. x_nchw: (N, C, H, W) float32 -> (N, C, H, W) float32."""
    x = jnp.transpose(x_nchw, (0, 2, 3, 1)).astype(jnp.float32)   # NHWC
    N, H, W, C = x.shape
    k = params["w1"].shape[2]
    if k % 2 != 1:
        raise ValueError("'same' padding via k//2 only matches PyTorch for odd kernel sizes")
    p = k // 2
    Hp, Wp = H + 2 * p, W + 2 * p
    Cp = _round_up(C, LANES)   # pad channels to a full lane tile -> unmasked stores

    # ---- wrapper-side layout plumbing (free for the kernel): channel-minor,
    #      channel-padded, spatially padded activation slabs.
    x_cm = jnp.pad(x, ((0, 0), (0, 0), (0, 0), (0, Cp - C)))
    x_pad = jnp.pad(x_cm, ((0, 0), (p, p), (p, p), (0, 0)))        # (N, Hp, Wp, Cp)
    ring_mask = jnp.pad(jnp.ones((H, W, 1), jnp.float32),
                        ((p, p), (p, p), (0, 0)))                  # (Hp, Wp, 1)

    # torch (Cout, Cin, kh, kw) -> per-tap (k*k, Cp_in, Cp_out) matrices, zero-padded.
    def w_taps(w_oihw):
        w = jnp.transpose(w_oihw, (2, 3, 1, 0)).astype(jnp.float32)
        w = w.reshape(k * k, C, C)
        return jnp.pad(w, ((0, 0), (0, Cp - C), (0, Cp - C)))

    def pad_vec(v):
        return jnp.pad(v.astype(jnp.float32).reshape(-1), (0, Cp - C))

    w1t, w2t = w_taps(params["w1"]), w_taps(params["w2"])
    g1, be1 = pad_vec(params["g1"]), pad_vec(params["be1"])
    g2, be2 = pad_vec(params["g2"]), pad_vec(params["be2"])
    # conv biases b1/b2 intentionally NOT passed: training-mode BN cancels them exactly.

    # ---- per-generation VMEM budget & per-step footprint guard.
    vmem_cap = _vmem_capacity_bytes()
    budget = int(0.45 * vmem_cap)
    blk = _padded_bytes((1, Hp, Wp, Cp))
    est = (4 * blk                                   # in + out slabs, double-buffered
           + 2 * _padded_bytes((k * k, Cp, Cp))      # resident weights (+ slack)
           + blk                                     # normalized slab value
           + 3 * _padded_bytes((H * W, Cp))          # acc + live tap windows
           + 2 * _padded_bytes((1, 2, Cp)))
    if est > budget:
        # TODO(synk): add an H-row-tile grid axis (overlapping halo rows via manual DMA)
        # for images whose per-image working set exceeds the VMEM budget.
        raise ValueError(
            f"per-image working set ~{est / 2**20:.1f} MiB exceeds VMEM budget "
            f"{budget / 2**20:.1f} MiB; row tiling not implemented yet.")
    vmem_limit = int(min(budget, max(2 * est, 32 * 1024 * 1024)))

    count = float(N * H * W)
    common = dict(N=N, H=H, W=W, Cp=Cp, k=k, vmem_limit=vmem_limit)

    # Pass 1: conv1 + per-image BN1 moments.
    h1_pad, stats1 = _conv_stats_call(x_pad, w1t, None, **common)
    scale1, shift1 = _finalize_bn(stats1, g1, be1, count)

    # Pass 2: BN1 affine + ReLU fused into the input read, conv2 + per-image BN2 moments.
    h2_pad, stats2 = _conv_stats_call(h1_pad, w2t, (scale1, shift1, ring_mask), **common)
    scale2, shift2 = _finalize_bn(stats2, g2, be2, count)

    # Pass 3: BN2 affine + residual add.
    out_cm = pl.pallas_call(
        functools.partial(_bn_residual_kernel, H=H, W=W, p=p),
        out_shape=jax.ShapeDtypeStruct((N, H, W, Cp), jnp.float32),
        grid=(N,),
        in_specs=[pl.BlockSpec((1, Hp, Wp, Cp), lambda n: (n, 0, 0, 0)),
                  pl.BlockSpec((1, Hp, Wp, Cp), lambda n: (n, 0, 0, 0)),
                  pl.BlockSpec((1, Cp), lambda n: (0, 0)),
                  pl.BlockSpec((1, Cp), lambda n: (0, 0))],
        out_specs=pl.BlockSpec((1, H, W, Cp), lambda n: (n, 0, 0, 0)),
        compiler_params=pltpu.CompilerParams(
            dimension_semantics=("parallel",), vmem_limit_bytes=vmem_limit),
        cost_estimate=pl.CostEstimate(
            flops=int(3 * N * H * W * Cp), transcendentals=0,
            bytes_accessed=int(4 * (2 * N * Hp * Wp * Cp + N * H * W * Cp))),
    )(h2_pad, x_pad, scale2, shift2)

    out = out_cm[..., :C]                        # drop channel padding
    return jnp.transpose(out, (0, 3, 1, 2))      # back to NCHW


# --------------------------------------------------------------------------------------
# Pure-JAX reference + params (training-mode BN semantics of a fresh PyTorch module)
# --------------------------------------------------------------------------------------
def resblock_ref(x_nchw, params):
    def conv_bn(x, w, b, g, be, relu):
        y = jax.lax.conv_general_dilated(
            x, w, window_strides=(1, 1), padding="SAME",
            dimension_numbers=("NCHW", "OIHW", "NCHW"))
        y = y + b[None, :, None, None]
        mean = jnp.mean(y, axis=(0, 2, 3), keepdims=True)
        var = jnp.mean((y - mean) ** 2, axis=(0, 2, 3), keepdims=True)
        y = (y - mean) * jax.lax.rsqrt(var + EPS)
        y = y * g[None, :, None, None] + be[None, :, None, None]
        return jnp.maximum(y, 0.0) if relu else y

    h = conv_bn(x_nchw, params["w1"], params["b1"], params["g1"], params["be1"], True)
    h = conv_bn(h, params["w2"], params["b2"], params["g2"], params["be2"], False)
    return h + x_nchw


def init_params(key, channels, kernel_size):
    k1, k2 = jax.random.split(key)
    C, K = channels, kernel_size
    return {
        # _conv init: weight ~ N(0, 0.02), bias = 0 (torch layout (Cout, Cin, kh, kw))
        "w1": 0.02 * jax.random.normal(k1, (C, C, K, K), jnp.float32),
        "b1": jnp.zeros((C,), jnp.float32),
        "w2": 0.02 * jax.random.normal(k2, (C, C, K, K), jnp.float32),
        "b2": jnp.zeros((C,), jnp.float32),
        # BatchNorm2d defaults: gamma = 1, beta = 0
        "g1": jnp.ones((C,), jnp.float32), "be1": jnp.zeros((C,), jnp.float32),
        "g2": jnp.ones((C,), jnp.float32), "be2": jnp.zeros((C,), jnp.float32),
    }


if __name__ == "__main__":
    key = jax.random.PRNGKey(0)
    kx, kp = jax.random.split(key)

    N, C, H, W = 2, 4, 16, 16
    kernel_size = 3

    x = jax.random.normal(kx, (N, C, H, W), jnp.float32)
    params = init_params(kp, C, kernel_size)

    out = jax.block_until_ready(resblock_pallas(x, params))
    ref = jax.block_until_ready(resblock_ref(x, params))
    np.testing.assert_allclose(np.asarray(out), np.asarray(ref), rtol=1e-4, atol=1e-4)

    print("KERNEL_OK")
</pallas_src>

<mosaic_0001>
module attributes {stable_mosaic.version = 11 : i64} {
  func.func @_conv_stats_kernel(%arg0: i32, %arg1: memref<1x18x18x128xf32, #tpu.memory_space<vmem>>, %arg2: memref<9x128x128xf32, #tpu.memory_space<vmem>>, %arg3: memref<1x18x18x128xf32, #tpu.memory_space<vmem>>, %arg4: memref<1x2x128xf32, #tpu.memory_space<vmem>>) attributes {dimension_semantics = [#tpu.dimension_semantics<parallel>], iteration_bounds = array<i64: 2>, scalar_prefetch = 0 : i64, scratch_operands = 0 : i64, tpu.core_type = #tpu.core_type<tc>, window_params = [{transform_indices = @transform_0, window_bounds = array<i64: 1, 18, 18, 128>}, {pipeline_mode = #tpu.pipeline_mode<synchronous>, transform_indices = @transform_1, window_bounds = array<i64: 9, 128, 128>}, {transform_indices = @transform_2, window_bounds = array<i64: 1, 18, 18, 128>}, {transform_indices = @transform_3, window_bounds = array<i64: 1, 2, 128>}]} {
    %cst = arith.constant 0.000000e+00 : f32
    %0 = vector.broadcast %cst : f32 to vector<256x128xf32>
    %c0 = arith.constant 0 : index
    %c0_0 = arith.constant 0 : index
    %c0_1 = arith.constant 0 : index
    %c0_2 = arith.constant 0 : index
    %1 = vector.load %arg1[%c0, %c0_0, %c0_1, %c0_2] : memref<1x18x18x128xf32, #tpu.memory_space<vmem>>, vector<1x16x16x128xf32>
    %2 = vector.shape_cast %1 : vector<1x16x16x128xf32> to vector<16x16x128xf32>
    %3 = vector.shape_cast %2 : vector<16x16x128xf32> to vector<256x128xf32>
    %c0_3 = arith.constant 0 : index
    %c0_4 = arith.constant 0 : index
    %c0_5 = arith.constant 0 : index
    %4 = vector.load %arg2[%c0_3, %c0_4, %c0_5] : memref<9x128x128xf32, #tpu.memory_space<vmem>>, vector<1x128x128xf32>
    %5 = vector.shape_cast %4 : vector<1x128x128xf32> to vector<128x128xf32>
    %cst_6 = arith.constant dense<0.000000e+00> : vector<256x128xf32>
    %6 = tpu.matmul %3, %5, %cst_6 {dimension_numbers = #tpu.dot_dimension_numbers<[1], [0], [0], [1], [0, 0, 1, 1], [], []>} : vector<256x128xf32>, vector<128x128xf32>, vector<256x128xf32> -> vector<256x128xf32>
    %7 = arith.addf %0, %6 : vector<256x128xf32>
    %c0_7 = arith.constant 0 : index
    %c0_8 = arith.constant 0 : index
    %c1 = arith.constant 1 : index
    %c0_9 = arith.constant 0 : index
    %8 = vector.load %arg1[%c0_7, %c0_8, %c1, %c0_9] : memref<1x18x18x128xf32, #tpu.memory_space<vmem>>, vector<1x16x16x128xf32>
    %9 = vector.shape_cast %8 : vector<1x16x16x128xf32> to vector<16x16x128xf32>
    %10 = vector.shape_cast %9 : vector<16x16x128xf32> to vector<256x128xf32>
    %c1_10 = arith.constant 1 : index
    %c0_11 = arith.constant 0 : index
    %c0_12 = arith.constant 0 : index
    %11 = vector.load %arg2[%c1_10, %c0_11, %c0_12] : memref<9x128x128xf32, #tpu.memory_space<vmem>>, vector<1x128x128xf32>
    %12 = vector.shape_cast %11 : vector<1x128x128xf32> to vector<128x128xf32>
    %cst_13 = arith.constant dense<0.000000e+00> : vector<256x128xf32>
    %13 = tpu.matmul %10, %12, %cst_13 {dimension_numbers = #tpu.dot_dimension_numbers<[1], [0], [0], [1], [0, 0, 1, 1], [], []>} : vector<256x128xf32>, vector<128x128xf32>, vector<256x128xf32> -> vector<256x128xf32>
    %14 = arith.addf %7, %13 : vector<256x128xf32>
    %c0_14 = arith.constant 0 : index
    %c0_15 = arith.constant 0 : index
    %c2 = arith.constant 2 : index
    %c0_16 = arith.constant 0 : index
    %15 = vector.load %arg1[%c0_14, %c0_15, %c2, %c0_16] : memref<1x18x18x128xf32, #tpu.memory_space<vmem>>, vector<1x16x16x128xf32>
    %16 = vector.shape_cast %15 : vector<1x16x16x128xf32> to vector<16x16x128xf32>
    %17 = vector.shape_cast %16 : vector<16x16x128xf32> to vector<256x128xf32>
    %c2_17 = arith.constant 2 : index
    %c0_18 = arith.constant 0 : index
    %c0_19 = arith.constant 0 : index
    %18 = vector.load %arg2[%c2_17, %c0_18, %c0_19] : memref<9x128x128xf32, #tpu.memory_space<vmem>>, vector<1x128x128xf32>
    %19 = vector.shape_cast %18 : vector<1x128x128xf32> to vector<128x128xf32>
    %cst_20 = arith.constant dense<0.000000e+00> : vector<256x128xf32>
    %20 = tpu.matmul %17, %19, %cst_20 {dimension_numbers = #tpu.dot_dimension_numbers<[1], [0], [0], [1], [0, 0, 1, 1], [], []>} : vector<256x128xf32>, vector<128x128xf32>, vector<256x128xf32> -> vector<256x128xf32>
    %21 = arith.addf %14, %20 : vector<256x128xf32>
    %c0_21 = arith.constant 0 : index
    %c1_22 = arith.constant 1 : index
    %c0_23 = arith.constant 0 : index
    %c0_24 = arith.constant 0 : index
    %22 = vector.load %arg1[%c0_21, %c1_22, %c0_23, %c0_24] : memref<1x18x18x128xf32, #tpu.memory_space<vmem>>, vector<1x16x16x128xf32>
    %23 = vector.shape_cast %22 : vector<1x16x16x128xf32> to vector<16x16x128xf32>
    %24 = vector.shape_cast %23 : vector<16x16x128xf32> to vector<256x128xf32>
    %c3 = arith.constant 3 : index
    %c0_25 = arith.constant 0 : index
    %c0_26 = arith.constant 0 : index
    %25 = vector.load %arg2[%c3, %c0_25, %c0_26] : memref<9x128x128xf32, #tpu.memory_space<vmem>>, vector<1x128x128xf32>
    %26 = vector.shape_cast %25 : vector<1x128x128xf32> to vector<128x128xf32>
    %cst_27 = arith.constant dense<0.000000e+00> : vector<256x128xf32>
    %27 = tpu.matmul %24, %26, %cst_27 {dimension_numbers = #tpu.dot_dimension_numbers<[1], [0], [0], [1], [0, 0, 1, 1], [], []>} : vector<256x128xf32>, vector<128x128xf32>, vector<256x128xf32> -> vector<256x128xf32>
    %28 = arith.addf %21, %27 : vector<256x128xf32>
    %c0_28 = arith.constant 0 : index
    %c1_29 = arith.constant 1 : index
    %c1_30 = arith.constant 1 : index
    %c0_31 = arith.constant 0 : index
    %29 = vector.load %arg1[%c0_28, %c1_29, %c1_30, %c0_31] : memref<1x18x18x128xf32, #tpu.memory_space<vmem>>, vector<1x16x16x128xf32>
    %30 = vector.shape_cast %29 : vector<1x16x16x128xf32> to vector<16x16x128xf32>
    %31 = vector.shape_cast %30 : vector<16x16x128xf32> to vector<256x128xf32>
    %c4 = arith.constant 4 : index
    %c0_32 = arith.constant 0 : index
    %c0_33 = arith.constant 0 : index
    %32 = vector.load %arg2[%c4, %c0_32, %c0_33] : memref<9x128x128xf32, #tpu.memory_space<vmem>>, vector<1x128x128xf32>
    %33 = vector.shape_cast %32 : vector<1x128x128xf32> to vector<128x128xf32>
    %cst_34 = arith.constant dense<0.000000e+00> : vector<256x128xf32>
    %34 = tpu.matmul %31, %33, %cst_34 {dimension_numbers = #tpu.dot_dimension_numbers<[1], [0], [0], [1], [0, 0, 1, 1], [], []>} : vector<256x128xf32>, vector<128x128xf32>, vector<256x128xf32> -> vector<256x128xf32>
    %35 = arith.addf %28, %34 : vector<256x128xf32>
    %c0_35 = arith.constant 0 : index
    %c1_36 = arith.constant 1 : index
    %c2_37 = arith.constant 2 : index
    %c0_38 = arith.constant 0 : index
    %36 = vector.load %arg1[%c0_35, %c1_36, %c2_37, %c0_38] : memref<1x18x18x128xf32, #tpu.memory_space<vmem>>, vector<1x16x16x128xf32>
    %37 = vector.shape_cast %36 : vector<1x16x16x128xf32> to vector<16x16x128xf32>
    %38 = vector.shape_cast %37 : vector<16x16x128xf32> to vector<256x128xf32>
    %c5 = arith.constant 5 : index
    %c0_39 = arith.constant 0 : index
    %c0_40 = arith.constant 0 : index
    %39 = vector.load %arg2[%c5, %c0_39, %c0_40] : memref<9x128x128xf32, #tpu.memory_space<vmem>>, vector<1x128x128xf32>
    %40 = vector.shape_cast %39 : vector<1x128x128xf32> to vector<128x128xf32>
    %cst_41 = arith.constant dense<0.000000e+00> : vector<256x128xf32>
    %41 = tpu.matmul %38, %40, %cst_41 {dimension_numbers = #tpu.dot_dimension_numbers<[1], [0], [0], [1], [0, 0, 1, 1], [], []>} : vector<256x128xf32>, vector<128x128xf32>, vector<256x128xf32> -> vector<256x128xf32>
    %42 = arith.addf %35, %41 : vector<256x128xf32>
    %c0_42 = arith.constant 0 : index
    %c2_43 = arith.constant 2 : index
    %c0_44 = arith.constant 0 : index
    %c0_45 = arith.constant 0 : index
    %43 = vector.load %arg1[%c0_42, %c2_43, %c0_44, %c0_45] : memref<1x18x18x128xf32, #tpu.memory_space<vmem>>, vector<1x16x16x128xf32>
    %44 = vector.shape_cast %43 : vector<1x16x16x128xf32> to vector<16x16x128xf32>
    %45 = vector.shape_cast %44 : vector<16x16x128xf32> to vector<256x128xf32>
    %c6 = arith.constant 6 : index
    %c0_46 = arith.constant 0 : index
    %c0_47 = arith.constant 0 : index
    %46 = vector.load %arg2[%c6, %c0_46, %c0_47] : memref<9x128x128xf32, #tpu.memory_space<vmem>>, vector<1x128x128xf32>
    %47 = vector.shape_cast %46 : vector<1x128x128xf32> to vector<128x128xf32>
    %cst_48 = arith.constant dense<0.000000e+00> : vector<256x128xf32>
    %48 = tpu.matmul %45, %47, %cst_48 {dimension_numbers = #tpu.dot_dimension_numbers<[1], [0], [0], [1], [0, 0, 1, 1], [], []>} : vector<256x128xf32>, vector<128x128xf32>, vector<256x128xf32> -> vector<256x128xf32>
    %49 = arith.addf %42, %48 : vector<256x128xf32>
    %c0_49 = arith.constant 0 : index
    %c2_50 = arith.constant 2 : index
    %c1_51 = arith.constant 1 : index
    %c0_52 = arith.constant 0 : index
    %50 = vector.load %arg1[%c0_49, %c2_50, %c1_51, %c0_52] : memref<1x18x18x128xf32, #tpu.memory_space<vmem>>, vector<1x16x16x128xf32>
    %51 = vector.shape_cast %50 : vector<1x16x16x128xf32> to vector<16x16x128xf32>
    %52 = vector.shape_cast %51 : vector<16x16x128xf32> to vector<256x128xf32>
    %c7 = arith.constant 7 : index
    %c0_53 = arith.constant 0 : index
    %c0_54 = arith.constant 0 : index
    %53 = vector.load %arg2[%c7, %c0_53, %c0_54] : memref<9x128x128xf32, #tpu.memory_space<vmem>>, vector<1x128x128xf32>
    %54 = vector.shape_cast %53 : vector<1x128x128xf32> to vector<128x128xf32>
    %cst_55 = arith.constant dense<0.000000e+00> : vector<256x128xf32>
    %55 = tpu.matmul %52, %54, %cst_55 {dimension_numbers = #tpu.dot_dimension_numbers<[1], [0], [0], [1], [0, 0, 1, 1], [], []>} : vector<256x128xf32>, vector<128x128xf32>, vector<256x128xf32> -> vector<256x128xf32>
    %56 = arith.addf %49, %55 : vector<256x128xf32>
    %c0_56 = arith.constant 0 : index
    %c2_57 = arith.constant 2 : index
    %c2_58 = arith.constant 2 : index
    %c0_59 = arith.constant 0 : index
    %57 = vector.load %arg1[%c0_56, %c2_57, %c2_58, %c0_59] : memref<1x18x18x128xf32, #tpu.memory_space<vmem>>, vector<1x16x16x128xf32>
    %58 = vector.shape_cast %57 : vector<1x16x16x128xf32> to vector<16x16x128xf32>
    %59 = vector.shape_cast %58 : vector<16x16x128xf32> to vector<256x128xf32>
    %c8 = arith.constant 8 : index
    %c0_60 = arith.constant 0 : index
    %c0_61 = arith.constant 0 : index
    %60 = vector.load %arg2[%c8, %c0_60, %c0_61] : memref<9x128x128xf32, #tpu.memory_space<vmem>>, vector<1x128x128xf32>
    %61 = vector.shape_cast %60 : vector<1x128x128xf32> to vector<128x128xf32>
    %cst_62 = arith.constant dense<0.000000e+00> : vector<256x128xf32>
    %62 = tpu.matmul %59, %61, %cst_62 {dimension_numbers = #tpu.dot_dimension_numbers<[1], [0], [0], [1], [0, 0, 1, 1], [], []>} : vector<256x128xf32>, vector<128x128xf32>, vector<256x128xf32> -> vector<256x128xf32>
    %63 = arith.addf %56, %62 : vector<256x128xf32>
    %cst_63 = arith.constant dense<0.000000e+00> : vector<128xf32>
    %64 = vector.multi_reduction <add>, %63, %cst_63 [0] : vector<256x128xf32> to vector<128xf32>
    %65 = vector.shape_cast %64 : vector<128xf32> to vector<1x128xf32>
    %c0_64 = arith.constant 0 : index
    %c0_65 = arith.constant 0 : index
    %c0_66 = arith.constant 0 : index
    %66 = vector.load %arg4[%c0_64, %c0_65, %c0_66] : memref<1x2x128xf32, #tpu.memory_space<vmem>>, vector<1x1x128xf32>
    %67 = vector.shape_cast %66 : vector<1x1x128xf32> to vector<1x128xf32>
    %68 = vector.shape_cast %65 : vector<1x128xf32> to vector<1x1x128xf32>
    tpu.vector_store %arg4[%c0_64, %c0_65, %c0_66], %68 {strides = array<i32>} : memref<1x2x128xf32, #tpu.memory_space<vmem>>, vector<1x1x128xf32>,
    %69 = arith.mulf %63, %63 : vector<256x128xf32>
    %cst_67 = arith.constant dense<0.000000e+00> : vector<128xf32>
    %70 = vector.multi_reduction <add>, %69, %cst_67 [0] : vector<256x128xf32> to vector<128xf32>
    %71 = vector.shape_cast %70 : vector<128xf32> to vector<1x128xf32>
    %c0_68 = arith.constant 0 : index
    %c1_69 = arith.constant 1 : index
    %c0_70 = arith.constant 0 : index
    %72 = vector.load %arg4[%c0_68, %c1_69, %c0_70] : memref<1x2x128xf32, #tpu.memory_space<vmem>>, vector<1x1x128xf32>
    %73 = vector.shape_cast %72 : vector<1x1x128xf32> to vector<1x128xf32>
    %74 = vector.shape_cast %71 : vector<1x128xf32> to vector<1x1x128xf32>
    tpu.vector_store %arg4[%c0_68, %c1_69, %c0_70], %74 {strides = array<i32>} : memref<1x2x128xf32, #tpu.memory_space<vmem>>, vector<1x1x128xf32>,
    %75 = vector.shape_cast %63 : vector<256x128xf32> to vector<16x16x128xf32>
    %c0_71 = arith.constant 0 : index
    %c1_72 = arith.constant 1 : index
    %c1_73 = arith.constant 1 : index
    %c0_74 = arith.constant 0 : index
    %76 = vector.load %arg3[%c0_71, %c1_72, %c1_73, %c0_74] : memref<1x18x18x128xf32, #tpu.memory_space<vmem>>, vector<1x16x16x128xf32>
    %77 = vector.shape_cast %76 : vector<1x16x16x128xf32> to vector<16x16x128xf32>
    %78 = vector.shape_cast %75 : vector<16x16x128xf32> to vector<1x16x16x128xf32>
    tpu.vector_store %arg3[%c0_71, %c1_72, %c1_73, %c0_74], %78 {strides = array<i32>} : memref<1x18x18x128xf32, #tpu.memory_space<vmem>>, vector<1x16x16x128xf32>,
    %cst_75 = arith.constant 0.000000e+00 : f32
    %79 = vector.broadcast %cst_75 : f32 to vector<1x18x128xf32>
    %cst_76 = arith.constant 0.000000e+00 : f32
    %80 = vector.broadcast %cst_76 : f32 to vector<18x1x128xf32>
    %c0_77 = arith.constant 0 : index
    %c0_78 = arith.constant 0 : index
    %c0_79 = arith.constant 0 : index
    %c0_80 = arith.constant 0 : index
    %81 = vector.load %arg3[%c0_77, %c0_78, %c0_79, %c0_80] : memref<1x18x18x128xf32, #tpu.memory_space<vmem>>, vector<1x1x18x128xf32>
    %82 = vector.shape_cast %81 : vector<1x1x18x128xf32> to vector<1x18x128xf32>
    %83 = vector.shape_cast %79 : vector<1x18x128xf32> to vector<1x1x18x128xf32>
    tpu.vector_store %arg3[%c0_77, %c0_78, %c0_79, %c0_80], %83 {strides = array<i32>} : memref<1x18x18x128xf32, #tpu.memory_space<vmem>>, vector<1x1x18x128xf32>,
    %c0_81 = arith.constant 0 : index
    %c17 = arith.constant 17 : index
    %c0_82 = arith.constant 0 : index
    %c0_83 = arith.constant 0 : index
    %84 = vector.load %arg3[%c0_81, %c17, %c0_82, %c0_83] : memref<1x18x18x128xf32, #tpu.memory_space<vmem>>, vector<1x1x18x128xf32>
    %85 = vector.shape_cast %84 : vector<1x1x18x128xf32> to vector<1x18x128xf32>
    %86 = vector.shape_cast %79 : vector<1x18x128xf32> to vector<1x1x18x128xf32>
    tpu.vector_store %arg3[%c0_81, %c17, %c0_82, %c0_83], %86 {strides = array<i32>} : memref<1x18x18x128xf32, #tpu.memory_space<vmem>>, vector<1x1x18x128xf32>,
    %c0_84 = arith.constant 0 : index
    %c0_85 = arith.constant 0 : index
    %c0_86 = arith.constant 0 : index
    %c0_87 = arith.constant 0 : index
    %87 = vector.load %arg3[%c0_84, %c0_85, %c0_86, %c0_87] : memref<1x18x18x128xf32, #tpu.memory_space<vmem>>, vector<1x18x1x128xf32>
    %88 = vector.shape_cast %87 : vector<1x18x1x128xf32> to vector<18x1x128xf32>
    %89 = vector.shape_cast %80 : vector<18x1x128xf32> to vector<1x18x1x128xf32>
    tpu.vector_store %arg3[%c0_84, %c0_85, %c0_86, %c0_87], %89 {strides = array<i32>} : memref<1x18x18x128xf32, #tpu.memory_space<vmem>>, vector<1x18x1x128xf32>,
    %c0_88 = arith.constant 0 : index
    %c0_89 = arith.constant 0 : index
    %c17_90 = arith.constant 17 : index
    %c0_91 = arith.constant 0 : index
    %90 = vector.load %arg3[%c0_88, %c0_89, %c17_90, %c0_91] : memref<1x18x18x128xf32, #tpu.memory_space<vmem>>, vector<1x18x1x128xf32>
    %91 = vector.shape_cast %90 : vector<1x18x1x128xf32> to vector<18x1x128xf32>
    %92 = vector.shape_cast %80 : vector<18x1x128xf32> to vector<1x18x1x128xf32>
    tpu.vector_store %arg3[%c0_88, %c0_89, %c17_90, %c0_91], %92 {strides = array<i32>} : memref<1x18x18x128xf32, #tpu.memory_space<vmem>>, vector<1x18x1x128xf32>,
    return
  }
  func.func @transform_0(%arg0: i32) -> (i32, i32, i32, i32) {
    %c0_i32 = arith.constant 0 : i32
    %c0_i32_0 = arith.constant 0 : i32
    %c0_i32_1 = arith.constant 0 : i32
    %c0_i32_2 = arith.constant 0 : i32
    return %arg0, %c0_i32, %c0_i32_0, %c0_i32_1 : i32, i32, i32, i32
  }
  func.func @transform_1(%arg0: i32) -> (i32, i32, i32) {
    %c0_i32 = arith.constant 0 : i32
    %c0_i32_0 = arith.constant 0 : i32
    %c0_i32_1 = arith.constant 0 : i32
    %c0_i32_2 = arith.constant 0 : i32
    return %c0_i32, %c0_i32_0, %c0_i32_1 : i32, i32, i32
  }
  func.func @transform_2(%arg0: i32) -> (i32, i32, i32, i32) {
    %c0_i32 = arith.constant 0 : i32
    %c0_i32_0 = arith.constant 0 : i32
    %c0_i32_1 = arith.constant 0 : i32
    %c0_i32_2 = arith.constant 0 : i32
    return %arg0, %c0_i32, %c0_i32_0, %c0_i32_1 : i32, i32, i32, i32
  }
  func.func @transform_3(%arg0: i32) -> (i32, i32, i32) {
    %c0_i32 = arith.constant 0 : i32
    %c0_i32_0 = arith.constant 0 : i32
    %c0_i32_1 = arith.constant 0 : i32
    return %arg0, %c0_i32, %c0_i32_0 : i32, i32, i32
  }
}

</mosaic_0001>

<llo_original>
// kernel: tpu_custom_call.1
$region0: #{tpu_custom_call.1}
  #allocation0 [shape = 'u32[]', space=smem, size = 0x4, offset = 0x4, fixed_abs, tag = 'smem constant byte address 0x4 - core index']
  #allocation1 [shape = 'u32[144,128]{1,0:T(1,128)}', space=vmem, size = 0x12000, scoped, tag = 'internal scratch']
  %s0 = inlined_call_operand.vmem [shape: f32[2,18,18,128], index: 0, kind: input, shape index: {}]
  %s1 = inlined_call_operand.vmem [shape: f32[9,128,128], index: 1, kind: input, shape index: {}]
  %s2 = inlined_call_operand.vmem [shape: f32[2,18,18,128], index: 2, kind: output, shape index: {0}]
  %s3 = inlined_call_operand.hbm [shape: f32[2,2,128], index: 3, kind: output, shape index: {1}]
  %4 = xla_tuple %s2, %s3
  %s5 = sld [smem:[#allocation0]]
  $region49: #{tpu_custom_call.1} parent=0
    _
  %s7 = ssub.s32 1, %s5
  %s8 = scalar_select 0, %s7, %s5
  $region1: #{tpu_custom_call.1} parent=0
    #allocation2 [shape = 'u8[2048]{0}', space=vmem, size = 0x800, scoped, tag = 'output window, operand 1']
    #allocation3 [shape = 's32[2]{0}', space=sflag, size = 0x8, scoped, tag = 'scoped memory for tpu_custom_call.1']
    %9 = vsyncpa [#allocation3], 0
    %s10 = scalar_lea.sflag [#allocation3], 1
    %11 = vsyncpa %s10, 0
    loop: start=0, step=1, limit=4
    $region2: #{tpu_custom_call.1} parent=1 // loop_pre_header
      _
    $region3: #{tpu_custom_call.1} parent=1 // loop_header
      %s13 = sphi 0, %s17
      %p14 = scmp.ge.s32.totalorder %s13, 4
      %s23 = sphi 0, %s25
      %s26 = sphi 0, %s23
      %s27 = sphi 0, %s26
      %s43 = sphi 0, %s27
      %s47 = sphi 0, %s47
      %s49 = sphi 0, %s47
      %s50 = sphi 0, %s49
      %s64 = sphi 0, %s50
      %s70 = sphi 0, %s72
      %s73 = sphi 0, %s70
      %s74 = sphi 0, %s73
      %s90 = sphi 0, %s74
      %s96 = sphi 0, %s98
      %s99 = sphi 0, %s96
      %s100 = sphi 0, %s99
      %s116 = sphi 0, %s100
    $region4: #{tpu_custom_call.1} parent=1 // loop_header_branch
      %16 = sbr.rel (%p14) target = $region8
    $region5: #{tpu_custom_call.1} parent=1 // loop_body
      %s18 = ssub.s32 %s13, 1
      %s19 = ssub.s32 %s13, 2
      %s20 = sadd.s32 %s13, 1
      %s21 = ssub.s32 %s13, %s20
      %p22 = scmp.eq.s32.totalorder %s21, 0
      %s24 = sadd.s32 %s23, 1
      %s25 = scalar_select %p22, %s23, %s24
      %p28 = pneg %p22
      %p29 = scmp.eq.s32.totalorder %s13, 1
      %p30 = por %p28, %p29
      %p31 = scmp.ne.s32.totalorder %s23, %s26
      %p32 = scmp.eq.s32.totalorder %s13, 0
      %p33 = por %p31, %p32
      %p34 = scmp.ne.s32.totalorder %s23, %s26
      %p35 = scmp.eq.s32.totalorder %s18, 1
      %p36 = por %p34, %p35
      %p37 = scmp.ne.s32.totalorder %s26, %s27
      %p38 = scmp.eq.s32.totalorder %s18, 0
      %p39 = por %p37, %p38
      %p40 = scmp.ne.s32.totalorder %s26, %s27
      %p41 = scmp.eq.s32.totalorder %s19, 1
      %p42 = por %p40, %p41
      %p44 = scmp.ne.s32.totalorder %s27, %s43
      %p45 = scmp.eq.s32.totalorder %s19, 0
      %p46 = por %p44, %p45
      %s48 = sadd.s32 %s47, 1
      %p51 = scmp.eq.s32.totalorder %s13, 1
      %p52 = scmp.ne.s32.totalorder %s47, %s49
      %p53 = scmp.eq.s32.totalorder %s13, 0
      %p54 = por %p52, %p53
      %p55 = scmp.ne.s32.totalorder %s47, %s49
      %p56 = scmp.eq.s32.totalorder %s18, 1
      %p57 = por %p55, %p56
      %p58 = scmp.ne.s32.totalorder %s49, %s50
      %p59 = scmp.eq.s32.totalorder %s18, 0
      %p60 = por %p58, %p59
      %p61 = scmp.ne.s32.totalorder %s49, %s50
      %p62 = scmp.eq.s32.totalorder %s19, 1
      %p63 = por %p61, %p62
      %p65 = scmp.ne.s32.totalorder %s50, %s64
      %p66 = scmp.eq.s32.totalorder %s19, 0
      %p67 = por %p65, %p66
      %s68 = ssub.s32 %s13, %s20
      %p69 = scmp.eq.s32.totalorder %s68, 0
      %s71 = sadd.s32 %s70, 1
      %s72 = scalar_select %p69, %s70, %s71
      %p75 = pneg %p69
      %p76 = scmp.eq.s32.totalorder %s13, 1
      %p77 = por %p75, %p76
      %p78 = scmp.ne.s32.totalorder %s70, %s73
      %p79 = scmp.eq.s32.totalorder %s13, 0
      %p80 = por %p78, %p79
      %p81 = scmp.ne.s32.totalorder %s70, %s73
      %p82 = scmp.eq.s32.totalorder %s18, 1
      %p83 = por %p81, %p82
      %p84 = scmp.ne.s32.totalorder %s73, %s74
      %p85 = scmp.eq.s32.totalorder %s18, 0
      %p86 = por %p84, %p85
      %p87 = scmp.ne.s32.totalorder %s73, %s74
      %p88 = scmp.eq.s32.totalorder %s19, 1
      %p89 = por %p87, %p88
      %p91 = scmp.ne.s32.totalorder %s74, %s90
      %p92 = scmp.eq.s32.totalorder %s19, 0
      %p93 = por %p91, %p92
      %s94 = ssub.s32 %s13, %s20
      %p95 = scmp.eq.s32.totalorder %s94, 0
      %s97 = sadd.s32 %s96, 1
      %s98 = scalar_select %p95, %s96, %s97
      %p101 = pneg %p95
      %p102 = scmp.eq.s32.totalorder %s13, 1
      %p103 = por %p101, %p102
      %p104 = scmp.ne.s32.totalorder %s96, %s99
      %p105 = scmp.eq.s32.totalorder %s13, 0
      %p106 = por %p104, %p105
      %p107 = scmp.ne.s32.totalorder %s96, %s99
      %p108 = scmp.eq.s32.totalorder %s18, 1
      %p109 = por %p107, %p108
      %p110 = scmp.ne.s32.totalorder %s99, %s100
      %p111 = scmp.eq.s32.totalorder %s18, 0
      %p112 = por %p110, %p111
      %p113 = scmp.ne.s32.totalorder %s99, %s100
      %p114 = scmp.eq.s32.totalorder %s19, 1
      %p115 = por %p113, %p114
      %p117 = scmp.ne.s32.totalorder %s100, %s116
      %p118 = scmp.eq.s32.totalorder %s19, 0
      %p119 = por %p117, %p118
      %p120 = scmp.le.s32.totalorder 1, %s13
      %p121 = scmp.lt.s32.totalorder %s13, 3
      %p122 = pnand %p120, %p121
      %p123 = pneg %p122
      // Predicated region
      $region9: #{tpu_custom_call.1} parent=5 // pred_check
        _
      $region10: #{tpu_custom_call.1} parent=5 // pred_check_branch
        %125 = sbr.rel (%p122) target = $region12
      $region11: #{tpu_custom_call.1} parent=5 // pred_region
        %s126 = ssub.s32 %s13, 1
        // Predicated region
        $region13: #{tpu_custom_call.1} parent=11 // pred_check
          %p127 = pneg %p60
        $region14: #{tpu_custom_call.1} parent=11 // pred_check_branch
          %129 = sbr.rel (%p127) target = $region16
        $region15: #{tpu_custom_call.1} parent=11 // pred_region
          _
        $region16: #{tpu_custom_call.1} parent=11 // pred_fallthru
          _
      $region12: #{tpu_custom_call.1} parent=5 // pred_fallthru
        _
      %p130 = scmp.lt.s32.totalorder %s13, 2
      // Predicated region
      $region17: #{tpu_custom_call.1} parent=5 // pred_check
        %p131 = pneg %p130
      $region18: #{tpu_custom_call.1} parent=5 // pred_check_branch
        %133 = sbr.rel (%p131) target = $region20
      $region19: #{tpu_custom_call.1} parent=5 // pred_region
        // Predicated region
        $region21: #{tpu_custom_call.1} parent=19 // pred_check
          %p134 = pneg %p33
        $region22: #{tpu_custom_call.1} parent=19 // pred_check_branch
          %136 = sbr.rel (%p134) target = $region24
        $region23: #{tpu_custom_call.1} parent=19 // pred_region
          %p137 = scmp.lt.s32.totalorder %s13, 1
          %s138 = scalar_select %p137, %s13, 1
          %s139 = smul.addr %s138, 54
          %s140 = smul.addr %s139, 8
          %s141 = scalar_lea.vmem %s0, %s140
        $region24: #{tpu_custom_call.1} parent=19 // pred_fallthru
          _
      $region20: #{tpu_custom_call.1} parent=5 // pred_fallthru
        _
      %p142 = scmp.le.s32.totalorder 1, %s13
      %p143 = scmp.lt.s32.totalorder %s13, 3
      %p144 = pnand %p142, %p143
      %p145 = pneg %p144
      // Predicated region
      $region25: #{tpu_custom_call.1} parent=5 // pred_check
        _
      $region26: #{tpu_custom_call.1} parent=5 // pred_check_branch
        %147 = sbr.rel (%p144) target = $region28
      $region27: #{tpu_custom_call.1} parent=5 // pred_region
        %s148 = ssub.s32 %s13, 1
        %p149 = scmp.lt.s32.totalorder %s18, 1
        %s150 = scalar_select %p149, %s18, 1
        %s151 = smul.addr %s150, 54
        %s152 = smul.addr %s151, 8
        %s153 = scalar_lea.vmem %s0, %s152
        %p154 = pneg %p39
        %p155 = pneg %p36
        %p156 = pneg %p60
        %p157 = pneg %p57
        %p158 = pneg %p86
        %p159 = pneg %p83
        %p160 = scmp.lt.s32.totalorder %s18, 1
        %s161 = scalar_select %p160, %s18, 1
        %s162 = smul.addr %s161, 54
        %s163 = smul.addr %s162, 8
        %s164 = scalar_lea.vmem %s2, %s163
        %p165 = pneg %p112
        %p166 = pneg %p109
        %s167 = sand.u32 %s99, 1
        %s168 = scalar_lea.sflag [#allocation3], %s167
        %s169 = sand.u32 %s99, 1
        %s170 = smul.addr %s169, 2
        %s171 = scalar_lea.vmem [#allocation2], %s170
        %p172 = scmp.lt.s32.totalorder %s18, 1
        %s173 = scalar_select %p172, %s18, 1
        %s174 = smul.addr %s173, 54
        %s175 = smul.addr %s174, 8
        %s176 = scalar_lea.vmem %s0, %s175
        %p177 = scmp.lt.s32.totalorder %s18, 1
        %s178 = scalar_select %p177, %s18, 1
        %s179 = smul.addr %s178, 54
        %s180 = smul.addr %s179, 8
        %s181 = scalar_lea.vmem %s2, %s180
        %v182 = vld [vmem:[%s176] sm:$0xff]
        %v183 = vld [vmem:[%s176 + $0x8] sm:$0xff]
        %v184 = vld [vmem:[%s176 + $0x18] sm:$0xff]
        %v185 = vld [vmem:[%s176 + $0x20] sm:$0xff]
        %v186 = vld [vmem:[%s176 + $0x30] sm:$0xff]
        %v187 = vld [vmem:[%s176 + $0x38] sm:$0xff]
        %v188 = vld [vmem:[%s176 + $0x48] sm:$0xff]
        %v189 = vld [vmem:[%s176 + $0x50] sm:$0xff]
        %v190 = vld [vmem:[%s176 + $0x60] sm:$0xff]
        %v191 = vld [vmem:[%s176 + $0x68] sm:$0xff]
        %v192 = vld [vmem:[%s176 + $0x78] sm:$0xff]
        %v193 = vld [vmem:[%s176 + $0x80] sm:$0xff]
        %v194 = vld [vmem:[%s176 + $0x90] sm:$0xff]
        %v195 = vld [vmem:[%s176 + $0x98] sm:$0xff]
        %v196 = vld [vmem:[%s176 + $0xa8] sm:$0xff]
        %v197 = vld [vmem:[%s176 + $0xb0] sm:$0xff]
        %v198 = vld [vmem:[%s176 + $0xc0] sm:$0xff]
        %v199 = vld [vmem:[%s176 + $0xc8] sm:$0xff]
        %v200 = vld [vmem:[%s176 + $0xd8] sm:$0xff]
        %v201 = vld [vmem:[%s176 + $0xe0] sm:$0xff]
        %v202 = vld [vmem:[%s176 + $0xf0] sm:$0xff]
        %v203 = vld [vmem:[%s176 + $0xf8] sm:$0xff]
        %v204 = vld [vmem:[%s176 + $0x108] sm:$0xff]
        %v205 = vld [vmem:[%s176 + $0x110] sm:$0xff]
        %v206 = vld [vmem:[%s176 + $0x120] sm:$0xff]
        %v207 = vld [vmem:[%s176 + $0x128] sm:$0xff]
        %v208 = vld [vmem:[%s176 + $0x138] sm:$0xff]
        %v209 = vld [vmem:[%s176 + $0x140] sm:$0xff]
        %v210 = vld [vmem:[%s176 + $0x150] sm:$0xff]
        %v211 = vld [vmem:[%s176 + $0x158] sm:$0xff]
        %v212 = vld [vmem:[%s176 + $0x168] sm:$0xff]
        %v213 = vld [vmem:[%s176 + $0x170] sm:$0xff]
        %v214 = vld [vmem:[%s1] sm:$0xff]
        %v215 = vld [vmem:[%s1 + $0x8] sm:$0xff]
        %v216 = vld [vmem:[%s1 + $0x10] sm:$0xff]
        %v217 = vld [vmem:[%s1 + $0x18] sm:$0xff]
        %v218 = vld [vmem:[%s1 + $0x20] sm:$0xff]
        %v219 = vld [vmem:[%s1 + $0x28] sm:$0xff]
        %v220 = vld [vmem:[%s1 + $0x30] sm:$0xff]
        %v221 = vld [vmem:[%s1 + $0x38] sm:$0xff]
        %v222 = vld [vmem:[%s1 + $0x40] sm:$0xff]
        %v223 = vld [vmem:[%s1 + $0x48] sm:$0xff]
        %v224 = vld [vmem:[%s1 + $0x50] sm:$0xff]
        %v225 = vld [vmem:[%s1 + $0x58] sm:$0xff]
        %v226 = vld [vmem:[%s1 + $0x60] sm:$0xff]
        %v227 = vld [vmem:[%s1 + $0x68] sm:$0xff]
        %v228 = vld [vmem:[%s1 + $0x70] sm:$0xff]
        %v229 = vld [vmem:[%s1 + $0x78] sm:$0xff]
        %v230 = vld [vmem:[%s176 + $0x1] sm:$0xff]
        %v231 = vld [vmem:[%s176 + $0x9] sm:$0xff]
        %v232 = vld [vmem:[%s176 + $0x19] sm:$0xff]
        %v233 = vld [vmem:[%s176 + $0x21] sm:$0xff]
        %v234 = vld [vmem:[%s176 + $0x31] sm:$0xff]
        %v235 = vld [vmem:[%s176 + $0x39] sm:$0xff]
        %v236 = vld [vmem:[%s176 + $0x49] sm:$0xff]
        %v237 = vld [vmem:[%s176 + $0x51] sm:$0xff]
        %v238 = vld [vmem:[%s176 + $0x61] sm:$0xff]
        %v239 = vld [vmem:[%s176 + $0x69] sm:$0xff]
        %v240 = vld [vmem:[%s176 + $0x79] sm:$0xff]
        %v241 = vld [vmem:[%s176 + $0x81] sm:$0xff]
        %v242 = vld [vmem:[%s176 + $0x91] sm:$0xff]
        %v243 = vld [vmem:[%s176 + $0x99] sm:$0xff]
        %v244 = vld [vmem:[%s176 + $0xa9] sm:$0xff]
        %v245 = vld [vmem:[%s176 + $0xb1] sm:$0xff]
        %v246 = vld [vmem:[%s176 + $0xc1] sm:$0xff]
        %v247 = vld [vmem:[%s176 + $0xc9] sm:$0xff]
        %v248 = vld [vmem:[%s176 + $0xd9] sm:$0xff]
        %v249 = vld [vmem:[%s176 + $0xe1] sm:$0xff]
        %v250 = vld [vmem:[%s176 + $0xf1] sm:$0xff]
        %v251 = vld [vmem:[%s176 + $0xf9] sm:$0xff]
        %v252 = vld [vmem:[%s176 + $0x109] sm:$0xff]
        %v253 = vld [vmem:[%s176 + $0x111] sm:$0xff]
        %v254 = vld [vmem:[%s176 + $0x121] sm:$0xff]
        %v255 = vld [vmem:[%s176 + $0x129] sm:$0xff]
        %v256 = vld [vmem:[%s176 + $0x139] sm:$0xff]
        %v257 = vld [vmem:[%s176 + $0x141] sm:$0xff]
        %v258 = vld [vmem:[%s176 + $0x151] sm:$0xff]
        %v259 = vld [vmem:[%s176 + $0x159] sm:$0xff]
        %v260 = vld [vmem:[%s176 + $0x169] sm:$0xff]
        %v261 = vld [vmem:[%s176 + $0x171] sm:$0xff]
        %s262 = scalar_lea.vmem %s1, 128
        %v263 = vld [vmem:[%s262] sm:$0xff]
        %v264 = vld [vmem:[%s262 + $0x8] sm:$0xff]
        %v265 = vld [vmem:[%s262 + $0x10] sm:$0xff]
        %v266 = vld [vmem:[%s262 + $0x18] sm:$0xff]
        %v267 = vld [vmem:[%s262 + $0x20] sm:$0xff]
        %v268 = vld [vmem:[%s262 + $0x28] sm:$0xff]
        %v269 = vld [vmem:[%s262 + $0x30] sm:$0xff]
        %v270 = vld [vmem:[%s262 + $0x38] sm:$0xff]
        %v271 = vld [vmem:[%s262 + $0x40] sm:$0xff]
        %v272 = vld [vmem:[%s262 + $0x48] sm:$0xff]
        %v273 = vld [vmem:[%s262 + $0x50] sm:$0xff]
        %v274 = vld [vmem:[%s262 + $0x58] sm:$0xff]
        %v275 = vld [vmem:[%s262 + $0x60] sm:$0xff]
        %v276 = vld [vmem:[%s262 + $0x68] sm:$0xff]
        %v277 = vld [vmem:[%s262 + $0x70] sm:$0xff]
        %v278 = vld [vmem:[%s262 + $0x78] sm:$0xff]
        %279 = vmatprep.subr.mxu0 0.0
        %280 = vmatpush1.msra.mxu0 %v263
        %281 = vmatprep.subr.mxu0 0.0
        %282 = vmatpush1.msra.mxu0 %v264
        %283 = vmatprep.subr.mxu0 0.0
        %284 = vmatpush1.msra.mxu0 %v265
        %285 = vmatprep.subr.mxu0 0.0
        %286 = vmatpush1.msra.mxu0 %v266
        %287 = vmatprep.subr.mxu0 0.0
        %288 = vmatpush1.msra.mxu0 %v267
        %289 = vmatprep.subr.mxu0 0.0
        %290 = vmatpush1.msra.mxu0 %v268
        %291 = vmatprep.subr.mxu0 0.0
        %292 = vmatpush1.msra.mxu0 %v269
        %293 = vmatprep.subr.mxu0 0.0
        %294 = vmatpush1.msra.mxu0 %v270
        %295 = vmatprep.subr.mxu0 0.0
        %296 = vmatpush1.msra.mxu0 %v271
        %297 = vmatprep.subr.mxu0 0.0
        %298 = vmatpush1.msra.mxu0 %v272
        %299 = vmatprep.subr.mxu0 0.0
        %300 = vmatpush1.msra.mxu0 %v273
        %301 = vmatprep.subr.mxu0 0.0
        %302 = vmatpush1.msra.mxu0 %v274
        %303 = vmatprep.subr.mxu0 0.0
        %304 = vmatpush1.msra.mxu0 %v275
        %305 = vmatprep.subr.mxu0 0.0
        %306 = vmatpush1.msra.mxu0 %v276
        %307 = vmatprep.subr.mxu0 0.0
        %308 = vmatpush1.msra.mxu0 %v277
        %309 = vmatprep.subr.mxu0 0.0
        %310 = vmatpush1.msra.mxu0 %v278
        %311 = vmatprep.subr.mxu0 0.0
        %312 = vmatpush1.msra.mxu0 0.0
        %313 = vmatprep.subr.mxu0 0.0
        %314 = vmatpush1.msra.mxu0 0.0
        %315 = vmatprep.subr.mxu0 0.0
        %316 = vmatpush1.msra.mxu0 0.0
        %317 = vmatprep.subr.mxu0 0.0
        %318 = vmatpush1.msra.mxu0 0.0
        %319 = vmatprep.subr.mxu0 0.0
        %320 = vmatpush1.msra.mxu0 0.0
        %321 = vmatprep.subr.mxu0 0.0
        %322 = vmatpush1.msra.mxu0 0.0
        %323 = vmatprep.subr.mxu0 0.0
        %324 = vmatpush1.msra.mxu0 0.0
        %325 = vmatprep.subr.mxu0 0.0
        %326 = vmatpush1.msra.mxu0 0.0
        %327 = vmatprep.subr.mxu0 0.0
        %328 = vmatpush1.msra.mxu0 0.0
        %329 = vmatprep.subr.mxu0 0.0
        %330 = vmatpush1.msra.mxu0 0.0
        %331 = vmatprep.subr.mxu0 0.0
        %332 = vmatpush1.msra.mxu0 0.0
        %333 = vmatprep.subr.mxu0 0.0
        %334 = vmatpush1.msra.mxu0 0.0
        %335 = vmatprep.subr.mxu0 0.0
        %336 = vmatpush1.msra.mxu0 0.0
        %337 = vmatprep.subr.mxu0 0.0
        %338 = vmatpush1.msra.mxu0 0.0
        %339 = vmatprep.subr.mxu0 0.0
        %340 = vmatpush1.msra.mxu0 0.0
        %341 = vmatprep.subr.mxu0 0.0
        %342 = vmatpush1.msra.mxu0 0.0
        %343 = vmatprep.mubr.f32.mxu0 0.0
        %344 = vmatmul.mubr.f32.gmra.mrb[0].mxu0 %v230
        %v345 = vpop.f32.mrb[0].mxu0
        %v346 = vadd.f32 0.0, %v345
        %v347 = vpop.f32.mrb[0].mxu0
        %348 = vmatprep.mubr.f32.mxu0 0.0
        %349 = vmatmul.mubr.f32.gmra.mrb[0].mxu0 %v231
        %v350 = vpop.f32.mrb[0].mxu0
        %v351 = vadd.f32 0.0, %v350
        %v352 = vpop.f32.mrb[0].mxu0
        %353 = vmatprep.mubr.f32.mxu0 0.0
        %354 = vmatmul.mubr.f32.gmra.mrb[0].mxu0 %v232
        %v355 = vpop.f32.mrb[0].mxu0
        %v356 = vadd.f32 0.0, %v355
        %v357 = vpop.f32.mrb[0].mxu0
        %358 = vmatprep.mubr.f32.mxu0 0.0
        %359 = vmatmul.mubr.f32.gmra.mrb[0].mxu0 %v233
        %v360 = vpop.f32.mrb[0].mxu0
        %v361 = vadd.f32 0.0, %v360
        %v362 = vpop.f32.mrb[0].mxu0
        %363 = vmatprep.mubr.f32.mxu0 0.0
        %364 = vmatmul.mubr.f32.gmra.mrb[0].mxu0 %v234
        %v365 = vpop.f32.mrb[0].mxu0
        %v366 = vadd.f32 0.0, %v365
        %v367 = vpop.f32.mrb[0].mxu0
        %368 = vmatprep.mubr.f32.mxu0 0.0
        %369 = vmatmul.mubr.f32.gmra.mrb[0].mxu0 %v235
        %v370 = vpop.f32.mrb[0].mxu0
        %v371 = vadd.f32 0.0, %v370
        %v372 = vpop.f32.mrb[0].mxu0
        %373 = vmatprep.mubr.f32.mxu0 0.0
        %374 = vmatmul.mubr.f32.gmra.mrb[0].mxu0 %v236
        %v375 = vpop.f32.mrb[0].mxu0
        %v376 = vadd.f32 0.0, %v375
        %v377 = vpop.f32.mrb[0].mxu0
        %378 = vmatprep.mubr.f32.mxu0 0.0
        %379 = vmatmul.mubr.f32.gmra.mrb[0].mxu0 %v237
        %v380 = vpop.f32.mrb[0].mxu0
        %v381 = vadd.f32 0.0, %v380
        %v382 = vpop.f32.mrb[0].mxu0
        %383 = vmatprep.mubr.f32.mxu0 0.0
        %384 = vmatmul.mubr.f32.gmra.mrb[0].mxu0 %v238
        %v385 = vpop.f32.mrb[0].mxu0
        %v386 = vadd.f32 0.0, %v385
        %v387 = vpop.f32.mrb[0].mxu0
        %388 = vmatprep.mubr.f32.mxu0 0.0
        %389 = vmatmul.mubr.f32.gmra.mrb[0].mxu0 %v239
        %v390 = vpop.f32.mrb[0].mxu0
        %v391 = vadd.f32 0.0, %v390
        %v392 = vpop.f32.mrb[0].mxu0
        %393 = vmatprep.mubr.f32.mxu0 0.0
        %394 = vmatmul.mubr.f32.gmra.mrb[0].mxu0 %v240
        %v395 = vpop.f32.mrb[0].mxu0
        %v396 = vadd.f32 0.0, %v395
        %v397 = vpop.f32.mrb[0].mxu0
        %398 = vmatprep.mubr.f32.mxu0 0.0
        %399 = vmatmul.mubr.f32.gmra.mrb[0].mxu0 %v241
        %v400 = vpop.f32.mrb[0].mxu0
        %v401 = vadd.f32 0.0, %v400
        %v402 = vpop.f32.mrb[0].mxu0
        %403 = vmatprep.mubr.f32.mxu0 0.0
        %404 = vmatmul.mubr.f32.gmra.mrb[0].mxu0 %v242
        %v405 = vpop.f32.mrb[0].mxu0
        %v406 = vadd.f32 0.0, %v405
        %v407 = vpop.f32.mrb[0].mxu0
        %408 = vmatprep.mubr.f32.mxu0 0.0
        %409 = vmatmul.mubr.f32.gmra.mrb[0].mxu0 %v243
        %v410 = vpop.f32.mrb[0].mxu0
        %v411 = vadd.f32 0.0, %v410
        %v412 = vpop.f32.mrb[0].mxu0
        %413 = vmatprep.mubr.f32.mxu0 0.0
        %414 = vmatmul.mubr.f32.gmra.mrb[0].mxu0 %v244
        %v415 = vpop.f32.mrb[0].mxu0
        %v416 = vadd.f32 0.0, %v415
        %v417 = vpop.f32.mrb[0].mxu0
        %418 = vmatprep.mubr.f32.mxu0 0.0
        %419 = vmatmul.mubr.f32.gmra.mrb[0].mxu0 %v245
        %v420 = vpop.f32.mrb[0].mxu0
        %v421 = vadd.f32 0.0, %v420
        %v422 = vpop.f32.mrb[0].mxu0
        %423 = vmatprep.mubr.f32.mxu0 0.0
        %424 = vmatmul.mubr.f32.gmra.mrb[0].mxu0 %v246
        %v425 = vpop.f32.mrb[0].mxu0
        %v426 = vadd.f32 0.0, %v425
        %v427 = vpop.f32.mrb[0].mxu0
        %428 = vmatprep.mubr.f32.mxu0 0.0
        %429 = vmatmul.mubr.f32.gmra.mrb[0].mxu0 %v247
        %v430 = vpop.f32.mrb[0].mxu0
        %v431 = vadd.f32 0.0, %v430
        %v432 = vpop.f32.mrb[0].mxu0
        %433 = vmatprep.mubr.f32.mxu0 0.0
        %434 = vmatmul.mubr.f32.gmra.mrb[0].mxu0 %v248
        %v435 = vpop.f32.mrb[0].mxu0
        %v436 = vadd.f32 0.0, %v435
        %v437 = vpop.f32.mrb[0].mxu0
        %438 = vmatprep.mubr.f32.mxu0 0.0
        %439 = vmatmul.mubr.f32.gmra.mrb[0].mxu0 %v249
        %v440 = vpop.f32.mrb[0].mxu0
        %v441 = vadd.f32 0.0, %v440
        %v442 = vpop.f32.mrb[0].mxu0
        %443 = vmatprep.mubr.f32.mxu0 0.0
        %444 = vmatmul.mubr.f32.gmra.mrb[0].mxu0 %v250
        %v445 = vpop.f32.mrb[0].mxu0
        %v446 = vadd.f32 0.0, %v445
        %v447 = vpop.f32.mrb[0].mxu0
        %448 = vmatprep.mubr.f32.mxu0 0.0
        %449 = vmatmul.mubr.f32.gmra.mrb[0].mxu0 %v251
        %v450 = vpop.f32.mrb[0].mxu0
        %v451 = vadd.f32 0.0, %v450
        %v452 = vpop.f32.mrb[0].mxu0
        %453 = vmatprep.mubr.f32.mxu0 0.0
        %454 = vmatmul.mubr.f32.gmra.mrb[0].mxu0 %v252
        %v455 = vpop.f32.mrb[0].mxu0
        %v456 = vadd.f32 0.0, %v455
        %v457 = vpop.f32.mrb[0].mxu0
        %458 = vmatprep.mubr.f32.mxu0 0.0
        %459 = vmatmul.mubr.f32.gmra.mrb[0].mxu0 %v253
        %v460 = vpop.f32.mrb[0].mxu0
        %v461 = vadd.f32 0.0, %v460
        %v462 = vpop.f32.mrb[0].mxu0
        %463 = vmatprep.mubr.f32.mxu0 0.0
        %464 = vmatmul.mubr.f32.gmra.mrb[0].mxu0 %v254
        %v465 = vpop.f32.mrb[0].mxu0
        %v466 = vadd.f32 0.0, %v465
        %v467 = vpop.f32.mrb[0].mxu0
        %468 = vmatprep.mubr.f32.mxu0 0.0
        %469 = vmatmul.mubr.f32.gmra.mrb[0].mxu0 %v255
        %v470 = vpop.f32.mrb[0].mxu0
        %v471 = vadd.f32 0.0, %v470
        %v472 = vpop.f32.mrb[0].mxu0
        %473 = vmatprep.mubr.f32.mxu0 0.0
        %474 = vmatmul.mubr.f32.gmra.mrb[0].mxu0 %v256
        %v475 = vpop.f32.mrb[0].mxu0
        %v476 = vadd.f32 0.0, %v475
        %v477 = vpop.f32.mrb[0].mxu0
        %478 = vmatprep.mubr.f32.mxu0 0.0
        %479 = vmatmul.mubr.f32.gmra.mrb[0].mxu0 %v257
        %v480 = vpop.f32.mrb[0].mxu0
        %v481 = vadd.f32 0.0, %v480
        %v482 = vpop.f32.mrb[0].mxu0
        %483 = vmatprep.mubr.f32.mxu0 0.0
        %484 = vmatmul.mubr.f32.gmra.mrb[0].mxu0 %v258
        %v485 = vpop.f32.mrb[0].mxu0
        %v486 = vadd.f32 0.0, %v485
        %v487 = vpop.f32.mrb[0].mxu0
        %488 = vmatprep.mubr.f32.mxu0 0.0
        %489 = vmatmul.mubr.f32.gmra.mrb[0].mxu0 %v259
        %v490 = vpop.f32.mrb[0].mxu0
        %v491 = vadd.f32 0.0, %v490
        %v492 = vpop.f32.mrb[0].mxu0
        %493 = vmatprep.mubr.f32.mxu0 0.0
        %494 = vmatmul.mubr.f32.gmra.mrb[0].mxu0 %v260
        %v495 = vpop.f32.mrb[0].mxu0
        %v496 = vadd.f32 0.0, %v495
        %v497 = vpop.f32.mrb[0].mxu0
        %498 = vmatprep.mubr.f32.mxu0 0.0
        %499 = vmatmul.mubr.f32.gmra.mrb[0].mxu0 %v261
        %v500 = vpop.f32.mrb[0].mxu0
        %v501 = vadd.f32 0.0, %v500
        %v502 = vpop.f32.mrb[0].mxu0
        %503 = vdwg.mxu0
        %504 = vmatprep.subr.mxu0 0.0
        %505 = vmatpush1.msra.mxu0 %v214
        %506 = vmatprep.subr.mxu0 0.0
        %507 = vmatpush1.msra.mxu0 %v215
        %508 = vmatprep.subr.mxu0 0.0
        %509 = vmatpush1.msra.mxu0 %v216
        %510 = vmatprep.subr.mxu0 0.0
        %511 = vmatpush1.msra.mxu0 %v217
        %512 = vmatprep.subr.mxu0 0.0
        %513 = vmatpush1.msra.mxu0 %v218
        %514 = vmatprep.subr.mxu0 0.0
        %515 = vmatpush1.msra.mxu0 %v219
        %516 = vmatprep.subr.mxu0 0.0
        %517 = vmatpush1.msra.mxu0 %v220
        %518 = vmatprep.subr.mxu0 0.0
        %519 = vmatpush1.msra.mxu0 %v221
        %520 = vmatprep.subr.mxu0 0.0
        %521 = vmatpush1.msra.mxu0 %v222
        %522 = vmatprep.subr.mxu0 0.0
        %523 = vmatpush1.msra.mxu0 %v223
        %524 = vmatprep.subr.mxu0 0.0
        %525 = vmatpush1.msra.mxu0 %v224
        %526 = vmatprep.subr.mxu0 0.0
        %527 = vmatpush1.msra.mxu0 %v225
        %528 = vmatprep.subr.mxu0 0.0
        %529 = vmatpush1.msra.mxu0 %v226
        %530 = vmatprep.subr.mxu0 0.0
        %531 = vmatpush1.msra.mxu0 %v227
        %532 = vmatprep.subr.mxu0 0.0
        %533 = vmatpush1.msra.mxu0 %v228
        %534 = vmatprep.subr.mxu0 0.0
        %535 = vmatpush1.msra.mxu0 %v229
        %536 = vmatprep.subr.mxu0 0.0
        %537 = vmatpush1.msra.mxu0 0.0
        %538 = vmatprep.subr.mxu0 0.0
        %539 = vmatpush1.msra.mxu0 0.0
        %540 = vmatprep.subr.mxu0 0.0
        %541 = vmatpush1.msra.mxu0 0.0
        %542 = vmatprep.subr.mxu0 0.0
        %543 = vmatpush1.msra.mxu0 0.0
        %544 = vmatprep.subr.mxu0 0.0
        %545 = vmatpush1.msra.mxu0 0.0
        %546 = vmatprep.subr.mxu0 0.0
        %547 = vmatpush1.msra.mxu0 0.0
        %548 = vmatprep.subr.mxu0 0.0
        %549 = vmatpush1.msra.mxu0 0.0
        %550 = vmatprep.subr.mxu0 0.0
        %551 = vmatpush1.msra.mxu0 0.0
        %552 = vmatprep.subr.mxu0 0.0
        %553 = vmatpush1.msra.mxu0 0.0
        %554 = vmatprep.subr.mxu0 0.0
        %555 = vmatpush1.msra.mxu0 0.0
        %556 = vmatprep.subr.mxu0 0.0
        %557 = vmatpush1.msra.mxu0 0.0
        %558 = vmatprep.subr.mxu0 0.0
        %559 = vmatpush1.msra.mxu0 0.0
        %560 = vmatprep.subr.mxu0 0.0
        %561 = vmatpush1.msra.mxu0 0.0
        %562 = vmatprep.subr.mxu0 0.0
        %563 = vmatpush1.msra.mxu0 0.0
        %564 = vmatprep.subr.mxu0 0.0
        %565 = vmatpush1.msra.mxu0 0.0
        %566 = vmatprep.subr.mxu0 0.0
        %567 = vmatpush1.msra.mxu0 0.0
        %568 = vmatprep.mubr.f32.mxu0 0.0
        %569 = vmatmul.mubr.f32.gmra.mrb[0].mxu0 %v182
        %v570 = vpop.f32.mrb[0].mxu0
        %v571 = vadd.f32 %v346, %v570
        %v572 = vpop.f32.mrb[0].mxu0
        %573 = vmatprep.mubr.f32.mxu0 0.0
        %574 = vmatmul.mubr.f32.gmra.mrb[0].mxu0 %v183
        %v575 = vpop.f32.mrb[0].mxu0
        %v576 = vadd.f32 %v351, %v575
        %v577 = vpop.f32.mrb[0].mxu0
        %578 = vmatprep.mubr.f32.mxu0 0.0
        %579 = vmatmul.mubr.f32.gmra.mrb[0].mxu0 %v184
        %v580 = vpop.f32.mrb[0].mxu0
        %v581 = vadd.f32 %v356, %v580
        %v582 = vpop.f32.mrb[0].mxu0
        %583 = vmatprep.mubr.f32.mxu0 0.0
        %584 = vmatmul.mubr.f32.gmra.mrb[0].mxu0 %v185
        %v585 = vpop.f32.mrb[0].mxu0
        %v586 = vadd.f32 %v361, %v585
        %v587 = vpop.f32.mrb[0].mxu0
        %588 = vmatprep.mubr.f32.mxu0 0.0
        %589 = vmatmul.mubr.f32.gmra.mrb[0].mxu0 %v186
        %v590 = vpop.f32.mrb[0].mxu0
        %v591 = vadd.f32 %v366, %v590
        %v592 = vpop.f32.mrb[0].mxu0
        %593 = vmatprep.mubr.f32.mxu0 0.0
        %594 = vmatmul.mubr.f32.gmra.mrb[0].mxu0 %v187
        %v595 = vpop.f32.mrb[0].mxu0
        %v596 = vadd.f32 %v371, %v595
        %v597 = vpop.f32.mrb[0].mxu0
        %598 = vmatprep.mubr.f32.mxu0 0.0
        %599 = vmatmul.mubr.f32.gmra.mrb[0].mxu0 %v188
        %v600 = vpop.f32.mrb[0].mxu0
        %v601 = vadd.f32 %v376, %v600
        %v602 = vpop.f32.mrb[0].mxu0
        %603 = vmatprep.mubr.f32.mxu0 0.0
        %604 = vmatmul.mubr.f32.gmra.mrb[0].mxu0 %v189
        %v605 = vpop.f32.mrb[0].mxu0
        %v606 = vadd.f32 %v381, %v605
        %v607 = vpop.f32.mrb[0].mxu0
        %608 = vmatprep.mubr.f32.mxu0 0.0
        %609 = vmatmul.mubr.f32.gmra.mrb[0].mxu0 %v190
        %v610 = vpop.f32.mrb[0].mxu0
        %v611 = vadd.f32 %v386, %v610
        %v612 = vpop.f32.mrb[0].mxu0
        %613 = vmatprep.mubr.f32.mxu0 0.0
        %614 = vmatmul.mubr.f32.gmra.mrb[0].mxu0 %v191
        %v615 = vpop.f32.mrb[0].mxu0
        %v616 = vadd.f32 %v391, %v615
        %v617 = vpop.f32.mrb[0].mxu0
        %618 = vmatprep.mubr.f32.mxu0 0.0
        %619 = vmatmul.mubr.f32.gmra.mrb[0].mxu0 %v192
        %v620 = vpop.f32.mrb[0].mxu0
        %v621 = vadd.f32 %v396, %v620
        %v622 = vpop.f32.mrb[0].mxu0
        %623 = vmatprep.mubr.f32.mxu0 0.0
        %624 = vmatmul.mubr.f32.gmra.mrb[0].mxu0 %v193
        %v625 = vpop.f32.mrb[0].mxu0
        %v626 = vadd.f32 %v401, %v625
        %v627 = vpop.f32.mrb[0].mxu0
        %628 = vmatprep.mubr.f32.mxu0 0.0
        %629 = vmatmul.mubr.f32.gmra.mrb[0].mxu0 %v194
        %v630 = vpop.f32.mrb[0].mxu0
        %v631 = vadd.f32 %v406, %v630
        %v632 = vpop.f32.mrb[0].mxu0
        %633 = vmatprep.mubr.f32.mxu0 0.0
        %634 = vmatmul.mubr.f32.gmra.mrb[0].mxu0 %v195
        %v635 = vpop.f32.mrb[0].mxu0
        %v636 = vadd.f32 %v411, %v635
        %v637 = vpop.f32.mrb[0].mxu0
        %638 = vmatprep.mubr.f32.mxu0 0.0
        %639 = vmatmul.mubr.f32.gmra.mrb[0].mxu0 %v196
        %v640 = vpop.f32.mrb[0].mxu0
        %v641 = vadd.f32 %v416, %v640
        %v642 = vpop.f32.mrb[0].mxu0
        %643 = vmatprep.mubr.f32.mxu0 0.0
        %644 = vmatmul.mubr.f32.gmra.mrb[0].mxu0 %v197
        %v645 = vpop.f32.mrb[0].mxu0
        %v646 = vadd.f32 %v421, %v645
        %v647 = vpop.f32.mrb[0].mxu0
        %648 = vmatprep.mubr.f32.mxu0 0.0
        %649 = vmatmul.mubr.f32.gmra.mrb[0].mxu0 %v198
        %v650 = vpop.f32.mrb[0].mxu0
        %v651 = vadd.f32 %v426, %v650
        %v652 = vpop.f32.mrb[0].mxu0
        %653 = vmatprep.mubr.f32.mxu0 0.0
        %654 = vmatmul.mubr.f32.gmra.mrb[0].mxu0 %v199
        %v655 = vpop.f32.mrb[0].mxu0
        %v656 = vadd.f32 %v431, %v655
        %v657 = vpop.f32.mrb[0].mxu0
        %658 = vmatprep.mubr.f32.mxu0 0.0
        %659 = vmatmul.mubr.f32.gmra.mrb[0].mxu0 %v200
        %v660 = vpop.f32.mrb[0].mxu0
        %v661 = vadd.f32 %v436, %v660
        %v662 = vpop.f32.mrb[0].mxu0
        %663 = vmatprep.mubr.f32.mxu0 0.0
        %664 = vmatmul.mubr.f32.gmra.mrb[0].mxu0 %v201
        %v665 = vpop.f32.mrb[0].mxu0
        %v666 = vadd.f32 %v441, %v665
        %v667 = vpop.f32.mrb[0].mxu0
        %668 = vmatprep.mubr.f32.mxu0 0.0
        %669 = vmatmul.mubr.f32.gmra.mrb[0].mxu0 %v202
        %v670 = vpop.f32.mrb[0].mxu0
        %v671 = vadd.f32 %v446, %v670
        %v672 = vpop.f32.mrb[0].mxu0
        %673 = vmatprep.mubr.f32.mxu0 0.0
        %674 = vmatmul.mubr.f32.gmra.mrb[0].mxu0 %v203
        %v675 = vpop.f32.mrb[0].mxu0
        %v676 = vadd.f32 %v451, %v675
        %v677 = vpop.f32.mrb[0].mxu0
        %678 = vmatprep.mubr.f32.mxu0 0.0
        %679 = vmatmul.mubr.f32.gmra.mrb[0].mxu0 %v204
        %v680 = vpop.f32.mrb[0].mxu0
        %v681 = vadd.f32 %v456, %v680
        %v682 = vpop.f32.mrb[0].mxu0
        %683 = vmatprep.mubr.f32.mxu0 0.0
        %684 = vmatmul.mubr.f32.gmra.mrb[0].mxu0 %v205
        %v685 = vpop.f32.mrb[0].mxu0
        %v686 = vadd.f32 %v461, %v685
        %v687 = vpop.f32.mrb[0].mxu0
        %688 = vmatprep.mubr.f32.mxu0 0.0
        %689 = vmatmul.mubr.f32.gmra.mrb[0].mxu0 %v206
        %v690 = vpop.f32.mrb[0].mxu0
        %v691 = vadd.f32 %v466, %v690
        %v692 = vpop.f32.mrb[0].mxu0
        %693 = vmatprep.mubr.f32.mxu0 0.0
        %694 = vmatmul.mubr.f32.gmra.mrb[0].mxu0 %v207
        %v695 = vpop.f32.mrb[0].mxu0
        %v696 = vadd.f32 %v471, %v695
        %v697 = vpop.f32.mrb[0].mxu0
        %698 = vmatprep.mubr.f32.mxu0 0.0
        %699 = vmatmul.mubr.f32.gmra.mrb[0].mxu0 %v208
        %v700 = vpop.f32.mrb[0].mxu0
        %v701 = vadd.f32 %v476, %v700
        %v702 = vpop.f32.mrb[0].mxu0
        %703 = vmatprep.mubr.f32.mxu0 0.0
        %704 = vmatmul.mubr.f32.gmra.mrb[0].mxu0 %v209
        %v705 = vpop.f32.mrb[0].mxu0
        %v706 = vadd.f32 %v481, %v705
        %v707 = vpop.f32.mrb[0].mxu0
        %708 = vmatprep.mubr.f32.mxu0 0.0
        %709 = vmatmul.mubr.f32.gmra.mrb[0].mxu0 %v210
        %v710 = vpop.f32.mrb[0].mxu0
        %v711 = vadd.f32 %v486, %v710
        %v712 = vpop.f32.mrb[0].mxu0
        %713 = vmatprep.mubr.f32.mxu0 0.0
        %714 = vmatmul.mubr.f32.gmra.mrb[0].mxu0 %v211
        %v715 = vpop.f32.mrb[0].mxu0
        %v716 = vadd.f32 %v491, %v715
        %v717 = vpop.f32.mrb[0].mxu0
        %718 = vmatprep.mubr.f32.mxu0 0.0
        %719 = vmatmul.mubr.f32.gmra.mrb[0].mxu0 %v212
        %v720 = vpop.f32.mrb[0].mxu0
        %v721 = vadd.f32 %v496, %v720
        %v722 = vpop.f32.mrb[0].mxu0
        %723 = vmatprep.mubr.f32.mxu0 0.0
        %724 = vmatmul.mubr.f32.gmra.mrb[0].mxu0 %v213
        %v725 = vpop.f32.mrb[0].mxu0
        %v726 = vadd.f32 %v501, %v725
        %v727 = vpop.f32.mrb[0].mxu0
        %728 = vdwg.mxu0
        %v729 = vld [vmem:[%s176 + $0x2] sm:$0xff]
        %v730 = vld [vmem:[%s176 + $0xa] sm:$0xff]
        %v731 = vld [vmem:[%s176 + $0x1a] sm:$0xff]
        %v732 = vld [vmem:[%s176 + $0x22] sm:$0xff]
        %v733 = vld [vmem:[%s176 + $0x32] sm:$0xff]
        %v734 = vld [vmem:[%s176 + $0x3a] sm:$0xff]
        %v735 = vld [vmem:[%s176 + $0x4a] sm:$0xff]
        %v736 = vld [vmem:[%s176 + $0x52] sm:$0xff]
        %v737 = vld [vmem:[%s176 + $0x62] sm:$0xff]
        %v738 = vld [vmem:[%s176 + $0x6a] sm:$0xff]
        %v739 = vld [vmem:[%s176 + $0x7a] sm:$0xff]
        %v740 = vld [vmem:[%s176 + $0x82] sm:$0xff]
        %v741 = vld [vmem:[%s176 + $0x92] sm:$0xff]
        %v742 = vld [vmem:[%s176 + $0x9a] sm:$0xff]
        %v743 = vld [vmem:[%s176 + $0xaa] sm:$0xff]
        %v744 = vld [vmem:[%s176 + $0xb2] sm:$0xff]
        %v745 = vld [vmem:[%s176 + $0xc2] sm:$0xff]
        %v746 = vld [vmem:[%s176 + $0xca] sm:$0xff]
        %v747 = vld [vmem:[%s176 + $0xda] sm:$0xff]
        %v748 = vld [vmem:[%s176 + $0xe2] sm:$0xff]
        %v749 = vld [vmem:[%s176 + $0xf2] sm:$0xff]
        %v750 = vld [vmem:[%s176 + $0xfa] sm:$0xff]
        %v751 = vld [vmem:[%s176 + $0x10a] sm:$0xff]
        %v752 = vld [vmem:[%s176 + $0x112] sm:$0xff]
        %v753 = vld [vmem:[%s176 + $0x122] sm:$0xff]
        %v754 = vld [vmem:[%s176 + $0x12a] sm:$0xff]
        %v755 = vld [vmem:[%s176 + $0x13a] sm:$0xff]
        %v756 = vld [vmem:[%s176 + $0x142] sm:$0xff]
        %v757 = vld [vmem:[%s176 + $0x152] sm:$0xff]
        %v758 = vld [vmem:[%s176 + $0x15a] sm:$0xff]
        %v759 = vld [vmem:[%s176 + $0x16a] sm:$0xff]
        %v760 = vld [vmem:[%s176 + $0x172] sm:$0xff]
        %s761 = scalar_lea.vmem %s1, 256
        %v762 = vld [vmem:[%s761] sm:$0xff]
        %v763 = vld [vmem:[%s761 + $0x8] sm:$0xff]
        %v764 = vld [vmem:[%s761 + $0x10] sm:$0xff]
        %v765 = vld [vmem:[%s761 + $0x18] sm:$0xff]
        %v766 = vld [vmem:[%s761 + $0x20] sm:$0xff]
        %v767 = vld [vmem:[%s761 + $0x28] sm:$0xff]
        %v768 = vld [vmem:[%s761 + $0x30] sm:$0xff]
        %v769 = vld [vmem:[%s761 + $0x38] sm:$0xff]
        %v770 = vld [vmem:[%s761 + $0x40] sm:$0xff]
        %v771 = vld [vmem:[%s761 + $0x48] sm:$0xff]
        %v772 = vld [vmem:[%s761 + $0x50] sm:$0xff]
        %v773 = vld [vmem:[%s761 + $0x58] sm:$0xff]
        %v774 = vld [vmem:[%s761 + $0x60] sm:$0xff]
        %v775 = vld [vmem:[%s761 + $0x68] sm:$0xff]
        %v776 = vld [vmem:[%s761 + $0x70] sm:$0xff]
        %v777 = vld [vmem:[%s761 + $0x78] sm:$0xff]
        %778 = vmatprep.subr.mxu0 0.0
        %779 = vmatpush1.msra.mxu0 %v762
        %780 = vmatprep.subr.mxu0 0.0
        %781 = vmatpush1.msra.mxu0 %v763
        %782 = vmatprep.subr.mxu0 0.0
        %783 = vmatpush1.msra.mxu0 %v764
        %784 = vmatprep.subr.mxu0 0.0
        %785 = vmatpush1.msra.mxu0 %v765
        %786 = vmatprep.subr.mxu0 0.0
        %787 = vmatpush1.msra.mxu0 %v766
        %788 = vmatprep.subr.mxu0 0.0
        %789 = vmatpush1.msra.mxu0 %v767
        %790 = vmatprep.subr.mxu0 0.0
        %791 = vmatpush1.msra.mxu0 %v768
        %792 = vmatprep.subr.mxu0 0.0
        %793 = vmatpush1.msra.mxu0 %v769
        %794 = vmatprep.subr.mxu0 0.0
        %795 = vmatpush1.msra.mxu0 %v770
        %796 = vmatprep.subr.mxu0 0.0
        %797 = vmatpush1.msra.mxu0 %v771
        %798 = vmatprep.subr.mxu0 0.0
        %799 = vmatpush1.msra.mxu0 %v772
        %800 = vmatprep.subr.mxu0 0.0
        %801 = vmatpush1.msra.mxu0 %v773
        %802 = vmatprep.subr.mxu0 0.0
        %803 = vmatpush1.msra.mxu0 %v774
        %804 = vmatprep.subr.mxu0 0.0
        %805 = vmatpush1.msra.mxu0 %v775
        %806 = vmatprep.subr.mxu0 0.0
        %807 = vmatpush1.msra.mxu0 %v776
        %808 = vmatprep.subr.mxu0 0.0
        %809 = vmatpush1.msra.mxu0 %v777
        %810 = vmatprep.subr.mxu0 0.0
        %811 = vmatpush1.msra.mxu0 0.0
        %812 = vmatprep.subr.mxu0 0.0
        %813 = vmatpush1.msra.mxu0 0.0
        %814 = vmatprep.subr.mxu0 0.0
        %815 = vmatpush1.msra.mxu0 0.0
        %816 = vmatprep.subr.mxu0 0.0
        %817 = vmatpush1.msra.mxu0 0.0
        %818 = vmatprep.subr.mxu0 0.0
        %819 = vmatpush1.msra.mxu0 0.0
        %820 = vmatprep.subr.mxu0 0.0
        %821 = vmatpush1.msra.mxu0 0.0
        %822 = vmatprep.subr.mxu0 0.0
        %823 = vmatpush1.msra.mxu0 0.0
        %824 = vmatprep.subr.mxu0 0.0
        %825 = vmatpush1.msra.mxu0 0.0
        %826 = vmatprep.subr.mxu0 0.0
        %827 = vmatpush1.msra.mxu0 0.0
        %828 = vmatprep.subr.mxu0 0.0
        %829 = vmatpush1.msra.mxu0 0.0
        %830 = vmatprep.subr.mxu0 0.0
        %831 = vmatpush1.msra.mxu0 0.0
        %832 = vmatprep.subr.mxu0 0.0
        %833 = vmatpush1.msra.mxu0 0.0
        %834 = vmatprep.subr.mxu0 0.0
        %835 = vmatpush1.msra.mxu0 0.0
        %836 = vmatprep.subr.mxu0 0.0
        %837 = vmatpush1.msra.mxu0 0.0
        %838 = vmatprep.subr.mxu0 0.0
        %839 = vmatpush1.msra.mxu0 0.0
        %840 = vmatprep.subr.mxu0 0.0
        %841 = vmatpush1.msra.mxu0 0.0
        %842 = vmatprep.mubr.f32.mxu0 0.0
        %843 = vmatmul.mubr.f32.gmra.mrb[0].mxu0 %v729
        %v844 = vpop.f32.mrb[0].mxu0
        %v845 = vadd.f32 0.0, %v844
        %v846 = vpop.f32.mrb[0].mxu0
        %847 = vmatprep.mubr.f32.mxu0 0.0
        %848 = vmatmul.mubr.f32.gmra.mrb[0].mxu0 %v730
        %v849 = vpop.f32.mrb[0].mxu0
        %v850 = vadd.f32 0.0, %v849
        %v851 = vpop.f32.mrb[0].mxu0
        %852 = vmatprep.mubr.f32.mxu0 0.0
        %853 = vmatmul.mubr.f32.gmra.mrb[0].mxu0 %v731
        %v854 = vpop.f32.mrb[0].mxu0
        %v855 = vadd.f32 0.0, %v854
        %v856 = vpop.f32.mrb[0].mxu0
        %857 = vmatprep.mubr.f32.mxu0 0.0
        %858 = vmatmul.mubr.f32.gmra.mrb[0].mxu0 %v732
        %v859 = vpop.f32.mrb[0].mxu0
        %v860 = vadd.f32 0.0, %v859
        %v861 = vpop.f32.mrb[0].mxu0
        %862 = vmatprep.mubr.f32.mxu0 0.0
        %863 = vmatmul.mubr.f32.gmra.mrb[0].mxu0 %v733
        %v864 = vpop.f32.mrb[0].mxu0
        %v865 = vadd.f32 0.0, %v864
        %v866 = vpop.f32.mrb[0].mxu0
        %867 = vmatprep.mubr.f32.mxu0 0.0
        %868 = vmatmul.mubr.f32.gmra.mrb[0].mxu0 %v734
        %v869 = vpop.f32.mrb[0].mxu0
        %v870 = vadd.f32 0.0, %v869
        %v871 = vpop.f32.mrb[0].mxu0
        %872 = vmatprep.mubr.f32.mxu0 0.0
        %873 = vmatmul.mubr.f32.gmra.mrb[0].mxu0 %v735
        %v874 = vpop.f32.mrb[0].mxu0
        %v875 = vadd.f32 0.0, %v874
        %v876 = vpop.f32.mrb[0].mxu0
        %877 = vmatprep.mubr.f32.mxu0 0.0
        %878 = vmatmul.mubr.f32.gmra.mrb[0].mxu0 %v736
        %v879 = vpop.f32.mrb[0].mxu0
        %v880 = vadd.f32 0.0, %v879
        %v881 = vpop.f32.mrb[0].mxu0
        %882 = vmatprep.mubr.f32.mxu0 0.0
        %883 = vmatmul.mubr.f32.gmra.mrb[0].mxu0 %v737
        %v884 = vpop.f32.mrb[0].mxu0
        %v885 = vadd.f32 0.0, %v884
        %v886 = vpop.f32.mrb[0].mxu0
        %887 = vmatprep.mubr.f32.mxu0 0.0
        %888 = vmatmul.mubr.f32.gmra.mrb[0].mxu0 %v738
        %v889 = vpop.f32.mrb[0].mxu0
        %v890 = vadd.f32 0.0, %v889
        %v891 = vpop.f32.mrb[0].mxu0
        %892 = vmatprep.mubr.f32.mxu0 0.0
        %893 = vmatmul.mubr.f32.gmra.mrb[0].mxu0 %v739
        %v894 = vpop.f32.mrb[0].mxu0
        %v895 = vadd.f32 0.0, %v894
        %v896 = vpop.f32.mrb[0].mxu0
        %897 = vmatprep.mubr.f32.mxu0 0.0
        %898 = vmatmul.mubr.f32.gmra.mrb[0].mxu0 %v740
        %v899 = vpop.f32.mrb[0].mxu0
        %v900 = vadd.f32 0.0, %v899
        %v901 = vpop.f32.mrb[0].mxu0
        %902 = vmatprep.mubr.f32.mxu0 0.0
        %903 = vmatmul.mubr.f32.gmra.mrb[0].mxu0 %v741
        %v904 = vpop.f32.mrb[0].mxu0
        %v905 = vadd.f32 0.0, %v904
        %v906 = vpop.f32.mrb[0].mxu0
        %907 = vmatprep.mubr.f32.mxu0 0.0
        %908 = vmatmul.mubr.f32.gmra.mrb[0].mxu0 %v742
        %v909 = vpop.f32.mrb[0].mxu0
        %v910 = vadd.f32 0.0, %v909
        %v911 = vpop.f32.mrb[0].mxu0
        %912 = vmatprep.mubr.f32.mxu0 0.0
        %913 = vmatmul.mubr.f32.gmra.mrb[0].mxu0 %v743
        %v914 = vpop.f32.mrb[0].mxu0
        %v915 = vadd.f32 0.0, %v914
        %v916 = vpop.f32.mrb[0].mxu0
        %917 = vmatprep.mubr.f32.mxu0 0.0
        %918 = vmatmul.mubr.f32.gmra.mrb[0].mxu0 %v744
        %v919 = vpop.f32.mrb[0].mxu0
        %v920 = vadd.f32 0.0, %v919
        %v921 = vpop.f32.mrb[0].mxu0
        %922 = vmatprep.mubr.f32.mxu0 0.0
        %923 = vmatmul.mubr.f32.gmra.mrb[0].mxu0 %v745
        %v924 = vpop.f32.mrb[0].mxu0
        %v925 = vadd.f32 0.0, %v924
        %v926 = vpop.f32.mrb[0].mxu0
        %927 = vmatprep.mubr.f32.mxu0 0.0
        %928 = vmatmul.mubr.f32.gmra.mrb[0].mxu0 %v746
        %v929 = vpop.f32.mrb[0].mxu0
        %v930 = vadd.f32 0.0, %v929
        %v931 = vpop.f32.mrb[0].mxu0
        %932 = vmatprep.mubr.f32.mxu0 0.0
        %933 = vmatmul.mubr.f32.gmra.mrb[0].mxu0 %v747
        %v934 = vpop.f32.mrb[0].mxu0
        %v935 = vadd.f32 0.0, %v934
        %v936 = vpop.f32.mrb[0].mxu0
        %937 = vmatprep.mubr.f32.mxu0 0.0
        %938 = vmatmul.mubr.f32.gmra.mrb[0].mxu0 %v748
        %v939 = vpop.f32.mrb[0].mxu0
        %v940 = vadd.f32 0.0, %v939
        %v941 = vpop.f32.mrb[0].mxu0
        %942 = vmatprep.mubr.f32.mxu0 0.0
        %943 = vmatmul.mubr.f32.gmra.mrb[0].mxu0 %v749
        %v944 = vpop.f32.mrb[0].mxu0
        %v945 = vadd.f32 0.0, %v944
        %v946 = vpop.f32.mrb[0].mxu0
        %947 = vmatprep.mubr.f32.mxu0 0.0
        %948 = vmatmul.mubr.f32.gmra.mrb[0].mxu0 %v750
        %v949 = vpop.f32.mrb[0].mxu0
        %v950 = vadd.f32 0.0, %v949
        %v951 = vpop.f32.mrb[0].mxu0
        %952 = vmatprep.mubr.f32.mxu0 0.0
        %953 = vmatmul.mubr.f32.gmra.mrb[0].mxu0 %v751
        %v954 = vpop.f32.mrb[0].mxu0
        %v955 = vadd.f32 0.0, %v954
        %v956 = vpop.f32.mrb[0].mxu0
        %957 = vmatprep.mubr.f32.mxu0 0.0
        %958 = vmatmul.mubr.f32.gmra.mrb[0].mxu0 %v752
        %v959 = vpop.f32.mrb[0].mxu0
        %v960 = vadd.f32 0.0, %v959
        %v961 = vpop.f32.mrb[0].mxu0
        %962 = vmatprep.mubr.f32.mxu0 0.0
        %963 = vmatmul.mubr.f32.gmra.mrb[0].mxu0 %v753
        %v964 = vpop.f32.mrb[0].mxu0
        %v965 = vadd.f32 0.0, %v964
        %v966 = vpop.f32.mrb[0].mxu0
        %967 = vmatprep.mubr.f32.mxu0 0.0
        %968 = vmatmul.mubr.f32.gmra.mrb[0].mxu0 %v754
        %v969 = vpop.f32.mrb[0].mxu0
        %v970 = vadd.f32 0.0, %v969
        %v971 = vpop.f32.mrb[0].mxu0
        %972 = vmatprep.mubr.f32.mxu0 0.0
        %973 = vmatmul.mubr.f32.gmra.mrb[0].mxu0 %v755
        %v974 = vpop.f32.mrb[0].mxu0
        %v975 = vadd.f32 0.0, %v974
        %v976 = vpop.f32.mrb[0].mxu0
        %977 = vmatprep.mubr.f32.mxu0 0.0
        %978 = vmatmul.mubr.f32.gmra.mrb[0].mxu0 %v756
        %v979 = vpop.f32.mrb[0].mxu0
        %v980 = vadd.f32 0.0, %v979
        %v981 = vpop.f32.mrb[0].mxu0
        %982 = vmatprep.mubr.f32.mxu0 0.0
        %983 = vmatmul.mubr.f32.gmra.mrb[0].mxu0 %v757
        %v984 = vpop.f32.mrb[0].mxu0
        %v985 = vadd.f32 0.0, %v984
        %v986 = vpop.f32.mrb[0].mxu0
        %987 = vmatprep.mubr.f32.mxu0 0.0
        %988 = vmatmul.mubr.f32.gmra.mrb[0].mxu0 %v758
        %v989 = vpop.f32.mrb[0].mxu0
        %v990 = vadd.f32 0.0, %v989
        %v991 = vpop.f32.mrb[0].mxu0
        %992 = vmatprep.mubr.f32.mxu0 0.0
        %993 = vmatmul.mubr.f32.gmra.mrb[0].mxu0 %v759
        %v994 = vpop.f32.mrb[0].mxu0
        %v995 = vadd.f32 0.0, %v994
        %v996 = vpop.f32.mrb[0].mxu0
        %997 = vmatprep.mubr.f32.mxu0 0.0
        %998 = vmatmul.mubr.f32.gmra.mrb[0].mxu0 %v760
        %v999 = vpop.f32.mrb[0].mxu0
        %v1000 = vadd.f32 0.0, %v999
        %v1001 = vpop.f32.mrb[0].mxu0
        %1002 = vdwg.mxu0
        %v1003 = vadd.f32 %v571, %v845
        %v1004 = vadd.f32 %v576, %v850
        %v1005 = vadd.f32 %v581, %v855
        %v1006 = vadd.f32 %v586, %v860
        %v1007 = vadd.f32 %v591, %v865
        %v1008 = vadd.f32 %v596, %v870
        %v1009 = vadd.f32 %v601, %v875
        %v1010 = vadd.f32 %v606, %v880
        %v1011 = vadd.f32 %v611, %v885
        %v1012 = vadd.f32 %v616, %v890
        %v1013 = vadd.f32 %v621, %v895
        %v1014 = vadd.f32 %v626, %v900
        %v1015 = vadd.f32 %v631, %v905
        %v1016 = vadd.f32 %v636, %v910
        %v1017 = vadd.f32 %v641, %v915
        %v1018 = vadd.f32 %v646, %v920
        %v1019 = vadd.f32 %v651, %v925
        %v1020 = vadd.f32 %v656, %v930
        %v1021 = vadd.f32 %v661, %v935
        %v1022 = vadd.f32 %v666, %v940
        %v1023 = vadd.f32 %v671, %v945
        %v1024 = vadd.f32 %v676, %v950
        %v1025 = vadd.f32 %v681, %v955
        %v1026 = vadd.f32 %v686, %v960
        %v1027 = vadd.f32 %v691, %v965
        %v1028 = vadd.f32 %v696, %v970
        %v1029 = vadd.f32 %v701, %v975
        %v1030 = vadd.f32 %v706, %v980
        %v1031 = vadd.f32 %v711, %v985
        %v1032 = vadd.f32 %v716, %v990
        %v1033 = vadd.f32 %v721, %v995
        %v1034 = vadd.f32 %v726, %v1000
        %s1035 = scalar_lea.vmem %s176, 24
        %v1036 = vld [vmem:[%s1035] sm:$0xff]
        %v1037 = vld [vmem:[%s1035 + $0x8] sm:$0xff]
        %v1038 = vld [vmem:[%s1035 + $0x18] sm:$0xff]
        %v1039 = vld [vmem:[%s1035 + $0x20] sm:$0xff]
        %v1040 = vld [vmem:[%s1035 + $0x30] sm:$0xff]
        %v1041 = vld [vmem:[%s1035 + $0x38] sm:$0xff]
        %v1042 = vld [vmem:[%s1035 + $0x48] sm:$0xff]
        %v1043 = vld [vmem:[%s1035 + $0x50] sm:$0xff]
        %v1044 = vld [vmem:[%s1035 + $0x60] sm:$0xff]
        %v1045 = vld [vmem:[%s1035 + $0x68] sm:$0xff]
        %v1046 = vld [vmem:[%s1035 + $0x78] sm:$0xff]
        %v1047 = vld [vmem:[%s1035 + $0x80] sm:$0xff]
        %v1048 = vld [vmem:[%s1035 + $0x90] sm:$0xff]
        %v1049 = vld [vmem:[%s1035 + $0x98] sm:$0xff]
        %v1050 = vld [vmem:[%s1035 + $0xa8] sm:$0xff]
        %v1051 = vld [vmem:[%s1035 + $0xb0] sm:$0xff]
        %v1052 = vld [vmem:[%s1035 + $0xc0] sm:$0xff]
        %v1053 = vld [vmem:[%s1035 + $0xc8] sm:$0xff]
        %v1054 = vld [vmem:[%s1035 + $0xd8] sm:$0xff]
        %v1055 = vld [vmem:[%s1035 + $0xe0] sm:$0xff]
        %v1056 = vld [vmem:[%s1035 + $0xf0] sm:$0xff]
        %v1057 = vld [vmem:[%s1035 + $0xf8] sm:$0xff]
        %v1058 = vld [vmem:[%s1035 + $0x108] sm:$0xff]
        %v1059 = vld [vmem:[%s1035 + $0x110] sm:$0xff]
        %v1060 = vld [vmem:[%s1035 + $0x120] sm:$0xff]
        %v1061 = vld [vmem:[%s1035 + $0x128] sm:$0xff]
        %v1062 = vld [vmem:[%s1035 + $0x138] sm:$0xff]
        %v1063 = vld [vmem:[%s1035 + $0x140] sm:$0xff]
        %v1064 = vld [vmem:[%s1035 + $0x150] sm:$0xff]
        %v1065 = vld [vmem:[%s1035 + $0x158] sm:$0xff]
        %v1066 = vld [vmem:[%s1035 + $0x168] sm:$0xff]
        %v1067 = vld [vmem:[%s1035 + $0x170] sm:$0xff]
        %s1068 = scalar_lea.vmem %s1, 384
        %v1069 = vld [vmem:[%s1068] sm:$0xff]
        %v1070 = vld [vmem:[%s1068 + $0x8] sm:$0xff]
        %v1071 = vld [vmem:[%s1068 + $0x10] sm:$0xff]
        %v1072 = vld [vmem:[%s1068 + $0x18] sm:$0xff]
        %v1073 = vld [vmem:[%s1068 + $0x20] sm:$0xff]
        %v1074 = vld [vmem:[%s1068 + $0x28] sm:$0xff]
        %v1075 = vld [vmem:[%s1068 + $0x30] sm:$0xff]
        %v1076 = vld [vmem:[%s1068 + $0x38] sm:$0xff]
        %v1077 = vld [vmem:[%s1068 + $0x40] sm:$0xff]
        %v1078 = vld [vmem:[%s1068 + $0x48] sm:$0xff]
        %v1079 = vld [vmem:[%s1068 + $0x50] sm:$0xff]
        %v1080 = vld [vmem:[%s1068 + $0x58] sm:$0xff]
        %v1081 = vld [vmem:[%s1068 + $0x60] sm:$0xff]
        %v1082 = vld [vmem:[%s1068 + $0x68] sm:$0xff]
        %v1083 = vld [vmem:[%s1068 + $0x70] sm:$0xff]
        %v1084 = vld [vmem:[%s1068 + $0x78] sm:$0xff]
        %1085 = vmatprep.subr.mxu0 0.0
        %1086 = vmatpush1.msra.mxu0 %v1069
        %1087 = vmatprep.subr.mxu0 0.0
        %1088 = vmatpush1.msra.mxu0 %v1070
        %1089 = vmatprep.subr.mxu0 0.0
        %1090 = vmatpush1.msra.mxu0 %v1071
        %1091 = vmatprep.subr.mxu0 0.0
        %1092 = vmatpush1.msra.mxu0 %v1072
        %1093 = vmatprep.subr.mxu0 0.0
        %1094 = vmatpush1.msra.mxu0 %v1073
        %1095 = vmatprep.subr.mxu0 0.0
        %1096 = vmatpush1.msra.mxu0 %v1074
        %1097 = vmatprep.subr.mxu0 0.0
        %1098 = vmatpush1.msra.mxu0 %v1075
        %1099 = vmatprep.subr.mxu0 0.0
        %1100 = vmatpush1.msra.mxu0 %v1076
        %1101 = vmatprep.subr.mxu0 0.0
        %1102 = vmatpush1.msra.mxu0 %v1077
        %1103 = vmatprep.subr.mxu0 0.0
        %1104 = vmatpush1.msra.mxu0 %v1078
        %1105 = vmatprep.subr.mxu0 0.0
        %1106 = vmatpush1.msra.mxu0 %v1079
        %1107 = vmatprep.subr.mxu0 0.0
        %1108 = vmatpush1.msra.mxu0 %v1080
        %1109 = vmatprep.subr.mxu0 0.0
        %1110 = vmatpush1.msra.mxu0 %v1081
        %1111 = vmatprep.subr.mxu0 0.0
        %1112 = vmatpush1.msra.mxu0 %v1082
        %1113 = vmatprep.subr.mxu0 0.0
        %1114 = vmatpush1.msra.mxu0 %v1083
        %1115 = vmatprep.subr.mxu0 0.0
        %1116 = vmatpush1.msra.mxu0 %v1084
        %1117 = vmatprep.subr.mxu0 0.0
        %1118 = vmatpush1.msra.mxu0 0.0
        %1119 = vmatprep.subr.mxu0 0.0
        %1120 = vmatpush1.msra.mxu0 0.0
        %1121 = vmatprep.subr.mxu0 0.0
        %1122 = vmatpush1.msra.mxu0 0.0
        %1123 = vmatprep.subr.mxu0 0.0
        %1124 = vmatpush1.msra.mxu0 0.0
        %1125 = vmatprep.subr.mxu0 0.0
        %1126 = vmatpush1.msra.mxu0 0.0
        %1127 = vmatprep.subr.mxu0 0.0
        %1128 = vmatpush1.msra.mxu0 0.0
        %1129 = vmatprep.subr.mxu0 0.0
        %1130 = vmatpush1.msra.mxu0 0.0
        %1131 = vmatprep.subr.mxu0 0.0
        %1132 = vmatpush1.msra.mxu0 0.0
        %1133 = vmatprep.subr.mxu0 0.0
        %1134 = vmatpush1.msra.mxu0 0.0
        %1135 = vmatprep.subr.mxu0 0.0
        %1136 = vmatpush1.msra.mxu0 0.0
        %1137 = vmatprep.subr.mxu0 0.0
        %1138 = vmatpush1.msra.mxu0 0.0
        %1139 = vmatprep.subr.mxu0 0.0
        %1140 = vmatpush1.msra.mxu0 0.0
        %1141 = vmatprep.subr.mxu0 0.0
        %1142 = vmatpush1.msra.mxu0 0.0
        %1143 = vmatprep.subr.mxu0 0.0
        %1144 = vmatpush1.msra.mxu0 0.0
        %1145 = vmatprep.subr.mxu0 0.0
        %1146 = vmatpush1.msra.mxu0 0.0
        %1147 = vmatprep.subr.mxu0 0.0
        %1148 = vmatpush1.msra.mxu0 0.0
        %1149 = vmatprep.mubr.f32.mxu0 0.0
        %1150 = vmatmul.mubr.f32.gmra.mrb[0].mxu0 %v1036
        %v1151 = vpop.f32.mrb[0].mxu0
        %v1152 = vadd.f32 0.0, %v1151
        %v1153 = vpop.f32.mrb[0].mxu0
        %1154 = vmatprep.mubr.f32.mxu0 0.0
        %1155 = vmatmul.mubr.f32.gmra.mrb[0].mxu0 %v1037
        %v1156 = vpop.f32.mrb[0].mxu0
        %v1157 = vadd.f32 0.0, %v1156
        %v1158 = vpop.f32.mrb[0].mxu0
        %1159 = vmatprep.mubr.f32.mxu0 0.0
        %1160 = vmatmul.mubr.f32.gmra.mrb[0].mxu0 %v1038
        %v1161 = vpop.f32.mrb[0].mxu0
        %v1162 = vadd.f32 0.0, %v1161
        %v1163 = vpop.f32.mrb[0].mxu0
        %1164 = vmatprep.mubr.f32.mxu0 0.0
        %1165 = vmatmul.mubr.f32.gmra.mrb[0].mxu0 %v1039
        %v1166 = vpop.f32.mrb[0].mxu0
        %v1167 = vadd.f32 0.0, %v1166
        %v1168 = vpop.f32.mrb[0].mxu0
        %1169 = vmatprep.mubr.f32.mxu0 0.0
        %1170 = vmatmul.mubr.f32.gmra.mrb[0].mxu0 %v1040
        %v1171 = vpop.f32.mrb[0].mxu0
        %v1172 = vadd.f32 0.0, %v1171
        %v1173 = vpop.f32.mrb[0].mxu0
        %1174 = vmatprep.mubr.f32.mxu0 0.0
        %1175 = vmatmul.mubr.f32.gmra.mrb[0].mxu0 %v1041
        %v1176 = vpop.f32.mrb[0].mxu0
        %v1177 = vadd.f32 0.0, %v1176
        %v1178 = vpop.f32.mrb[0].mxu0
        %1179 = vmatprep.mubr.f32.mxu0 0.0
        %1180 = vmatmul.mubr.f32.gmra.mrb[0].mxu0 %v1042
        %v1181 = vpop.f32.mrb[0].mxu0
        %v1182 = vadd.f32 0.0, %v1181
        %v1183 = vpop.f32.mrb[0].mxu0
        %1184 = vmatprep.mubr.f32.mxu0 0.0
        %1185 = vmatmul.mubr.f32.gmra.mrb[0].mxu0 %v1043
        %v1186 = vpop.f32.mrb[0].mxu0
        %v1187 = vadd.f32 0.0, %v1186
        %v1188 = vpop.f32.mrb[0].mxu0
        %1189 = vmatprep.mubr.f32.mxu0 0.0
        %1190 = vmatmul.mubr.f32.gmra.mrb[0].mxu0 %v1044
        %v1191 = vpop.f32.mrb[0].mxu0
        %v1192 = vadd.f32 0.0, %v1191
        %v1193 = vpop.f32.mrb[0].mxu0
        %1194 = vmatprep.mubr.f32.mxu0 0.0
        %1195 = vmatmul.mubr.f32.gmra.mrb[0].mxu0 %v1045
        %v1196 = vpop.f32.mrb[0].mxu0
        %v1197 = vadd.f32 0.0, %v1196
        %v1198 = vpop.f32.mrb[0].mxu0
        %1199 = vmatprep.mubr.f32.mxu0 0.0
        %1200 = vmatmul.mubr.f32.gmra.mrb[0].mxu0 %v1046
        %v1201 = vpop.f32.mrb[0].mxu0
        %v1202 = vadd.f32 0.0, %v1201
        %v1203 = vpop.f32.mrb[0].mxu0
        %1204 = vmatprep.mubr.f32.mxu0 0.0
        %1205 = vmatmul.mubr.f32.gmra.mrb[0].mxu0 %v1047
        %v1206 = vpop.f32.mrb[0].mxu0
        %v1207 = vadd.f32 0.0, %v1206
        %v1208 = vpop.f32.mrb[0].mxu0
        %1209 = vmatprep.mubr.f32.mxu0 0.0
        %1210 = vmatmul.mubr.f32.gmra.mrb[0].mxu0 %v1048
        %v1211 = vpop.f32.mrb[0].mxu0
        %v1212 = vadd.f32 0.0, %v1211
        %v1213 = vpop.f32.mrb[0].mxu0
        %1214 = vmatprep.mubr.f32.mxu0 0.0
        %1215 = vmatmul.mubr.f32.gmra.mrb[0].mxu0 %v1049
        %v1216 = vpop.f32.mrb[0].mxu0
        %v1217 = vadd.f32 0.0, %v1216
        %v1218 = vpop.f32.mrb[0].mxu0
        %1219 = vmatprep.mubr.f32.mxu0 0.0
        %1220 = vmatmul.mubr.f32.gmra.mrb[0].mxu0 %v1050
        %v1221 = vpop.f32.mrb[0].mxu0
        %v1222 = vadd.f32 0.0, %v1221
        %v1223 = vpop.f32.mrb[0].mxu0
        %1224 = vmatprep.mubr.f32.mxu0 0.0
        %1225 = vmatmul.mubr.f32.gmra.mrb[0].mxu0 %v1051
        %v1226 = vpop.f32.mrb[0].mxu0
        %v1227 = vadd.f32 0.0, %v1226
        %v1228 = vpop.f32.mrb[0].mxu0
        %1229 = vmatprep.mubr.f32.mxu0 0.0
        %1230 = vmatmul.mubr.f32.gmra.mrb[0].mxu0 %v1052
        %v1231 = vpop.f32.mrb[0].mxu0
        %v1232 = vadd.f32 0.0, %v1231
        %v1233 = vpop.f32.mrb[0].mxu0
        %1234 = vmatprep.mubr.f32.mxu0 0.0
        %1235 = vmatmul.mubr.f32.gmra.mrb[0].mxu0 %v1053
        %v1236 = vpop.f32.mrb[0].mxu0
        %v1237 = vadd.f32 0.0, %v1236
        %v1238 = vpop.f32.mrb[0].mxu0
        %1239 = vmatprep.mubr.f32.mxu0 0.0
        %1240 = vmatmul.mubr.f32.gmra.mrb[0].mxu0 %v1054
        %v1241 = vpop.f32.mrb[0].mxu0
        %v1242 = vadd.f32 0.0, %v1241
        %v1243 = vpop.f32.mrb[0].mxu0
        %1244 = vmatprep.mubr.f32.mxu0 0.0
        %1245 = vmatmul.mubr.f32.gmra.mrb[0].mxu0 %v1055
        %v1246 = vpop.f32.mrb[0].mxu0
        %v1247 = vadd.f32 0.0, %v1246
        %v1248 = vpop.f32.mrb[0].mxu0
        %1249 = vmatprep.mubr.f32.mxu0 0.0
        %1250 = vmatmul.mubr.f32.gmra.mrb[0].mxu0 %v1056
        %v1251 = vpop.f32.mrb[0].mxu0
        %v1252 = vadd.f32 0.0, %v1251
        %v1253 = vpop.f32.mrb[0].mxu0
        %1254 = vmatprep.mubr.f32.mxu0 0.0
        %1255 = vmatmul.mubr.f32.gmra.mrb[0].mxu0 %v1057
        %v1256 = vpop.f32.mrb[0].mxu0
        %v1257 = vadd.f32 0.0, %v1256
        %v1258 = vpop.f32.mrb[0].mxu0
        %1259 = vmatprep.mubr.f32.mxu0 0.0
        %1260 = vmatmul.mubr.f32.gmra.mrb[0].mxu0 %v1058
        %v1261 = vpop.f32.mrb[0].mxu0
        %v1262 = vadd.f32 0.0, %v1261
        %v1263 = vpop.f32.mrb[0].mxu0
        %1264 = vmatprep.mubr.f32.mxu0 0.0
        %1265 = vmatmul.mubr.f32.gmra.mrb[0].mxu0 %v1059
        %v1266 = vpop.f32.mrb[0].mxu0
        %v1267 = vadd.f32 0.0, %v1266
        %v1268 = vpop.f32.mrb[0].mxu0
        %1269 = vmatprep.mubr.f32.mxu0 0.0
        %1270 = vmatmul.mubr.f32.gmra.mrb[0].mxu0 %v1060
        %v1271 = vpop.f32.mrb[0].mxu0
        %v1272 = vadd.f32 0.0, %v1271
        %v1273 = vpop.f32.mrb[0].mxu0
        %1274 = vmatprep.mubr.f32.mxu0 0.0
        %1275 = vmatmul.mubr.f32.gmra.mrb[0].mxu0 %v1061
        %v1276 = vpop.f32.mrb[0].mxu0
        %v1277 = vadd.f32 0.0, %v1276
        %v1278 = vpop.f32.mrb[0].mxu0
        %1279 = vmatprep.mubr.f32.mxu0 0.0
        %1280 = vmatmul.mubr.f32.gmra.mrb[0].mxu0 %v1062
        %v1281 = vpop.f32.mrb[0].mxu0
        %v1282 = vadd.f32 0.0, %v1281
        %v1283 = vpop.f32.mrb[0].mxu0
        %1284 = vmatprep.mubr.f32.mxu0 0.0
        %1285 = vmatmul.mubr.f32.gmra.mrb[0].mxu0 %v1063
        %v1286 = vpop.f32.mrb[0].mxu0
        %v1287 = vadd.f32 0.0, %v1286
        %v1288 = vpop.f32.mrb[0].mxu0
        %1289 = vmatprep.mubr.f32.mxu0 0.0
        %1290 = vmatmul.mubr.f32.gmra.mrb[0].mxu0 %v1064
        %v1291 = vpop.f32.mrb[0].mxu0
        %v1292 = vadd.f32 0.0, %v1291
        %v1293 = vpop.f32.mrb[0].mxu0
        %1294 = vmatprep.mubr.f32.mxu0 0.0
        %1295 = vmatmul.mubr.f32.gmra.mrb[0].mxu0 %v1065
        %v1296 = vpop.f32.mrb[0].mxu0
        %v1297 = vadd.f32 0.0, %v1296
        %v1298 = vpop.f32.mrb[0].mxu0
        %1299 = vmatprep.mubr.f32.mxu0 0.0
        %1300 = vmatmul.mubr.f32.gmra.mrb[0].mxu0 %v1066
        %v1301 = vpop.f32.mrb[0].mxu0
        %v1302 = vadd.f32 0.0, %v1301
        %v1303 = vpop.f32.mrb[0].mxu0
        %1304 = vmatprep.mubr.f32.mxu0 0.0
        %1305 = vmatmul.mubr.f32.gmra.mrb[0].mxu0 %v1067
        %v1306 = vpop.f32.mrb[0].mxu0
        %v1307 = vadd.f32 0.0, %v1306
        %v1308 = vpop.f32.mrb[0].mxu0
        %1309 = vdwg.mxu0
        %v1310 = vadd.f32 %v1003, %v1152
        %v1311 = vadd.f32 %v1004, %v1157
        %v1312 = vadd.f32 %v1005, %v1162
        %v1313 = vadd.f32 %v1006, %v1167
        %v1314 = vadd.f32 %v1007, %v1172
        %v1315 = vadd.f32 %v1008, %v1177
        %v1316 = vadd.f32 %v1009, %v1182
        %v1317 = vadd.f32 %v1010, %v1187
        %v1318 = vadd.f32 %v1011, %v1192
        %v1319 = vadd.f32 %v1012, %v1197
        %v1320 = vadd.f32 %v1013, %v1202
        %v1321 = vadd.f32 %v1014, %v1207
        %v1322 = vadd.f32 %v1015, %v1212
        %v1323 = vadd.f32 %v1016, %v1217
        %v1324 = vadd.f32 %v1017, %v1222
        %v1325 = vadd.f32 %v1018, %v1227
        %v1326 = vadd.f32 %v1019, %v1232
        %v1327 = vadd.f32 %v1020, %v1237
        %v1328 = vadd.f32 %v1021, %v1242
        %v1329 = vadd.f32 %v1022, %v1247
        %v1330 = vadd.f32 %v1023, %v1252
        %v1331 = vadd.f32 %v1024, %v1257
        %v1332 = vadd.f32 %v1025, %v1262
        %v1333 = vadd.f32 %v1026, %v1267
        %v1334 = vadd.f32 %v1027, %v1272
        %v1335 = vadd.f32 %v1028, %v1277
        %v1336 = vadd.f32 %v1029, %v1282
        %v1337 = vadd.f32 %v1030, %v1287
        %v1338 = vadd.f32 %v1031, %v1292
        %v1339 = vadd.f32 %v1032, %v1297
        %v1340 = vadd.f32 %v1033, %v1302
        %v1341 = vadd.f32 %v1034, %v1307
        %v1342 = vld [vmem:[%s1035 + $0x1] sm:$0xff]
        %v1343 = vld [vmem:[%s1035 + $0x9] sm:$0xff]
        %v1344 = vld [vmem:[%s1035 + $0x19] sm:$0xff]
        %v1345 = vld [vmem:[%s1035 + $0x21] sm:$0xff]
        %v1346 = vld [vmem:[%s1035 + $0x31] sm:$0xff]
        %v1347 = vld [vmem:[%s1035 + $0x39] sm:$0xff]
        %v1348 = vld [vmem:[%s1035 + $0x49] sm:$0xff]
        %v1349 = vld [vmem:[%s1035 + $0x51] sm:$0xff]
        %v1350 = vld [vmem:[%s1035 + $0x61] sm:$0xff]
        %v1351 = vld [vmem:[%s1035 + $0x69] sm:$0xff]
        %v1352 = vld [vmem:[%s1035 + $0x79] sm:$0xff]
        %v1353 = vld [vmem:[%s1035 + $0x81] sm:$0xff]
        %v1354 = vld [vmem:[%s1035 + $0x91] sm:$0xff]
        %v1355 = vld [vmem:[%s1035 + $0x99] sm:$0xff]
        %v1356 = vld [vmem:[%s1035 + $0xa9] sm:$0xff]
        %v1357 = vld [vmem:[%s1035 + $0xb1] sm:$0xff]
        %v1358 = vld [vmem:[%s1035 + $0xc1] sm:$0xff]
        %v1359 = vld [vmem:[%s1035 + $0xc9] sm:$0xff]
        %v1360 = vld [vmem:[%s1035 + $0xd9] sm:$0xff]
        %v1361 = vld [vmem:[%s1035 + $0xe1] sm:$0xff]
        %v1362 = vld [vmem:[%s1035 + $0xf1] sm:$0xff]
        %v1363 = vld [vmem:[%s1035 + $0xf9] sm:$0xff]
        %v1364 = vld [vmem:[%s1035 + $0x109] sm:$0xff]
        %v1365 = vld [vmem:[%s1035 + $0x111] sm:$0xff]
        %v1366 = vld [vmem:[%s1035 + $0x121] sm:$0xff]
        %v1367 = vld [vmem:[%s1035 + $0x129] sm:$0xff]
        %v1368 = vld [vmem:[%s1035 + $0x139] sm:$0xff]
        %v1369 = vld [vmem:[%s1035 + $0x141] sm:$0xff]
        %v1370 = vld [vmem:[%s1035 + $0x151] sm:$0xff]
        %v1371 = vld [vmem:[%s1035 + $0x159] sm:$0xff]
        %v1372 = vld [vmem:[%s1035 + $0x169] sm:$0xff]
        %v1373 = vld [vmem:[%s1035 + $0x171] sm:$0xff]
        %s1374 = scalar_lea.vmem %s1, 512
        %v1375 = vld [vmem:[%s1374] sm:$0xff]
        %v1376 = vld [vmem:[%s1374 + $0x8] sm:$0xff]
        %v1377 = vld [vmem:[%s1374 + $0x10] sm:$0xff]
        %v1378 = vld [vmem:[%s1374 + $0x18] sm:$0xff]
        %v1379 = vld [vmem:[%s1374 + $0x20] sm:$0xff]
        %v1380 = vld [vmem:[%s1374 + $0x28] sm:$0xff]
        %v1381 = vld [vmem:[%s1374 + $0x30] sm:$0xff]
        %v1382 = vld [vmem:[%s1374 + $0x38] sm:$0xff]
        %v1383 = vld [vmem:[%s1374 + $0x40] sm:$0xff]
        %v1384 = vld [vmem:[%s1374 + $0x48] sm:$0xff]
        %v1385 = vld [vmem:[%s1374 + $0x50] sm:$0xff]
        %v1386 = vld [vmem:[%s1374 + $0x58] sm:$0xff]
        %v1387 = vld [vmem:[%s1374 + $0x60] sm:$0xff]
        %v1388 = vld [vmem:[%s1374 + $0x68] sm:$0xff]
        %v1389 = vld [vmem:[%s1374 + $0x70] sm:$0xff]
        %v1390 = vld [vmem:[%s1374 + $0x78] sm:$0xff]
        %1391 = vmatprep.subr.mxu0 0.0
        %1392 = vmatpush1.msra.mxu0 %v1375
        %1393 = vmatprep.subr.mxu0 0.0
        %1394 = vmatpush1.msra.mxu0 %v1376
        %1395 = vmatprep.subr.mxu0 0.0
        %1396 = vmatpush1.msra.mxu0 %v1377
        %1397 = vmatprep.subr.mxu0 0.0
        %1398 = vmatpush1.msra.mxu0 %v1378
        %1399 = vmatprep.subr.mxu0 0.0
        %1400 = vmatpush1.msra.mxu0 %v1379
        %1401 = vmatprep.subr.mxu0 0.0
        %1402 = vmatpush1.msra.mxu0 %v1380
        %1403 = vmatprep.subr.mxu0 0.0
        %1404 = vmatpush1.msra.mxu0 %v1381
        %1405 = vmatprep.subr.mxu0 0.0
        %1406 = vmatpush1.msra.mxu0 %v1382
        %1407 = vmatprep.subr.mxu0 0.0
        %1408 = vmatpush1.msra.mxu0 %v1383
        %1409 = vmatprep.subr.mxu0 0.0
        %1410 = vmatpush1.msra.mxu0 %v1384
        %1411 = vmatprep.subr.mxu0 0.0
        %1412 = vmatpush1.msra.mxu0 %v1385
        %1413 = vmatprep.subr.mxu0 0.0
        %1414 = vmatpush1.msra.mxu0 %v1386
        %1415 = vmatprep.subr.mxu0 0.0
        %1416 = vmatpush1.msra.mxu0 %v1387
        %1417 = vmatprep.subr.mxu0 0.0
        %1418 = vmatpush1.msra.mxu0 %v1388
        %1419 = vmatprep.subr.mxu0 0.0
        %1420 = vmatpush1.msra.mxu0 %v1389
        %1421 = vmatprep.subr.mxu0 0.0
        %1422 = vmatpush1.msra.mxu0 %v1390
        %1423 = vmatprep.subr.mxu0 0.0
        %1424 = vmatpush1.msra.mxu0 0.0
        %1425 = vmatprep.subr.mxu0 0.0
        %1426 = vmatpush1.msra.mxu0 0.0
        %1427 = vmatprep.subr.mxu0 0.0
        %1428 = vmatpush1.msra.mxu0 0.0
        %1429 = vmatprep.subr.mxu0 0.0
        %1430 = vmatpush1.msra.mxu0 0.0
        %1431 = vmatprep.subr.mxu0 0.0
        %1432 = vmatpush1.msra.mxu0 0.0
        %1433 = vmatprep.subr.mxu0 0.0
        %1434 = vmatpush1.msra.mxu0 0.0
        %1435 = vmatprep.subr.mxu0 0.0
        %1436 = vmatpush1.msra.mxu0 0.0
        %1437 = vmatprep.subr.mxu0 0.0
        %1438 = vmatpush1.msra.mxu0 0.0
        %1439 = vmatprep.subr.mxu0 0.0
        %1440 = vmatpush1.msra.mxu0 0.0
        %1441 = vmatprep.subr.mxu0 0.0
        %1442 = vmatpush1.msra.mxu0 0.0
        %1443 = vmatprep.subr.mxu0 0.0
        %1444 = vmatpush1.msra.mxu0 0.0
        %1445 = vmatprep.subr.mxu0 0.0
        %1446 = vmatpush1.msra.mxu0 0.0
        %1447 = vmatprep.subr.mxu0 0.0
        %1448 = vmatpush1.msra.mxu0 0.0
        %1449 = vmatprep.subr.mxu0 0.0
        %1450 = vmatpush1.msra.mxu0 0.0
        %1451 = vmatprep.subr.mxu0 0.0
        %1452 = vmatpush1.msra.mxu0 0.0
        %1453 = vmatprep.subr.mxu0 0.0
        %1454 = vmatpush1.msra.mxu0 0.0
        %1455 = vmatprep.mubr.f32.mxu0 0.0
        %1456 = vmatmul.mubr.f32.gmra.mrb[0].mxu0 %v1342
        %v1457 = vpop.f32.mrb[0].mxu0
        %v1458 = vadd.f32 0.0, %v1457
        %v1459 = vpop.f32.mrb[0].mxu0
        %1460 = vmatprep.mubr.f32.mxu0 0.0
        %1461 = vmatmul.mubr.f32.gmra.mrb[0].mxu0 %v1343
        %v1462 = vpop.f32.mrb[0].mxu0
        %v1463 = vadd.f32 0.0, %v1462
        %v1464 = vpop.f32.mrb[0].mxu0
        %1465 = vmatprep.mubr.f32.mxu0 0.0
        %1466 = vmatmul.mubr.f32.gmra.mrb[0].mxu0 %v1344
        %v1467 = vpop.f32.mrb[0].mxu0
        %v1468 = vadd.f32 0.0, %v1467
        %v1469 = vpop.f32.mrb[0].mxu0
        %1470 = vmatprep.mubr.f32.mxu0 0.0
        %1471 = vmatmul.mubr.f32.gmra.mrb[0].mxu0 %v1345
        %v1472 = vpop.f32.mrb[0].mxu0
        %v1473 = vadd.f32 0.0, %v1472
        %v1474 = vpop.f32.mrb[0].mxu0
        %1475 = vmatprep.mubr.f32.mxu0 0.0
        %1476 = vmatmul.mubr.f32.gmra.mrb[0].mxu0 %v1346
        %v1477 = vpop.f32.mrb[0].mxu0
        %v1478 = vadd.f32 0.0, %v1477
        %v1479 = vpop.f32.mrb[0].mxu0
        %1480 = vmatprep.mubr.f32.mxu0 0.0
        %1481 = vmatmul.mubr.f32.gmra.mrb[0].mxu0 %v1347
        %v1482 = vpop.f32.mrb[0].mxu0
        %v1483 = vadd.f32 0.0, %v1482
        %v1484 = vpop.f32.mrb[0].mxu0
        %1485 = vmatprep.mubr.f32.mxu0 0.0
        %1486 = vmatmul.mubr.f32.gmra.mrb[0].mxu0 %v1348
        %v1487 = vpop.f32.mrb[0].mxu0
        %v1488 = vadd.f32 0.0, %v1487
        %v1489 = vpop.f32.mrb[0].mxu0
        %1490 = vmatprep.mubr.f32.mxu0 0.0
        %1491 = vmatmul.mubr.f32.gmra.mrb[0].mxu0 %v1349
        %v1492 = vpop.f32.mrb[0].mxu0
        %v1493 = vadd.f32 0.0, %v1492
        %v1494 = vpop.f32.mrb[0].mxu0
        %1495 = vmatprep.mubr.f32.mxu0 0.0
        %1496 = vmatmul.mubr.f32.gmra.mrb[0].mxu0 %v1350
        %v1497 = vpop.f32.mrb[0].mxu0
        %v1498 = vadd.f32 0.0, %v1497
        %v1499 = vpop.f32.mrb[0].mxu0
        %1500 = vmatprep.mubr.f32.mxu0 0.0
        %1501 = vmatmul.mubr.f32.gmra.mrb[0].mxu0 %v1351
        %v1502 = vpop.f32.mrb[0].mxu0
        %v1503 = vadd.f32 0.0, %v1502
        %v1504 = vpop.f32.mrb[0].mxu0
        %1505 = vmatprep.mubr.f32.mxu0 0.0
        %1506 = vmatmul.mubr.f32.gmra.mrb[0].mxu0 %v1352
        %v1507 = vpop.f32.mrb[0].mxu0
        %v1508 = vadd.f32 0.0, %v1507
        %v1509 = vpop.f32.mrb[0].mxu0
        %1510 = vmatprep.mubr.f32.mxu0 0.0
        %1511 = vmatmul.mubr.f32.gmra.mrb[0].mxu0 %v1353
        %v1512 = vpop.f32.mrb[0].mxu0
        %v1513 = vadd.f32 0.0, %v1512
        %v1514 = vpop.f32.mrb[0].mxu0
        %1515 = vmatprep.mubr.f32.mxu0 0.0
        %1516 = vmatmul.mubr.f32.gmra.mrb[0].mxu0 %v1354
        %v1517 = vpop.f32.mrb[0].mxu0
        %v1518 = vadd.f32 0.0, %v1517
        %v1519 = vpop.f32.mrb[0].mxu0
        %1520 = vmatprep.mubr.f32.mxu0 0.0
        %1521 = vmatmul.mubr.f32.gmra.mrb[0].mxu0 %v1355
        %v1522 = vpop.f32.mrb[0].mxu0
        %v1523 = vadd.f32 0.0, %v1522
        %v1524 = vpop.f32.mrb[0].mxu0
        %1525 = vmatprep.mubr.f32.mxu0 0.0
        %1526 = vmatmul.mubr.f32.gmra.mrb[0].mxu0 %v1356
        %v1527 = vpop.f32.mrb[0].mxu0
        %v1528 = vadd.f32 0.0, %v1527
        %v1529 = vpop.f32.mrb[0].mxu0
        %1530 = vmatprep.mubr.f32.mxu0 0.0
        %1531 = vmatmul.mubr.f32.gmra.mrb[0].mxu0 %v1357
        %v1532 = vpop.f32.mrb[0].mxu0
        %v1533 = vadd.f32 0.0, %v1532
        %v1534 = vpop.f32.mrb[0].mxu0
        %1535 = vmatprep.mubr.f32.mxu0 0.0
        %1536 = vmatmul.mubr.f32.gmra.mrb[0].mxu0 %v1358
        %v1537 = vpop.f32.mrb[0].mxu0
        %v1538 = vadd.f32 0.0, %v1537
        %v1539 = vpop.f32.mrb[0].mxu0
        %1540 = vmatprep.mubr.f32.mxu0 0.0
        %1541 = vmatmul.mubr.f32.gmra.mrb[0].mxu0 %v1359
        %v1542 = vpop.f32.mrb[0].mxu0
        %v1543 = vadd.f32 0.0, %v1542
        %v1544 = vpop.f32.mrb[0].mxu0
        %1545 = vmatprep.mubr.f32.mxu0 0.0
        %1546 = vmatmul.mubr.f32.gmra.mrb[0].mxu0 %v1360
        %v1547 = vpop.f32.mrb[0].mxu0
        %v1548 = vadd.f32 0.0, %v1547
        %v1549 = vpop.f32.mrb[0].mxu0
        %1550 = vmatprep.mubr.f32.mxu0 0.0
        %1551 = vmatmul.mubr.f32.gmra.mrb[0].mxu0 %v1361
        %v1552 = vpop.f32.mrb[0].mxu0
        %v1553 = vadd.f32 0.0, %v1552
        %v1554 = vpop.f32.mrb[0].mxu0
        %1555 = vmatprep.mubr.f32.mxu0 0.0
        %1556 = vmatmul.mubr.f32.gmra.mrb[0].mxu0 %v1362
        %v1557 = vpop.f32.mrb[0].mxu0
        %v1558 = vadd.f32 0.0, %v1557
        %v1559 = vpop.f32.mrb[0].mxu0
        %1560 = vmatprep.mubr.f32.mxu0 0.0
        %1561 = vmatmul.mubr.f32.gmra.mrb[0].mxu0 %v1363
        %v1562 = vpop.f32.mrb[0].mxu0
        %v1563 = vadd.f32 0.0, %v1562
        %v1564 = vpop.f32.mrb[0].mxu0
        %1565 = vmatprep.mubr.f32.mxu0 0.0
        %1566 = vmatmul.mubr.f32.gmra.mrb[0].mxu0 %v1364
        %v1567 = vpop.f32.mrb[0].mxu0
        %v1568 = vadd.f32 0.0, %v1567
        %v1569 = vpop.f32.mrb[0].mxu0
        %1570 = vmatprep.mubr.f32.mxu0 0.0
        %1571 = vmatmul.mubr.f32.gmra.mrb[0].mxu0 %v1365
        %v1572 = vpop.f32.mrb[0].mxu0
        %v1573 = vadd.f32 0.0, %v1572
        %v1574 = vpop.f32.mrb[0].mxu0
        %1575 = vmatprep.mubr.f32.mxu0 0.0
        %1576 = vmatmul.mubr.f32.gmra.mrb[0].mxu0 %v1366
        %v1577 = vpop.f32.mrb[0].mxu0
        %v1578 = vadd.f32 0.0, %v1577
        %v1579 = vpop.f32.mrb[0].mxu0
        %1580 = vmatprep.mubr.f32.mxu0 0.0
        %1581 = vmatmul.mubr.f32.gmra.mrb[0].mxu0 %v1367
        %v1582 = vpop.f32.mrb[0].mxu0
        %v1583 = vadd.f32 0.0, %v1582
        %v1584 = vpop.f32.mrb[0].mxu0
        %1585 = vmatprep.mubr.f32.mxu0 0.0
        %1586 = vmatmul.mubr.f32.gmra.mrb[0].mxu0 %v1368
        %v1587 = vpop.f32.mrb[0].mxu0
        %v1588 = vadd.f32 0.0, %v1587
        %v1589 = vpop.f32.mrb[0].mxu0
        %1590 = vmatprep.mubr.f32.mxu0 0.0
        %1591 = vmatmul.mubr.f32.gmra.mrb[0].mxu0 %v1369
        %v1592 = vpop.f32.mrb[0].mxu0
        %v1593 = vadd.f32 0.0, %v1592
        %v1594 = vpop.f32.mrb[0].mxu0
        %1595 = vmatprep.mubr.f32.mxu0 0.0
        %1596 = vmatmul.mubr.f32.gmra.mrb[0].mxu0 %v1370
        %v1597 = vpop.f32.mrb[0].mxu0
        %v1598 = vadd.f32 0.0, %v1597
        %v1599 = vpop.f32.mrb[0].mxu0
        %1600 = vmatprep.mubr.f32.mxu0 0.0
        %1601 = vmatmul.mubr.f32.gmra.mrb[0].mxu0 %v1371
        %v1602 = vpop.f32.mrb[0].mxu0
        %v1603 = vadd.f32 0.0, %v1602
        %v1604 = vpop.f32.mrb[0].mxu0
        %1605 = vmatprep.mubr.f32.mxu0 0.0
        %1606 = vmatmul.mubr.f32.gmra.mrb[0].mxu0 %v1372
        %v1607 = vpop.f32.mrb[0].mxu0
        %v1608 = vadd.f32 0.0, %v1607
        %v1609 = vpop.f32.mrb[0].mxu0
        %1610 = vmatprep.mubr.f32.mxu0 0.0
        %1611 = vmatmul.mubr.f32.gmra.mrb[0].mxu0 %v1373
        %v1612 = vpop.f32.mrb[0].mxu0
        %v1613 = vadd.f32 0.0, %v1612
        %v1614 = vpop.f32.mrb[0].mxu0
        %1615 = vdwg.mxu0
        %v1616 = vadd.f32 %v1310, %v1458
        %v1617 = vadd.f32 %v1311, %v1463
        %v1618 = vadd.f32 %v1312, %v1468
        %v1619 = vadd.f32 %v1313, %v1473
        %v1620 = vadd.f32 %v1314, %v1478
        %v1621 = vadd.f32 %v1315, %v1483
        %v1622 = vadd.f32 %v1316, %v1488
        %v1623 = vadd.f32 %v1317, %v1493
        %v1624 = vadd.f32 %v1318, %v1498
        %v1625 = vadd.f32 %v1319, %v1503
        %v1626 = vadd.f32 %v1320, %v1508
        %v1627 = vadd.f32 %v1321, %v1513
        %v1628 = vadd.f32 %v1322, %v1518
        %v1629 = vadd.f32 %v1323, %v1523
        %v1630 = vadd.f32 %v1324, %v1528
        %v1631 = vadd.f32 %v1325, %v1533
        %v1632 = vadd.f32 %v1326, %v1538
        %v1633 = vadd.f32 %v1327, %v1543
        %v1634 = vadd.f32 %v1328, %v1548
        %v1635 = vadd.f32 %v1329, %v1553
        %v1636 = vadd.f32 %v1330, %v1558
        %v1637 = vadd.f32 %v1331, %v1563
        %v1638 = vadd.f32 %v1332, %v1568
        %v1639 = vadd.f32 %v1333, %v1573
        %v1640 = vadd.f32 %v1334, %v1578
        %v1641 = vadd.f32 %v1335, %v1583
        %v1642 = vadd.f32 %v1336, %v1588
        %v1643 = vadd.f32 %v1337, %v1593
        %v1644 = vadd.f32 %v1338, %v1598
        %v1645 = vadd.f32 %v1339, %v1603
        %v1646 = vadd.f32 %v1340, %v1608
        %v1647 = vadd.f32 %v1341, %v1613
        %v1648 = vld [vmem:[%s1035 + $0x2] sm:$0xff]
        %v1649 = vld [vmem:[%s1035 + $0xa] sm:$0xff]
        %v1650 = vld [vmem:[%s1035 + $0x1a] sm:$0xff]
        %v1651 = vld [vmem:[%s1035 + $0x22] sm:$0xff]
        %v1652 = vld [vmem:[%s1035 + $0x32] sm:$0xff]
        %v1653 = vld [vmem:[%s1035 + $0x3a] sm:$0xff]
        %v1654 = vld [vmem:[%s1035 + $0x4a] sm:$0xff]
        %v1655 = vld [vmem:[%s1035 + $0x52] sm:$0xff]
        %v1656 = vld [vmem:[%s1035 + $0x62] sm:$0xff]
        %v1657 = vld [vmem:[%s1035 + $0x6a] sm:$0xff]
        %v1658 = vld [vmem:[%s1035 + $0x7a] sm:$0xff]
        %v1659 = vld [vmem:[%s1035 + $0x82] sm:$0xff]
        %v1660 = vld [vmem:[%s1035 + $0x92] sm:$0xff]
        %v1661 = vld [vmem:[%s1035 + $0x9a] sm:$0xff]
        %v1662 = vld [vmem:[%s1035 + $0xaa] sm:$0xff]
        %v1663 = vld [vmem:[%s1035 + $0xb2] sm:$0xff]
        %v1664 = vld [vmem:[%s1035 + $0xc2] sm:$0xff]
        %v1665 = vld [vmem:[%s1035 + $0xca] sm:$0xff]
        %v1666 = vld [vmem:[%s1035 + $0xda] sm:$0xff]
        %v1667 = vld [vmem:[%s1035 + $0xe2] sm:$0xff]
        %v1668 = vld [vmem:[%s1035 + $0xf2] sm:$0xff]
        %v1669 = vld [vmem:[%s1035 + $0xfa] sm:$0xff]
        %v1670 = vld [vmem:[%s1035 + $0x10a] sm:$0xff]
        %v1671 = vld [vmem:[%s1035 + $0x112] sm:$0xff]
        %v1672 = vld [vmem:[%s1035 + $0x122] sm:$0xff]
        %v1673 = vld [vmem:[%s1035 + $0x12a] sm:$0xff]
        %v1674 = vld [vmem:[%s1035 + $0x13a] sm:$0xff]
        %v1675 = vld [vmem:[%s1035 + $0x142] sm:$0xff]
        %v1676 = vld [vmem:[%s1035 + $0x152] sm:$0xff]
        %v1677 = vld [vmem:[%s1035 + $0x15a] sm:$0xff]
        %v1678 = vld [vmem:[%s1035 + $0x16a] sm:$0xff]
        %v1679 = vld [vmem:[%s1035 + $0x172] sm:$0xff]
        %s1680 = scalar_lea.vmem %s1, 640
        %v1681 = vld [vmem:[%s1680] sm:$0xff]
        %v1682 = vld [vmem:[%s1680 + $0x8] sm:$0xff]
        %v1683 = vld [vmem:[%s1680 + $0x10] sm:$0xff]
        %v1684 = vld [vmem:[%s1680 + $0x18] sm:$0xff]
        %v1685 = vld [vmem:[%s1680 + $0x20] sm:$0xff]
        %v1686 = vld [vmem:[%s1680 + $0x28] sm:$0xff]
        %v1687 = vld [vmem:[%s1680 + $0x30] sm:$0xff]
        %v1688 = vld [vmem:[%s1680 + $0x38] sm:$0xff]
        %v1689 = vld [vmem:[%s1680 + $0x40] sm:$0xff]
        %v1690 = vld [vmem:[%s1680 + $0x48] sm:$0xff]
        %v1691 = vld [vmem:[%s1680 + $0x50] sm:$0xff]
        %v1692 = vld [vmem:[%s1680 + $0x58] sm:$0xff]
        %v1693 = vld [vmem:[%s1680 + $0x60] sm:$0xff]
        %v1694 = vld [vmem:[%s1680 + $0x68] sm:$0xff]
        %v1695 = vld [vmem:[%s1680 + $0x70] sm:$0xff]
        %v1696 = vld [vmem:[%s1680 + $0x78] sm:$0xff]
        %1697 = vmatprep.subr.mxu0 0.0
        %1698 = vmatpush1.msra.mxu0 %v1681
        %1699 = vmatprep.subr.mxu0 0.0
        %1700 = vmatpush1.msra.mxu0 %v1682
        %1701 = vmatprep.subr.mxu0 0.0
        %1702 = vmatpush1.msra.mxu0 %v1683
        %1703 = vmatprep.subr.mxu0 0.0
        %1704 = vmatpush1.msra.mxu0 %v1684
        %1705 = vmatprep.subr.mxu0 0.0
        %1706 = vmatpush1.msra.mxu0 %v1685
        %1707 = vmatprep.subr.mxu0 0.0
        %1708 = vmatpush1.msra.mxu0 %v1686
        %1709 = vmatprep.subr.mxu0 0.0
        %1710 = vmatpush1.msra.mxu0 %v1687
        %1711 = vmatprep.subr.mxu0 0.0
        %1712 = vmatpush1.msra.mxu0 %v1688
        %1713 = vmatprep.subr.mxu0 0.0
        %1714 = vmatpush1.msra.mxu0 %v1689
        %1715 = vmatprep.subr.mxu0 0.0
        %1716 = vmatpush1.msra.mxu0 %v1690
        %1717 = vmatprep.subr.mxu0 0.0
        %1718 = vmatpush1.msra.mxu0 %v1691
        %1719 = vmatprep.subr.mxu0 0.0
        %1720 = vmatpush1.msra.mxu0 %v1692
        %1721 = vmatprep.subr.mxu0 0.0
        %1722 = vmatpush1.msra.mxu0 %v1693
        %1723 = vmatprep.subr.mxu0 0.0
        %1724 = vmatpush1.msra.mxu0 %v1694
        %1725 = vmatprep.subr.mxu0 0.0
        %1726 = vmatpush1.msra.mxu0 %v1695
        %1727 = vmatprep.subr.mxu0 0.0
        %1728 = vmatpush1.msra.mxu0 %v1696
        %1729 = vmatprep.subr.mxu0 0.0
        %1730 = vmatpush1.msra.mxu0 0.0
        %1731 = vmatprep.subr.mxu0 0.0
        %1732 = vmatpush1.msra.mxu0 0.0
        %1733 = vmatprep.subr.mxu0 0.0
        %1734 = vmatpush1.msra.mxu0 0.0
        %1735 = vmatprep.subr.mxu0 0.0
        %1736 = vmatpush1.msra.mxu0 0.0
        %1737 = vmatprep.subr.mxu0 0.0
        %1738 = vmatpush1.msra.mxu0 0.0
        %1739 = vmatprep.subr.mxu0 0.0
        %1740 = vmatpush1.msra.mxu0 0.0
        %1741 = vmatprep.subr.mxu0 0.0
        %1742 = vmatpush1.msra.mxu0 0.0
        %1743 = vmatprep.subr.mxu0 0.0
        %1744 = vmatpush1.msra.mxu0 0.0
        %1745 = vmatprep.subr.mxu0 0.0
        %1746 = vmatpush1.msra.mxu0 0.0
        %1747 = vmatprep.subr.mxu0 0.0
        %1748 = vmatpush1.msra.mxu0 0.0
        %1749 = vmatprep.subr.mxu0 0.0
        %1750 = vmatpush1.msra.mxu0 0.0
        %1751 = vmatprep.subr.mxu0 0.0
        %1752 = vmatpush1.msra.mxu0 0.0
        %1753 = vmatprep.subr.mxu0 0.0
        %1754 = vmatpush1.msra.mxu0 0.0
        %1755 = vmatprep.subr.mxu0 0.0
        %1756 = vmatpush1.msra.mxu0 0.0
        %1757 = vmatprep.subr.mxu0 0.0
        %1758 = vmatpush1.msra.mxu0 0.0
        %1759 = vmatprep.subr.mxu0 0.0
        %1760 = vmatpush1.msra.mxu0 0.0
        %1761 = vmatprep.mubr.f32.mxu0 0.0
        %1762 = vmatmul.mubr.f32.gmra.mrb[0].mxu0 %v1648
        %v1763 = vpop.f32.mrb[0].mxu0
        %v1764 = vadd.f32 0.0, %v1763
        %v1765 = vpop.f32.mrb[0].mxu0
        %1766 = vmatprep.mubr.f32.mxu0 0.0
        %1767 = vmatmul.mubr.f32.gmra.mrb[0].mxu0 %v1649
        %v1768 = vpop.f32.mrb[0].mxu0
        %v1769 = vadd.f32 0.0, %v1768
        %v1770 = vpop.f32.mrb[0].mxu0
        %1771 = vmatprep.mubr.f32.mxu0 0.0
        %1772 = vmatmul.mubr.f32.gmra.mrb[0].mxu0 %v1650
        %v1773 = vpop.f32.mrb[0].mxu0
        %v1774 = vadd.f32 0.0, %v1773
        %v1775 = vpop.f32.mrb[0].mxu0
        %1776 = vmatprep.mubr.f32.mxu0 0.0
        %1777 = vmatmul.mubr.f32.gmra.mrb[0].mxu0 %v1651
        %v1778 = vpop.f32.mrb[0].mxu0
        %v1779 = vadd.f32 0.0, %v1778
        %v1780 = vpop.f32.mrb[0].mxu0
        %1781 = vmatprep.mubr.f32.mxu0 0.0
        %1782 = vmatmul.mubr.f32.gmra.mrb[0].mxu0 %v1652
        %v1783 = vpop.f32.mrb[0].mxu0
        %v1784 = vadd.f32 0.0, %v1783
        %v1785 = vpop.f32.mrb[0].mxu0
        %1786 = vmatprep.mubr.f32.mxu0 0.0
        %1787 = vmatmul.mubr.f32.gmra.mrb[0].mxu0 %v1653
        %v1788 = vpop.f32.mrb[0].mxu0
        %v1789 = vadd.f32 0.0, %v1788
        %v1790 = vpop.f32.mrb[0].mxu0
        %1791 = vmatprep.mubr.f32.mxu0 0.0
        %1792 = vmatmul.mubr.f32.gmra.mrb[0].mxu0 %v1654
        %v1793 = vpop.f32.mrb[0].mxu0
        %v1794 = vadd.f32 0.0, %v1793
        %v1795 = vpop.f32.mrb[0].mxu0
        %1796 = vmatprep.mubr.f32.mxu0 0.0
        %1797 = vmatmul.mubr.f32.gmra.mrb[0].mxu0 %v1655
        %v1798 = vpop.f32.mrb[0].mxu0
        %v1799 = vadd.f32 0.0, %v1798
        %v1800 = vpop.f32.mrb[0].mxu0
        %1801 = vmatprep.mubr.f32.mxu0 0.0
        %1802 = vmatmul.mubr.f32.gmra.mrb[0].mxu0 %v1656
        %v1803 = vpop.f32.mrb[0].mxu0
        %v1804 = vadd.f32 0.0, %v1803
        %v1805 = vpop.f32.mrb[0].mxu0
        %1806 = vmatprep.mubr.f32.mxu0 0.0
        %1807 = vmatmul.mubr.f32.gmra.mrb[0].mxu0 %v1657
        %v1808 = vpop.f32.mrb[0].mxu0
        %v1809 = vadd.f32 0.0, %v1808
        %v1810 = vpop.f32.mrb[0].mxu0
        %1811 = vmatprep.mubr.f32.mxu0 0.0
        %1812 = vmatmul.mubr.f32.gmra.mrb[0].mxu0 %v1658
        %v1813 = vpop.f32.mrb[0].mxu0
        %v1814 = vadd.f32 0.0, %v1813
        %v1815 = vpop.f32.mrb[0].mxu0
        %1816 = vmatprep.mubr.f32.mxu0 0.0
        %1817 = vmatmul.mubr.f32.gmra.mrb[0].mxu0 %v1659
        %v1818 = vpop.f32.mrb[0].mxu0
        %v1819 = vadd.f32 0.0, %v1818
        %v1820 = vpop.f32.mrb[0].mxu0
        %1821 = vmatprep.mubr.f32.mxu0 0.0
        %1822 = vmatmul.mubr.f32.gmra.mrb[0].mxu0 %v1660
        %v1823 = vpop.f32.mrb[0].mxu0
        %v1824 = vadd.f32 0.0, %v1823
        %v1825 = vpop.f32.mrb[0].mxu0
        %1826 = vmatprep.mubr.f32.mxu0 0.0
        %1827 = vmatmul.mubr.f32.gmra.mrb[0].mxu0 %v1661
        %v1828 = vpop.f32.mrb[0].mxu0
        %v1829 = vadd.f32 0.0, %v1828
        %v1830 = vpop.f32.mrb[0].mxu0
        %1831 = vmatprep.mubr.f32.mxu0 0.0
        %1832 = vmatmul.mubr.f32.gmra.mrb[0].mxu0 %v1662
        %v1833 = vpop.f32.mrb[0].mxu0
        %v1834 = vadd.f32 0.0, %v1833
        %v1835 = vpop.f32.mrb[0].mxu0
        %1836 = vmatprep.mubr.f32.mxu0 0.0
        %1837 = vmatmul.mubr.f32.gmra.mrb[0].mxu0 %v1663
        %v1838 = vpop.f32.mrb[0].mxu0
        %v1839 = vadd.f32 0.0, %v1838
        %v1840 = vpop.f32.mrb[0].mxu0
        %1841 = vmatprep.mubr.f32.mxu0 0.0
        %1842 = vmatmul.mubr.f32.gmra.mrb[0].mxu0 %v1664
        %v1843 = vpop.f32.mrb[0].mxu0
        %v1844 = vadd.f32 0.0, %v1843
        %v1845 = vpop.f32.mrb[0].mxu0
        %1846 = vmatprep.mubr.f32.mxu0 0.0
        %1847 = vmatmul.mubr.f32.gmra.mrb[0].mxu0 %v1665
        %v1848 = vpop.f32.mrb[0].mxu0
        %v1849 = vadd.f32 0.0, %v1848
        %v1850 = vpop.f32.mrb[0].mxu0
        %1851 = vmatprep.mubr.f32.mxu0 0.0
        %1852 = vmatmul.mubr.f32.gmra.mrb[0].mxu0 %v1666
        %v1853 = vpop.f32.mrb[0].mxu0
        %v1854 = vadd.f32 0.0, %v1853
        %v1855 = vpop.f32.mrb[0].mxu0
        %1856 = vmatprep.mubr.f32.mxu0 0.0
        %1857 = vmatmul.mubr.f32.gmra.mrb[0].mxu0 %v1667
        %v1858 = vpop.f32.mrb[0].mxu0
        %v1859 = vadd.f32 0.0, %v1858
        %v1860 = vpop.f32.mrb[0].mxu0
        %1861 = vmatprep.mubr.f32.mxu0 0.0
        %1862 = vmatmul.mubr.f32.gmra.mrb[0].mxu0 %v1668
        %v1863 = vpop.f32.mrb[0].mxu0
        %v1864 = vadd.f32 0.0, %v1863
        %v1865 = vpop.f32.mrb[0].mxu0
        %1866 = vmatprep.mubr.f32.mxu0 0.0
        %1867 = vmatmul.mubr.f32.gmra.mrb[0].mxu0 %v1669
        %v1868 = vpop.f32.mrb[0].mxu0
        %v1869 = vadd.f32 0.0, %v1868
        %v1870 = vpop.f32.mrb[0].mxu0
        %1871 = vmatprep.mubr.f32.mxu0 0.0
        %1872 = vmatmul.mubr.f32.gmra.mrb[0].mxu0 %v1670
        %v1873 = vpop.f32.mrb[0].mxu0
        %v1874 = vadd.f32 0.0, %v1873
        %v1875 = vpop.f32.mrb[0].mxu0
        %1876 = vmatprep.mubr.f32.mxu0 0.0
        %1877 = vmatmul.mubr.f32.gmra.mrb[0].mxu0 %v1671
        %v1878 = vpop.f32.mrb[0].mxu0
        %v1879 = vadd.f32 0.0, %v1878
        %v1880 = vpop.f32.mrb[0].mxu0
        %1881 = vmatprep.mubr.f32.mxu0 0.0
        %1882 = vmatmul.mubr.f32.gmra.mrb[0].mxu0 %v1672
        %v1883 = vpop.f32.mrb[0].mxu0
        %v1884 = vadd.f32 0.0, %v1883
        %v1885 = vpop.f32.mrb[0].mxu0
        %1886 = vmatprep.mubr.f32.mxu0 0.0
        %1887 = vmatmul.mubr.f32.gmra.mrb[0].mxu0 %v1673
        %v1888 = vpop.f32.mrb[0].mxu0
        %v1889 = vadd.f32 0.0, %v1888
        %v1890 = vpop.f32.mrb[0].mxu0
        %1891 = vmatprep.mubr.f32.mxu0 0.0
        %1892 = vmatmul.mubr.f32.gmra.mrb[0].mxu0 %v1674
        %v1893 = vpop.f32.mrb[0].mxu0
        %v1894 = vadd.f32 0.0, %v1893
        %v1895 = vpop.f32.mrb[0].mxu0
        %1896 = vmatprep.mubr.f32.mxu0 0.0
        %1897 = vmatmul.mubr.f32.gmra.mrb[0].mxu0 %v1675
        %v1898 = vpop.f32.mrb[0].mxu0
        %v1899 = vadd.f32 0.0, %v1898
        %v1900 = vpop.f32.mrb[0].mxu0
        %1901 = vmatprep.mubr.f32.mxu0 0.0
        %1902 = vmatmul.mubr.f32.gmra.mrb[0].mxu0 %v1676
        %v1903 = vpop.f32.mrb[0].mxu0
        %v1904 = vadd.f32 0.0, %v1903
        %v1905 = vpop.f32.mrb[0].mxu0
        %1906 = vmatprep.mubr.f32.mxu0 0.0
        %1907 = vmatmul.mubr.f32.gmra.mrb[0].mxu0 %v1677
        %v1908 = vpop.f32.mrb[0].mxu0
        %v1909 = vadd.f32 0.0, %v1908
        %v1910 = vpop.f32.mrb[0].mxu0
        %1911 = vmatprep.mubr.f32.mxu0 0.0
        %1912 = vmatmul.mubr.f32.gmra.mrb[0].mxu0 %v1678
        %v1913 = vpop.f32.mrb[0].mxu0
        %v1914 = vadd.f32 0.0, %v1913
        %v1915 = vpop.f32.mrb[0].mxu0
        %1916 = vmatprep.mubr.f32.mxu0 0.0
        %1917 = vmatmul.mubr.f32.gmra.mrb[0].mxu0 %v1679
        %v1918 = vpop.f32.mrb[0].mxu0
        %v1919 = vadd.f32 0.0, %v1918
        %v1920 = vpop.f32.mrb[0].mxu0
        %1921 = vdwg.mxu0
        %v1922 = vadd.f32 %v1616, %v1764
        %v1923 = vadd.f32 %v1617, %v1769
        %v1924 = vadd.f32 %v1618, %v1774
        %v1925 = vadd.f32 %v1619, %v1779
        %v1926 = vadd.f32 %v1620, %v1784
        %v1927 = vadd.f32 %v1621, %v1789
        %v1928 = vadd.f32 %v1622, %v1794
        %v1929 = vadd.f32 %v1623, %v1799
        %v1930 = vadd.f32 %v1624, %v1804
        %v1931 = vadd.f32 %v1625, %v1809
        %v1932 = vadd.f32 %v1626, %v1814
        %v1933 = vadd.f32 %v1627, %v1819
        %v1934 = vadd.f32 %v1628, %v1824
        %v1935 = vadd.f32 %v1629, %v1829
        %v1936 = vadd.f32 %v1630, %v1834
        %v1937 = vadd.f32 %v1631, %v1839
        %v1938 = vadd.f32 %v1632, %v1844
        %v1939 = vadd.f32 %v1633, %v1849
        %v1940 = vadd.f32 %v1634, %v1854
        %v1941 = vadd.f32 %v1635, %v1859
        %v1942 = vadd.f32 %v1636, %v1864
        %v1943 = vadd.f32 %v1637, %v1869
        %v1944 = vadd.f32 %v1638, %v1874
        %v1945 = vadd.f32 %v1639, %v1879
        %v1946 = vadd.f32 %v1640, %v1884
        %v1947 = vadd.f32 %v1641, %v1889
        %v1948 = vadd.f32 %v1642, %v1894
        %v1949 = vadd.f32 %v1643, %v1899
        %v1950 = vadd.f32 %v1644, %v1904
        %v1951 = vadd.f32 %v1645, %v1909
        %v1952 = vadd.f32 %v1646, %v1914
        %v1953 = vadd.f32 %v1647, %v1919
        %s1954 = scalar_lea.vmem %s176, 48
        %v1955 = vld [vmem:[%s1954] sm:$0xff]
        %v1956 = vld [vmem:[%s1954 + $0x8] sm:$0xff]
        %v1957 = vld [vmem:[%s1954 + $0x18] sm:$0xff]
        %v1958 = vld [vmem:[%s1954 + $0x20] sm:$0xff]
        %v1959 = vld [vmem:[%s1954 + $0x30] sm:$0xff]
        %v1960 = vld [vmem:[%s1954 + $0x38] sm:$0xff]
        %v1961 = vld [vmem:[%s1954 + $0x48] sm:$0xff]
        %v1962 = vld [vmem:[%s1954 + $0x50] sm:$0xff]
        %v1963 = vld [vmem:[%s1954 + $0x60] sm:$0xff]
        %v1964 = vld [vmem:[%s1954 + $0x68] sm:$0xff]
        %v1965 = vld [vmem:[%s1954 + $0x78] sm:$0xff]
        %v1966 = vld [vmem:[%s1954 + $0x80] sm:$0xff]
        %v1967 = vld [vmem:[%s1954 + $0x90] sm:$0xff]
        %v1968 = vld [vmem:[%s1954 + $0x98] sm:$0xff]
        %v1969 = vld [vmem:[%s1954 + $0xa8] sm:$0xff]
        %v1970 = vld [vmem:[%s1954 + $0xb0] sm:$0xff]
        %v1971 = vld [vmem:[%s1954 + $0xc0] sm:$0xff]
        %v1972 = vld [vmem:[%s1954 + $0xc8] sm:$0xff]
        %v1973 = vld [vmem:[%s1954 + $0xd8] sm:$0xff]
        %v1974 = vld [vmem:[%s1954 + $0xe0] sm:$0xff]
        %v1975 = vld [vmem:[%s1954 + $0xf0] sm:$0xff]
        %v1976 = vld [vmem:[%s1954 + $0xf8] sm:$0xff]
        %v1977 = vld [vmem:[%s1954 + $0x108] sm:$0xff]
        %v1978 = vld [vmem:[%s1954 + $0x110] sm:$0xff]
        %v1979 = vld [vmem:[%s1954 + $0x120] sm:$0xff]
        %v1980 = vld [vmem:[%s1954 + $0x128] sm:$0xff]
        %v1981 = vld [vmem:[%s1954 + $0x138] sm:$0xff]
        %v1982 = vld [vmem:[%s1954 + $0x140] sm:$0xff]
        %v1983 = vld [vmem:[%s1954 + $0x150] sm:$0xff]
        %v1984 = vld [vmem:[%s1954 + $0x158] sm:$0xff]
        %v1985 = vld [vmem:[%s1954 + $0x168] sm:$0xff]
        %v1986 = vld [vmem:[%s1954 + $0x170] sm:$0xff]
        %s1987 = scalar_lea.vmem %s1, 768
        %v1988 = vld [vmem:[%s1987] sm:$0xff]
        %v1989 = vld [vmem:[%s1987 + $0x8] sm:$0xff]
        %v1990 = vld [vmem:[%s1987 + $0x10] sm:$0xff]
        %v1991 = vld [vmem:[%s1987 + $0x18] sm:$0xff]
        %v1992 = vld [vmem:[%s1987 + $0x20] sm:$0xff]
        %v1993 = vld [vmem:[%s1987 + $0x28] sm:$0xff]
        %v1994 = vld [vmem:[%s1987 + $0x30] sm:$0xff]
        %v1995 = vld [vmem:[%s1987 + $0x38] sm:$0xff]
        %v1996 = vld [vmem:[%s1987 + $0x40] sm:$0xff]
        %v1997 = vld [vmem:[%s1987 + $0x48] sm:$0xff]
        %v1998 = vld [vmem:[%s1987 + $0x50] sm:$0xff]
        %v1999 = vld [vmem:[%s1987 + $0x58] sm:$0xff]
        %v2000 = vld [vmem:[%s1987 + $0x60] sm:$0xff]
        %v2001 = vld [vmem:[%s1987 + $0x68] sm:$0xff]
        %v2002 = vld [vmem:[%s1987 + $0x70] sm:$0xff]
        %v2003 = vld [vmem:[%s1987 + $0x78] sm:$0xff]
        %2004 = vmatprep.subr.mxu0 0.0
        %2005 = vmatpush1.msra.mxu0 %v1988
        %2006 = vmatprep.subr.mxu0 0.0
        %2007 = vmatpush1.msra.mxu0 %v1989
        %2008 = vmatprep.subr.mxu0 0.0
        %2009 = vmatpush1.msra.mxu0 %v1990
        %2010 = vmatprep.subr.mxu0 0.0
        %2011 = vmatpush1.msra.mxu0 %v1991
        %2012 = vmatprep.subr.mxu0 0.0
        %2013 = vmatpush1.msra.mxu0 %v1992
        %2014 = vmatprep.subr.mxu0 0.0
        %2015 = vmatpush1.msra.mxu0 %v1993
        %2016 = vmatprep.subr.mxu0 0.0
        %2017 = vmatpush1.msra.mxu0 %v1994
        %2018 = vmatprep.subr.mxu0 0.0
        %2019 = vmatpush1.msra.mxu0 %v1995
        %2020 = vmatprep.subr.mxu0 0.0
        %2021 = vmatpush1.msra.mxu0 %v1996
        %2022 = vmatprep.subr.mxu0 0.0
        %2023 = vmatpush1.msra.mxu0 %v1997
        %2024 = vmatprep.subr.mxu0 0.0
        %2025 = vmatpush1.msra.mxu0 %v1998
        %2026 = vmatprep.subr.mxu0 0.0
        %2027 = vmatpush1.msra.mxu0 %v1999
        %2028 = vmatprep.subr.mxu0 0.0
        %2029 = vmatpush1.msra.mxu0 %v2000
        %2030 = vmatprep.subr.mxu0 0.0
        %2031 = vmatpush1.msra.mxu0 %v2001
        %2032 = vmatprep.subr.mxu0 0.0
        %2033 = vmatpush1.msra.mxu0 %v2002
        %2034 = vmatprep.subr.mxu0 0.0
        %2035 = vmatpush1.msra.mxu0 %v2003
        %2036 = vmatprep.subr.mxu0 0.0
        %2037 = vmatpush1.msra.mxu0 0.0
        %2038 = vmatprep.subr.mxu0 0.0
        %2039 = vmatpush1.msra.mxu0 0.0
        %2040 = vmatprep.subr.mxu0 0.0
        %2041 = vmatpush1.msra.mxu0 0.0
        %2042 = vmatprep.subr.mxu0 0.0
        %2043 = vmatpush1.msra.mxu0 0.0
        %2044 = vmatprep.subr.mxu0 0.0
        %2045 = vmatpush1.msra.mxu0 0.0
        %2046 = vmatprep.subr.mxu0 0.0
        %2047 = vmatpush1.msra.mxu0 0.0
        %2048 = vmatprep.subr.mxu0 0.0
        %2049 = vmatpush1.msra.mxu0 0.0
        %2050 = vmatprep.subr.mxu0 0.0
        %2051 = vmatpush1.msra.mxu0 0.0
        %2052 = vmatprep.subr.mxu0 0.0
        %2053 = vmatpush1.msra.mxu0 0.0
        %2054 = vmatprep.subr.mxu0 0.0
        %2055 = vmatpush1.msra.mxu0 0.0
        %2056 = vmatprep.subr.mxu0 0.0
        %2057 = vmatpush1.msra.mxu0 0.0
        %2058 = vmatprep.subr.mxu0 0.0
        %2059 = vmatpush1.msra.mxu0 0.0
        %2060 = vmatprep.subr.mxu0 0.0
        %2061 = vmatpush1.msra.mxu0 0.0
        %2062 = vmatprep.subr.mxu0 0.0
        %2063 = vmatpush1.msra.mxu0 0.0
        %2064 = vmatprep.subr.mxu0 0.0
        %2065 = vmatpush1.msra.mxu0 0.0
        %2066 = vmatprep.subr.mxu0 0.0
        %2067 = vmatpush1.msra.mxu0 0.0
        %2068 = vmatprep.mubr.f32.mxu0 0.0
        %2069 = vmatmul.mubr.f32.gmra.mrb[0].mxu0 %v1955
        %v2070 = vpop.f32.mrb[0].mxu0
        %v2071 = vadd.f32 0.0, %v2070
        %v2072 = vpop.f32.mrb[0].mxu0
        %2073 = vmatprep.mubr.f32.mxu0 0.0
        %2074 = vmatmul.mubr.f32.gmra.mrb[0].mxu0 %v1956
        %v2075 = vpop.f32.mrb[0].mxu0
        %v2076 = vadd.f32 0.0, %v2075
        %v2077 = vpop.f32.mrb[0].mxu0
        %2078 = vmatprep.mubr.f32.mxu0 0.0
        %2079 = vmatmul.mubr.f32.gmra.mrb[0].mxu0 %v1957
        %v2080 = vpop.f32.mrb[0].mxu0
        %v2081 = vadd.f32 0.0, %v2080
        %v2082 = vpop.f32.mrb[0].mxu0
        %2083 = vmatprep.mubr.f32.mxu0 0.0
        %2084 = vmatmul.mubr.f32.gmra.mrb[0].mxu0 %v1958
        %v2085 = vpop.f32.mrb[0].mxu0
        %v2086 = vadd.f32 0.0, %v2085
        %v2087 = vpop.f32.mrb[0].mxu0
        %2088 = vmatprep.mubr.f32.mxu0 0.0
        %2089 = vmatmul.mubr.f32.gmra.mrb[0].mxu0 %v1959
        %v2090 = vpop.f32.mrb[0].mxu0
        %v2091 = vadd.f32 0.0, %v2090
        %v2092 = vpop.f32.mrb[0].mxu0
        %2093 = vmatprep.mubr.f32.mxu0 0.0
        %2094 = vmatmul.mubr.f32.gmra.mrb[0].mxu0 %v1960
        %v2095 = vpop.f32.mrb[0].mxu0
        %v2096 = vadd.f32 0.0, %v2095
        %v2097 = vpop.f32.mrb[0].mxu0
        %2098 = vmatprep.mubr.f32.mxu0 0.0
        %2099 = vmatmul.mubr.f32.gmra.mrb[0].mxu0 %v1961
        %v2100 = vpop.f32.mrb[0].mxu0
        %v2101 = vadd.f32 0.0, %v2100
        %v2102 = vpop.f32.mrb[0].mxu0
        %2103 = vmatprep.mubr.f32.mxu0 0.0
        %2104 = vmatmul.mubr.f32.gmra.mrb[0].mxu0 %v1962
        %v2105 = vpop.f32.mrb[0].mxu0
        %v2106 = vadd.f32 0.0, %v2105
        %v2107 = vpop.f32.mrb[0].mxu0
        %2108 = vmatprep.mubr.f32.mxu0 0.0
        %2109 = vmatmul.mubr.f32.gmra.mrb[0].mxu0 %v1963
        %v2110 = vpop.f32.mrb[0].mxu0
        %v2111 = vadd.f32 0.0, %v2110
        %v2112 = vpop.f32.mrb[0].mxu0
        %2113 = vmatprep.mubr.f32.mxu0 0.0
        %2114 = vmatmul.mubr.f32.gmra.mrb[0].mxu0 %v1964
        %v2115 = vpop.f32.mrb[0].mxu0
        %v2116 = vadd.f32 0.0, %v2115
        %v2117 = vpop.f32.mrb[0].mxu0
        %2118 = vmatprep.mubr.f32.mxu0 0.0
        %2119 = vmatmul.mubr.f32.gmra.mrb[0].mxu0 %v1965
        %v2120 = vpop.f32.mrb[0].mxu0
        %v2121 = vadd.f32 0.0, %v2120
        %v2122 = vpop.f32.mrb[0].mxu0
        %2123 = vmatprep.mubr.f32.mxu0 0.0
        %2124 = vmatmul.mubr.f32.gmra.mrb[0].mxu0 %v1966
        %v2125 = vpop.f32.mrb[0].mxu0
        %v2126 = vadd.f32 0.0, %v2125
        %v2127 = vpop.f32.mrb[0].mxu0
        %2128 = vmatprep.mubr.f32.mxu0 0.0
        %2129 = vmatmul.mubr.f32.gmra.mrb[0].mxu0 %v1967
        %v2130 = vpop.f32.mrb[0].mxu0
        %v2131 = vadd.f32 0.0, %v2130
        %v2132 = vpop.f32.mrb[0].mxu0
        %2133 = vmatprep.mubr.f32.mxu0 0.0
        %2134 = vmatmul.mubr.f32.gmra.mrb[0].mxu0 %v1968
        %v2135 = vpop.f32.mrb[0].mxu0
        %v2136 = vadd.f32 0.0, %v2135
        %v2137 = vpop.f32.mrb[0].mxu0
        %2138 = vmatprep.mubr.f32.mxu0 0.0
        %2139 = vmatmul.mubr.f32.gmra.mrb[0].mxu0 %v1969
        %v2140 = vpop.f32.mrb[0].mxu0
        %v2141 = vadd.f32 0.0, %v2140
        %v2142 = vpop.f32.mrb[0].mxu0
        %2143 = vmatprep.mubr.f32.mxu0 0.0
        %2144 = vmatmul.mubr.f32.gmra.mrb[0].mxu0 %v1970
        %v2145 = vpop.f32.mrb[0].mxu0
        %v2146 = vadd.f32 0.0, %v2145
        %v2147 = vpop.f32.mrb[0].mxu0
        %2148 = vmatprep.mubr.f32.mxu0 0.0
        %2149 = vmatmul.mubr.f32.gmra.mrb[0].mxu0 %v1971
        %v2150 = vpop.f32.mrb[0].mxu0
        %v2151 = vadd.f32 0.0, %v2150
        %v2152 = vpop.f32.mrb[0].mxu0
        %2153 = vmatprep.mubr.f32.mxu0 0.0
        %2154 = vmatmul.mubr.f32.gmra.mrb[0].mxu0 %v1972
        %v2155 = vpop.f32.mrb[0].mxu0
        %v2156 = vadd.f32 0.0, %v2155
        %v2157 = vpop.f32.mrb[0].mxu0
        %2158 = vmatprep.mubr.f32.mxu0 0.0
        %2159 = vmatmul.mubr.f32.gmra.mrb[0].mxu0 %v1973
        %v2160 = vpop.f32.mrb[0].mxu0
        %v2161 = vadd.f32 0.0, %v2160
        %v2162 = vpop.f32.mrb[0].mxu0
        %2163 = vmatprep.mubr.f32.mxu0 0.0
        %2164 = vmatmul.mubr.f32.gmra.mrb[0].mxu0 %v1974
        %v2165 = vpop.f32.mrb[0].mxu0
        %v2166 = vadd.f32 0.0, %v2165
        %v2167 = vpop.f32.mrb[0].mxu0
        %2168 = vmatprep.mubr.f32.mxu0 0.0
        %2169 = vmatmul.mubr.f32.gmra.mrb[0].mxu0 %v1975
        %v2170 = vpop.f32.mrb[0].mxu0
        %v2171 = vadd.f32 0.0, %v2170
        %v2172 = vpop.f32.mrb[0].mxu0
        %2173 = vmatprep.mubr.f32.mxu0 0.0
        %2174 = vmatmul.mubr.f32.gmra.mrb[0].mxu0 %v1976
        %v2175 = vpop.f32.mrb[0].mxu0
        %v2176 = vadd.f32 0.0, %v2175
        %v2177 = vpop.f32.mrb[0].mxu0
        %2178 = vmatprep.mubr.f32.mxu0 0.0
        %2179 = vmatmul.mubr.f32.gmra.mrb[0].mxu0 %v1977
        %v2180 = vpop.f32.mrb[0].mxu0
        %v2181 = vadd.f32 0.0, %v2180
        %v2182 = vpop.f32.mrb[0].mxu0
        %2183 = vmatprep.mubr.f32.mxu0 0.0
        %2184 = vmatmul.mubr.f32.gmra.mrb[0].mxu0 %v1978
        %v2185 = vpop.f32.mrb[0].mxu0
        %v2186 = vadd.f32 0.0, %v2185
        %v2187 = vpop.f32.mrb[0].mxu0
        %2188 = vmatprep.mubr.f32.mxu0 0.0
        %2189 = vmatmul.mubr.f32.gmra.mrb[0].mxu0 %v1979
        %v2190 = vpop.f32.mrb[0].mxu0
        %v2191 = vadd.f32 0.0, %v2190
        %v2192 = vpop.f32.mrb[0].mxu0
        %2193 = vmatprep.mubr.f32.mxu0 0.0
        %2194 = vmatmul.mubr.f32.gmra.mrb[0].mxu0 %v1980
        %v2195 = vpop.f32.mrb[0].mxu0
        %v2196 = vadd.f32 0.0, %v2195
        %v2197 = vpop.f32.mrb[0].mxu0
        %2198 = vmatprep.mubr.f32.mxu0 0.0
        %2199 = vmatmul.mubr.f32.gmra.mrb[0].mxu0 %v1981
        %v2200 = vpop.f32.mrb[0].mxu0
        %v2201 = vadd.f32 0.0, %v2200
        %v2202 = vpop.f32.mrb[0].mxu0
        %2203 = vmatprep.mubr.f32.mxu0 0.0
        %2204 = vmatmul.mubr.f32.gmra.mrb[0].mxu0 %v1982
        %v2205 = vpop.f32.mrb[0].mxu0
        %v2206 = vadd.f32 0.0, %v2205
        %v2207 = vpop.f32.mrb[0].mxu0
        %2208 = vmatprep.mubr.f32.mxu0 0.0
        %2209 = vmatmul.mubr.f32.gmra.mrb[0].mxu0 %v1983
        %v2210 = vpop.f32.mrb[0].mxu0
        %v2211 = vadd.f32 0.0, %v2210
        %v2212 = vpop.f32.mrb[0].mxu0
        %2213 = vmatprep.mubr.f32.mxu0 0.0
        %2214 = vmatmul.mubr.f32.gmra.mrb[0].mxu0 %v1984
        %v2215 = vpop.f32.mrb[0].mxu0
        %v2216 = vadd.f32 0.0, %v2215
        %v2217 = vpop.f32.mrb[0].mxu0
        %2218 = vmatprep.mubr.f32.mxu0 0.0
        %2219 = vmatmul.mubr.f32.gmra.mrb[0].mxu0 %v1985
        %v2220 = vpop.f32.mrb[0].mxu0
        %v2221 = vadd.f32 0.0, %v2220
        %v2222 = vpop.f32.mrb[0].mxu0
        %2223 = vmatprep.mubr.f32.mxu0 0.0
        %2224 = vmatmul.mubr.f32.gmra.mrb[0].mxu0 %v1986
        %v2225 = vpop.f32.mrb[0].mxu0
        %v2226 = vadd.f32 0.0, %v2225
        %v2227 = vpop.f32.mrb[0].mxu0
        %2228 = vdwg.mxu0
        %v2229 = vadd.f32 %v1922, %v2071
        %v2230 = vadd.f32 %v1923, %v2076
        %v2231 = vadd.f32 %v1924, %v2081
        %v2232 = vadd.f32 %v1925, %v2086
        %v2233 = vadd.f32 %v1926, %v2091
        %v2234 = vadd.f32 %v1927, %v2096
        %v2235 = vadd.f32 %v1928, %v2101
        %v2236 = vadd.f32 %v1929, %v2106
        %v2237 = vadd.f32 %v1930, %v2111
        %v2238 = vadd.f32 %v1931, %v2116
        %v2239 = vadd.f32 %v1932, %v2121
        %v2240 = vadd.f32 %v1933, %v2126
        %v2241 = vadd.f32 %v1934, %v2131
        %v2242 = vadd.f32 %v1935, %v2136
        %v2243 = vadd.f32 %v1936, %v2141
        %v2244 = vadd.f32 %v1937, %v2146
        %v2245 = vadd.f32 %v1938, %v2151
        %v2246 = vadd.f32 %v1939, %v2156
        %v2247 = vadd.f32 %v1940, %v2161
        %v2248 = vadd.f32 %v1941, %v2166
        %v2249 = vadd.f32 %v1942, %v2171
        %v2250 = vadd.f32 %v1943, %v2176
        %v2251 = vadd.f32 %v1944, %v2181
        %v2252 = vadd.f32 %v1945, %v2186
        %v2253 = vadd.f32 %v1946, %v2191
        %v2254 = vadd.f32 %v1947, %v2196
        %v2255 = vadd.f32 %v1948, %v2201
        %v2256 = vadd.f32 %v1949, %v2206
        %v2257 = vadd.f32 %v1950, %v2211
        %v2258 = vadd.f32 %v1951, %v2216
        %v2259 = vadd.f32 %v1952, %v2221
        %v2260 = vadd.f32 %v1953, %v2226
        %v2261 = vld [vmem:[%s1954 + $0x1] sm:$0xff]
        %v2262 = vld [vmem:[%s1954 + $0x9] sm:$0xff]
        %v2263 = vld [vmem:[%s1954 + $0x19] sm:$0xff]
        %v2264 = vld [vmem:[%s1954 + $0x21] sm:$0xff]
        %v2265 = vld [vmem:[%s1954 + $0x31] sm:$0xff]
        %v2266 = vld [vmem:[%s1954 + $0x39] sm:$0xff]
        %v2267 = vld [vmem:[%s1954 + $0x49] sm:$0xff]
        %v2268 = vld [vmem:[%s1954 + $0x51] sm:$0xff]
        %v2269 = vld [vmem:[%s1954 + $0x61] sm:$0xff]
        %v2270 = vld [vmem:[%s1954 + $0x69] sm:$0xff]
        %v2271 = vld [vmem:[%s1954 + $0x79] sm:$0xff]
        %v2272 = vld [vmem:[%s1954 + $0x81] sm:$0xff]
        %v2273 = vld [vmem:[%s1954 + $0x91] sm:$0xff]
        %v2274 = vld [vmem:[%s1954 + $0x99] sm:$0xff]
        %v2275 = vld [vmem:[%s1954 + $0xa9] sm:$0xff]
        %v2276 = vld [vmem:[%s1954 + $0xb1] sm:$0xff]
        %v2277 = vld [vmem:[%s1954 + $0xc1] sm:$0xff]
        %v2278 = vld [vmem:[%s1954 + $0xc9] sm:$0xff]
        %v2279 = vld [vmem:[%s1954 + $0xd9] sm:$0xff]
        %v2280 = vld [vmem:[%s1954 + $0xe1] sm:$0xff]
        %v2281 = vld [vmem:[%s1954 + $0xf1] sm:$0xff]
        %v2282 = vld [vmem:[%s1954 + $0xf9] sm:$0xff]
        %v2283 = vld [vmem:[%s1954 + $0x109] sm:$0xff]
        %v2284 = vld [vmem:[%s1954 + $0x111] sm:$0xff]
        %v2285 = vld [vmem:[%s1954 + $0x121] sm:$0xff]
        %v2286 = vld [vmem:[%s1954 + $0x129] sm:$0xff]
        %v2287 = vld [vmem:[%s1954 + $0x139] sm:$0xff]
        %v2288 = vld [vmem:[%s1954 + $0x141] sm:$0xff]
        %v2289 = vld [vmem:[%s1954 + $0x151] sm:$0xff]
        %v2290 = vld [vmem:[%s1954 + $0x159] sm:$0xff]
        %v2291 = vld [vmem:[%s1954 + $0x169] sm:$0xff]
        %v2292 = vld [vmem:[%s1954 + $0x171] sm:$0xff]
        %s2293 = scalar_lea.vmem %s1, 896
        %v2294 = vld [vmem:[%s2293] sm:$0xff]
        %v2295 = vld [vmem:[%s2293 + $0x8] sm:$0xff]
        %v2296 = vld [vmem:[%s2293 + $0x10] sm:$0xff]
        %v2297 = vld [vmem:[%s2293 + $0x18] sm:$0xff]
        %v2298 = vld [vmem:[%s2293 + $0x20] sm:$0xff]
        %v2299 = vld [vmem:[%s2293 + $0x28] sm:$0xff]
        %v2300 = vld [vmem:[%s2293 + $0x30] sm:$0xff]
        %v2301 = vld [vmem:[%s2293 + $0x38] sm:$0xff]
        %v2302 = vld [vmem:[%s2293 + $0x40] sm:$0xff]
        %v2303 = vld [vmem:[%s2293 + $0x48] sm:$0xff]
        %v2304 = vld [vmem:[%s2293 + $0x50] sm:$0xff]
        %v2305 = vld [vmem:[%s2293 + $0x58] sm:$0xff]
        %v2306 = vld [vmem:[%s2293 + $0x60] sm:$0xff]
        %v2307 = vld [vmem:[%s2293 + $0x68] sm:$0xff]
        %v2308 = vld [vmem:[%s2293 + $0x70] sm:$0xff]
        %v2309 = vld [vmem:[%s2293 + $0x78] sm:$0xff]
        %2310 = vmatprep.subr.mxu0 0.0
        %2311 = vmatpush1.msra.mxu0 %v2294
        %2312 = vmatprep.subr.mxu0 0.0
        %2313 = vmatpush1.msra.mxu0 %v2295
        %2314 = vmatprep.subr.mxu0 0.0
        %2315 = vmatpush1.msra.mxu0 %v2296
        %2316 = vmatprep.subr.mxu0 0.0
        %2317 = vmatpush1.msra.mxu0 %v2297
        %2318 = vmatprep.subr.mxu0 0.0
        %2319 = vmatpush1.msra.mxu0 %v2298
        %2320 = vmatprep.subr.mxu0 0.0
        %2321 = vmatpush1.msra.mxu0 %v2299
        %2322 = vmatprep.subr.mxu0 0.0
        %2323 = vmatpush1.msra.mxu0 %v2300
        %2324 = vmatprep.subr.mxu0 0.0
        %2325 = vmatpush1.msra.mxu0 %v2301
        %2326 = vmatprep.subr.mxu0 0.0
        %2327 = vmatpush1.msra.mxu0 %v2302
        %2328 = vmatprep.subr.mxu0 0.0
        %2329 = vmatpush1.msra.mxu0 %v2303
        %2330 = vmatprep.subr.mxu0 0.0
        %2331 = vmatpush1.msra.mxu0 %v2304
        %2332 = vmatprep.subr.mxu0 0.0
        %2333 = vmatpush1.msra.mxu0 %v2305
        %2334 = vmatprep.subr.mxu0 0.0
        %2335 = vmatpush1.msra.mxu0 %v2306
        %2336 = vmatprep.subr.mxu0 0.0
        %2337 = vmatpush1.msra.mxu0 %v2307
        %2338 = vmatprep.subr.mxu0 0.0
        %2339 = vmatpush1.msra.mxu0 %v2308
        %2340 = vmatprep.subr.mxu0 0.0
        %2341 = vmatpush1.msra.mxu0 %v2309
        %2342 = vmatprep.subr.mxu0 0.0
        %2343 = vmatpush1.msra.mxu0 0.0
        %2344 = vmatprep.subr.mxu0 0.0
        %2345 = vmatpush1.msra.mxu0 0.0
        %2346 = vmatprep.subr.mxu0 0.0
        %2347 = vmatpush1.msra.mxu0 0.0
        %2348 = vmatprep.subr.mxu0 0.0
        %2349 = vmatpush1.msra.mxu0 0.0
        %2350 = vmatprep.subr.mxu0 0.0
        %2351 = vmatpush1.msra.mxu0 0.0
        %2352 = vmatprep.subr.mxu0 0.0
        %2353 = vmatpush1.msra.mxu0 0.0
        %2354 = vmatprep.subr.mxu0 0.0
        %2355 = vmatpush1.msra.mxu0 0.0
        %2356 = vmatprep.subr.mxu0 0.0
        %2357 = vmatpush1.msra.mxu0 0.0
        %2358 = vmatprep.subr.mxu0 0.0
        %2359 = vmatpush1.msra.mxu0 0.0
        %2360 = vmatprep.subr.mxu0 0.0
        %2361 = vmatpush1.msra.mxu0 0.0
        %2362 = vmatprep.subr.mxu0 0.0
        %2363 = vmatpush1.msra.mxu0 0.0
        %2364 = vmatprep.subr.mxu0 0.0
        %2365 = vmatpush1.msra.mxu0 0.0
        %2366 = vmatprep.subr.mxu0 0.0
        %2367 = vmatpush1.msra.mxu0 0.0
        %2368 = vmatprep.subr.mxu0 0.0
        %2369 = vmatpush1.msra.mxu0 0.0
        %2370 = vmatprep.subr.mxu0 0.0
        %2371 = vmatpush1.msra.mxu0 0.0
        %2372 = vmatprep.subr.mxu0 0.0
        %2373 = vmatpush1.msra.mxu0 0.0
        %2374 = vmatprep.mubr.f32.mxu0 0.0
        %2375 = vmatmul.mubr.f32.gmra.mrb[0].mxu0 %v2261
        %v2376 = vpop.f32.mrb[0].mxu0
        %v2377 = vadd.f32 0.0, %v2376
        %v2378 = vpop.f32.mrb[0].mxu0
        %2379 = vmatprep.mubr.f32.mxu0 0.0
        %2380 = vmatmul.mubr.f32.gmra.mrb[0].mxu0 %v2262
        %v2381 = vpop.f32.mrb[0].mxu0
        %v2382 = vadd.f32 0.0, %v2381
        %v2383 = vpop.f32.mrb[0].mxu0
        %2384 = vmatprep.mubr.f32.mxu0 0.0
        %2385 = vmatmul.mubr.f32.gmra.mrb[0].mxu0 %v2263
        %v2386 = vpop.f32.mrb[0].mxu0
        %v2387 = vadd.f32 0.0, %v2386
        %v2388 = vpop.f32.mrb[0].mxu0
        %2389 = vmatprep.mubr.f32.mxu0 0.0
        %2390 = vmatmul.mubr.f32.gmra.mrb[0].mxu0 %v2264
        %v2391 = vpop.f32.mrb[0].mxu0
        %v2392 = vadd.f32 0.0, %v2391
        %v2393 = vpop.f32.mrb[0].mxu0
        %2394 = vmatprep.mubr.f32.mxu0 0.0
        %2395 = vmatmul.mubr.f32.gmra.mrb[0].mxu0 %v2265
        %v2396 = vpop.f32.mrb[0].mxu0
        %v2397 = vadd.f32 0.0, %v2396
        %v2398 = vpop.f32.mrb[0].mxu0
        %2399 = vmatprep.mubr.f32.mxu0 0.0
        %2400 = vmatmul.mubr.f32.gmra.mrb[0].mxu0 %v2266
        %v2401 = vpop.f32.mrb[0].mxu0
        %v2402 = vadd.f32 0.0, %v2401
        %v2403 = vpop.f32.mrb[0].mxu0
        %2404 = vmatprep.mubr.f32.mxu0 0.0
        %2405 = vmatmul.mubr.f32.gmra.mrb[0].mxu0 %v2267
        %v2406 = vpop.f32.mrb[0].mxu0
        %v2407 = vadd.f32 0.0, %v2406
        %v2408 = vpop.f32.mrb[0].mxu0
        %2409 = vmatprep.mubr.f32.mxu0 0.0
        %2410 = vmatmul.mubr.f32.gmra.mrb[0].mxu0 %v2268
        %v2411 = vpop.f32.mrb[0].mxu0
        %v2412 = vadd.f32 0.0, %v2411
        %v2413 = vpop.f32.mrb[0].mxu0
        %2414 = vmatprep.mubr.f32.mxu0 0.0
        %2415 = vmatmul.mubr.f32.gmra.mrb[0].mxu0 %v2269
        %v2416 = vpop.f32.mrb[0].mxu0
        %v2417 = vadd.f32 0.0, %v2416
        %v2418 = vpop.f32.mrb[0].mxu0
        %2419 = vmatprep.mubr.f32.mxu0 0.0
        %2420 = vmatmul.mubr.f32.gmra.mrb[0].mxu0 %v2270
        %v2421 = vpop.f32.mrb[0].mxu0
        %v2422 = vadd.f32 0.0, %v2421
        %v2423 = vpop.f32.mrb[0].mxu0
        %2424 = vmatprep.mubr.f32.mxu0 0.0
        %2425 = vmatmul.mubr.f32.gmra.mrb[0].mxu0 %v2271
        %v2426 = vpop.f32.mrb[0].mxu0
        %v2427 = vadd.f32 0.0, %v2426
        %v2428 = vpop.f32.mrb[0].mxu0
        %2429 = vmatprep.mubr.f32.mxu0 0.0
        %2430 = vmatmul.mubr.f32.gmra.mrb[0].mxu0 %v2272
        %v2431 = vpop.f32.mrb[0].mxu0
        %v2432 = vadd.f32 0.0, %v2431
        %v2433 = vpop.f32.mrb[0].mxu0
        %2434 = vmatprep.mubr.f32.mxu0 0.0
        %2435 = vmatmul.mubr.f32.gmra.mrb[0].mxu0 %v2273
        %v2436 = vpop.f32.mrb[0].mxu0
        %v2437 = vadd.f32 0.0, %v2436
        %v2438 = vpop.f32.mrb[0].mxu0
        %2439 = vmatprep.mubr.f32.mxu0 0.0
        %2440 = vmatmul.mubr.f32.gmra.mrb[0].mxu0 %v2274
        %v2441 = vpop.f32.mrb[0].mxu0
        %v2442 = vadd.f32 0.0, %v2441
        %v2443 = vpop.f32.mrb[0].mxu0
        %2444 = vmatprep.mubr.f32.mxu0 0.0
        %2445 = vmatmul.mubr.f32.gmra.mrb[0].mxu0 %v2275
        %v2446 = vpop.f32.mrb[0].mxu0
        %v2447 = vadd.f32 0.0, %v2446
        %v2448 = vpop.f32.mrb[0].mxu0
        %2449 = vmatprep.mubr.f32.mxu0 0.0
        %2450 = vmatmul.mubr.f32.gmra.mrb[0].mxu0 %v2276
        %v2451 = vpop.f32.mrb[0].mxu0
        %v2452 = vadd.f32 0.0, %v2451
        %v2453 = vpop.f32.mrb[0].mxu0
        %2454 = vmatprep.mubr.f32.mxu0 0.0
        %2455 = vmatmul.mubr.f32.gmra.mrb[0].mxu0 %v2277
        %v2456 = vpop.f32.mrb[0].mxu0
        %v2457 = vadd.f32 0.0, %v2456
        %v2458 = vpop.f32.mrb[0].mxu0
        %2459 = vmatprep.mubr.f32.mxu0 0.0
        %2460 = vmatmul.mubr.f32.gmra.mrb[0].mxu0 %v2278
        %v2461 = vpop.f32.mrb[0].mxu0
        %v2462 = vadd.f32 0.0, %v2461
        %v2463 = vpop.f32.mrb[0].mxu0
        %2464 = vmatprep.mubr.f32.mxu0 0.0
        %2465 = vmatmul.mubr.f32.gmra.mrb[0].mxu0 %v2279
        %v2466 = vpop.f32.mrb[0].mxu0
        %v2467 = vadd.f32 0.0, %v2466
        %v2468 = vpop.f32.mrb[0].mxu0
        %2469 = vmatprep.mubr.f32.mxu0 0.0
        %2470 = vmatmul.mubr.f32.gmra.mrb[0].mxu0 %v2280
        %v2471 = vpop.f32.mrb[0].mxu0
        %v2472 = vadd.f32 0.0, %v2471
        %v2473 = vpop.f32.mrb[0].mxu0
        %2474 = vmatprep.mubr.f32.mxu0 0.0
        %2475 = vmatmul.mubr.f32.gmra.mrb[0].mxu0 %v2281
        %v2476 = vpop.f32.mrb[0].mxu0
        %v2477 = vadd.f32 0.0, %v2476
        %v2478 = vpop.f32.mrb[0].mxu0
        %2479 = vmatprep.mubr.f32.mxu0 0.0
        %2480 = vmatmul.mubr.f32.gmra.mrb[0].mxu0 %v2282
        %v2481 = vpop.f32.mrb[0].mxu0
        %v2482 = vadd.f32 0.0, %v2481
        %v2483 = vpop.f32.mrb[0].mxu0
        %2484 = vmatprep.mubr.f32.mxu0 0.0
        %2485 = vmatmul.mubr.f32.gmra.mrb[0].mxu0 %v2283
        %v2486 = vpop.f32.mrb[0].mxu0
        %v2487 = vadd.f32 0.0, %v2486
        %v2488 = vpop.f32.mrb[0].mxu0
        %2489 = vmatprep.mubr.f32.mxu0 0.0
        %2490 = vmatmul.mubr.f32.gmra.mrb[0].mxu0 %v2284
        %v2491 = vpop.f32.mrb[0].mxu0
        %v2492 = vadd.f32 0.0, %v2491
        %v2493 = vpop.f32.mrb[0].mxu0
        %2494 = vmatprep.mubr.f32.mxu0 0.0
        %2495 = vmatmul.mubr.f32.gmra.mrb[0].mxu0 %v2285
        %v2496 = vpop.f32.mrb[0].mxu0
        %v2497 = vadd.f32 0.0, %v2496
        %v2498 = vpop.f32.mrb[0].mxu0
        %2499 = vmatprep.mubr.f32.mxu0 0.0
        %2500 = vmatmul.mubr.f32.gmra.mrb[0].mxu0 %v2286
        %v2501 = vpop.f32.mrb[0].mxu0
        %v2502 = vadd.f32 0.0, %v2501
        %v2503 = vpop.f32.mrb[0].mxu0
        %2504 = vmatprep.mubr.f32.mxu0 0.0
        %2505 = vmatmul.mubr.f32.gmra.mrb[0].mxu0 %v2287
        %v2506 = vpop.f32.mrb[0].mxu0
        %v2507 = vadd.f32 0.0, %v2506
        %v2508 = vpop.f32.mrb[0].mxu0
        %2509 = vmatprep.mubr.f32.mxu0 0.0
        %2510 = vmatmul.mubr.f32.gmra.mrb[0].mxu0 %v2288
        %v2511 = vpop.f32.mrb[0].mxu0
        %v2512 = vadd.f32 0.0, %v2511
        %v2513 = vpop.f32.mrb[0].mxu0
        %2514 = vmatprep.mubr.f32.mxu0 0.0
        %2515 = vmatmul.mubr.f32.gmra.mrb[0].mxu0 %v2289
        %v2516 = vpop.f32.mrb[0].mxu0
        %v2517 = vadd.f32 0.0, %v2516
        %v2518 = vpop.f32.mrb[0].mxu0
        %2519 = vmatprep.mubr.f32.mxu0 0.0
        %2520 = vmatmul.mubr.f32.gmra.mrb[0].mxu0 %v2290
        %v2521 = vpop.f32.mrb[0].mxu0
        %v2522 = vadd.f32 0.0, %v2521
        %v2523 = vpop.f32.mrb[0].mxu0
        %2524 = vmatprep.mubr.f32.mxu0 0.0
        %2525 = vmatmul.mubr.f32.gmra.mrb[0].mxu0 %v2291
        %v2526 = vpop.f32.mrb[0].mxu0
        %v2527 = vadd.f32 0.0, %v2526
        %v2528 = vpop.f32.mrb[0].mxu0
        %2529 = vmatprep.mubr.f32.mxu0 0.0
        %2530 = vmatmul.mubr.f32.gmra.mrb[0].mxu0 %v2292
        %v2531 = vpop.f32.mrb[0].mxu0
        %v2532 = vadd.f32 0.0, %v2531
        %v2533 = vpop.f32.mrb[0].mxu0
        %2534 = vdwg.mxu0
        %v2535 = vadd.f32 %v2229, %v2377
        %v2536 = vadd.f32 %v2230, %v2382
        %v2537 = vadd.f32 %v2231, %v2387
        %v2538 = vadd.f32 %v2232, %v2392
        %v2539 = vadd.f32 %v2233, %v2397
        %v2540 = vadd.f32 %v2234, %v2402
        %v2541 = vadd.f32 %v2235, %v2407
        %v2542 = vadd.f32 %v2236, %v2412
        %v2543 = vadd.f32 %v2237, %v2417
        %v2544 = vadd.f32 %v2238, %v2422
        %v2545 = vadd.f32 %v2239, %v2427
        %v2546 = vadd.f32 %v2240, %v2432
        %v2547 = vadd.f32 %v2241, %v2437
        %v2548 = vadd.f32 %v2242, %v2442
        %v2549 = vadd.f32 %v2243, %v2447
        %v2550 = vadd.f32 %v2244, %v2452
        %v2551 = vadd.f32 %v2245, %v2457
        %v2552 = vadd.f32 %v2246, %v2462
        %v2553 = vadd.f32 %v2247, %v2467
        %v2554 = vadd.f32 %v2248, %v2472
        %v2555 = vadd.f32 %v2249, %v2477
        %v2556 = vadd.f32 %v2250, %v2482
        %v2557 = vadd.f32 %v2251, %v2487
        %v2558 = vadd.f32 %v2252, %v2492
        %v2559 = vadd.f32 %v2253, %v2497
        %v2560 = vadd.f32 %v2254, %v2502
        %v2561 = vadd.f32 %v2255, %v2507
        %v2562 = vadd.f32 %v2256, %v2512
        %v2563 = vadd.f32 %v2257, %v2517
        %v2564 = vadd.f32 %v2258, %v2522
        %v2565 = vadd.f32 %v2259, %v2527
        %v2566 = vadd.f32 %v2260, %v2532
        %v2567 = vld [vmem:[%s1954 + $0x2] sm:$0xff]
        %v2568 = vld [vmem:[%s1954 + $0xa] sm:$0xff]
        %v2569 = vld [vmem:[%s1954 + $0x1a] sm:$0xff]
        %v2570 = vld [vmem:[%s1954 + $0x22] sm:$0xff]
        %v2571 = vld [vmem:[%s1954 + $0x32] sm:$0xff]
        %v2572 = vld [vmem:[%s1954 + $0x3a] sm:$0xff]
        %v2573 = vld [vmem:[%s1954 + $0x4a] sm:$0xff]
        %v2574 = vld [vmem:[%s1954 + $0x52] sm:$0xff]
        %v2575 = vld [vmem:[%s1954 + $0x62] sm:$0xff]
        %v2576 = vld [vmem:[%s1954 + $0x6a] sm:$0xff]
        %v2577 = vld [vmem:[%s1954 + $0x7a] sm:$0xff]
        %v2578 = vld [vmem:[%s1954 + $0x82] sm:$0xff]
        %v2579 = vld [vmem:[%s1954 + $0x92] sm:$0xff]
        %v2580 = vld [vmem:[%s1954 + $0x9a] sm:$0xff]
        %v2581 = vld [vmem:[%s1954 + $0xaa] sm:$0xff]
        %v2582 = vld [vmem:[%s1954 + $0xb2] sm:$0xff]
        %v2583 = vld [vmem:[%s1954 + $0xc2] sm:$0xff]
        %v2584 = vld [vmem:[%s1954 + $0xca] sm:$0xff]
        %v2585 = vld [vmem:[%s1954 + $0xda] sm:$0xff]
        %v2586 = vld [vmem:[%s1954 + $0xe2] sm:$0xff]
        %v2587 = vld [vmem:[%s1954 + $0xf2] sm:$0xff]
        %v2588 = vld [vmem:[%s1954 + $0xfa] sm:$0xff]
        %v2589 = vld [vmem:[%s1954 + $0x10a] sm:$0xff]
        %v2590 = vld [vmem:[%s1954 + $0x112] sm:$0xff]
        %v2591 = vld [vmem:[%s1954 + $0x122] sm:$0xff]
        %v2592 = vld [vmem:[%s1954 + $0x12a] sm:$0xff]
        %v2593 = vld [vmem:[%s1954 + $0x13a] sm:$0xff]
        %v2594 = vld [vmem:[%s1954 + $0x142] sm:$0xff]
        %v2595 = vld [vmem:[%s1954 + $0x152] sm:$0xff]
        %v2596 = vld [vmem:[%s1954 + $0x15a] sm:$0xff]
        %v2597 = vld [vmem:[%s1954 + $0x16a] sm:$0xff]
        %v2598 = vld [vmem:[%s1954 + $0x172] sm:$0xff]
        %s2599 = scalar_lea.vmem %s1, 1024
        %v2600 = vld [vmem:[%s2599] sm:$0xff]
        %v2601 = vld [vmem:[%s2599 + $0x8] sm:$0xff]
        %v2602 = vld [vmem:[%s2599 + $0x10] sm:$0xff]
        %v2603 = vld [vmem:[%s2599 + $0x18] sm:$0xff]
        %v2604 = vld [vmem:[%s2599 + $0x20] sm:$0xff]
        %v2605 = vld [vmem:[%s2599 + $0x28] sm:$0xff]
        %v2606 = vld [vmem:[%s2599 + $0x30] sm:$0xff]
        %v2607 = vld [vmem:[%s2599 + $0x38] sm:$0xff]
        %v2608 = vld [vmem:[%s2599 + $0x40] sm:$0xff]
        %v2609 = vld [vmem:[%s2599 + $0x48] sm:$0xff]
        %v2610 = vld [vmem:[%s2599 + $0x50] sm:$0xff]
        %v2611 = vld [vmem:[%s2599 + $0x58] sm:$0xff]
        %v2612 = vld [vmem:[%s2599 + $0x60] sm:$0xff]
        %v2613 = vld [vmem:[%s2599 + $0x68] sm:$0xff]
        %v2614 = vld [vmem:[%s2599 + $0x70] sm:$0xff]
        %v2615 = vld [vmem:[%s2599 + $0x78] sm:$0xff]
        %2616 = vmatprep.subr.mxu0 0.0
        %2617 = vmatpush1.msra.mxu0 %v2600
        %2618 = vmatprep.subr.mxu0 0.0
        %2619 = vmatpush1.msra.mxu0 %v2601
        %2620 = vmatprep.subr.mxu0 0.0
        %2621 = vmatpush1.msra.mxu0 %v2602
        %2622 = vmatprep.subr.mxu0 0.0
        %2623 = vmatpush1.msra.mxu0 %v2603
        %2624 = vmatprep.subr.mxu0 0.0
        %2625 = vmatpush1.msra.mxu0 %v2604
        %2626 = vmatprep.subr.mxu0 0.0
        %2627 = vmatpush1.msra.mxu0 %v2605
        %2628 = vmatprep.subr.mxu0 0.0
        %2629 = vmatpush1.msra.mxu0 %v2606
        %2630 = vmatprep.subr.mxu0 0.0
        %2631 = vmatpush1.msra.mxu0 %v2607
        %2632 = vmatprep.subr.mxu0 0.0
        %2633 = vmatpush1.msra.mxu0 %v2608
        %2634 = vmatprep.subr.mxu0 0.0
        %2635 = vmatpush1.msra.mxu0 %v2609
        %2636 = vmatprep.subr.mxu0 0.0
        %2637 = vmatpush1.msra.mxu0 %v2610
        %2638 = vmatprep.subr.mxu0 0.0
        %2639 = vmatpush1.msra.mxu0 %v2611
        %2640 = vmatprep.subr.mxu0 0.0
        %2641 = vmatpush1.msra.mxu0 %v2612
        %2642 = vmatprep.subr.mxu0 0.0
        %2643 = vmatpush1.msra.mxu0 %v2613
        %2644 = vmatprep.subr.mxu0 0.0
        %2645 = vmatpush1.msra.mxu0 %v2614
        %2646 = vmatprep.subr.mxu0 0.0
        %2647 = vmatpush1.msra.mxu0 %v2615
        %2648 = vmatprep.subr.mxu0 0.0
        %2649 = vmatpush1.msra.mxu0 0.0
        %2650 = vmatprep.subr.mxu0 0.0
        %2651 = vmatpush1.msra.mxu0 0.0
        %2652 = vmatprep.subr.mxu0 0.0
        %2653 = vmatpush1.msra.mxu0 0.0
        %2654 = vmatprep.subr.mxu0 0.0
        %2655 = vmatpush1.msra.mxu0 0.0
        %2656 = vmatprep.subr.mxu0 0.0
        %2657 = vmatpush1.msra.mxu0 0.0
        %2658 = vmatprep.subr.mxu0 0.0
        %2659 = vmatpush1.msra.mxu0 0.0
        %2660 = vmatprep.subr.mxu0 0.0
        %2661 = vmatpush1.msra.mxu0 0.0
        %2662 = vmatprep.subr.mxu0 0.0
        %2663 = vmatpush1.msra.mxu0 0.0
        %2664 = vmatprep.subr.mxu0 0.0
        %2665 = vmatpush1.msra.mxu0 0.0
        %2666 = vmatprep.subr.mxu0 0.0
        %2667 = vmatpush1.msra.mxu0 0.0
        %2668 = vmatprep.subr.mxu0 0.0
        %2669 = vmatpush1.msra.mxu0 0.0
        %2670 = vmatprep.subr.mxu0 0.0
        %2671 = vmatpush1.msra.mxu0 0.0
        %2672 = vmatprep.subr.mxu0 0.0
        %2673 = vmatpush1.msra.mxu0 0.0
        %2674 = vmatprep.subr.mxu0 0.0
        %2675 = vmatpush1.msra.mxu0 0.0
        %2676 = vmatprep.subr.mxu0 0.0
        %2677 = vmatpush1.msra.mxu0 0.0
        %2678 = vmatprep.subr.mxu0 0.0
        %2679 = vmatpush1.msra.mxu0 0.0
        %2680 = vmatprep.mubr.f32.mxu0 0.0
        %2681 = vmatmul.mubr.f32.gmra.mrb[0].mxu0 %v2567
        %v2682 = vpop.f32.mrb[0].mxu0
        %v2683 = vadd.f32 0.0, %v2682
        %v2684 = vpop.f32.mrb[0].mxu0
        %2685 = vmatprep.mubr.f32.mxu0 0.0
        %2686 = vmatmul.mubr.f32.gmra.mrb[0].mxu0 %v2568
        %v2687 = vpop.f32.mrb[0].mxu0
        %v2688 = vadd.f32 0.0, %v2687
        %v2689 = vpop.f32.mrb[0].mxu0
        %2690 = vmatprep.mubr.f32.mxu0 0.0
        %2691 = vmatmul.mubr.f32.gmra.mrb[0].mxu0 %v2569
        %v2692 = vpop.f32.mrb[0].mxu0
        %v2693 = vadd.f32 0.0, %v2692
        %v2694 = vpop.f32.mrb[0].mxu0
        %2695 = vmatprep.mubr.f32.mxu0 0.0
        %2696 = vmatmul.mubr.f32.gmra.mrb[0].mxu0 %v2570
        %v2697 = vpop.f32.mrb[0].mxu0
        %v2698 = vadd.f32 0.0, %v2697
        %v2699 = vpop.f32.mrb[0].mxu0
        %2700 = vmatprep.mubr.f32.mxu0 0.0
        %2701 = vmatmul.mubr.f32.gmra.mrb[0].mxu0 %v2571
        %v2702 = vpop.f32.mrb[0].mxu0
        %v2703 = vadd.f32 0.0, %v2702
        %v2704 = vpop.f32.mrb[0].mxu0
        %2705 = vmatprep.mubr.f32.mxu0 0.0
        %2706 = vmatmul.mubr.f32.gmra.mrb[0].mxu0 %v2572
        %v2707 = vpop.f32.mrb[0].mxu0
        %v2708 = vadd.f32 0.0, %v2707
        %v2709 = vpop.f32.mrb[0].mxu0
        %2710 = vmatprep.mubr.f32.mxu0 0.0
        %2711 = vmatmul.mubr.f32.gmra.mrb[0].mxu0 %v2573
        %v2712 = vpop.f32.mrb[0].mxu0
        %v2713 = vadd.f32 0.0, %v2712
        %v2714 = vpop.f32.mrb[0].mxu0
        %2715 = vmatprep.mubr.f32.mxu0 0.0
        %2716 = vmatmul.mubr.f32.gmra.mrb[0].mxu0 %v2574
        %v2717 = vpop.f32.mrb[0].mxu0
        %v2718 = vadd.f32 0.0, %v2717
        %v2719 = vpop.f32.mrb[0].mxu0
        %2720 = vmatprep.mubr.f32.mxu0 0.0
        %2721 = vmatmul.mubr.f32.gmra.mrb[0].mxu0 %v2575
        %v2722 = vpop.f32.mrb[0].mxu0
        %v2723 = vadd.f32 0.0, %v2722
        %v2724 = vpop.f32.mrb[0].mxu0
        %2725 = vmatprep.mubr.f32.mxu0 0.0
        %2726 = vmatmul.mubr.f32.gmra.mrb[0].mxu0 %v2576
        %v2727 = vpop.f32.mrb[0].mxu0
        %v2728 = vadd.f32 0.0, %v2727
        %v2729 = vpop.f32.mrb[0].mxu0
        %2730 = vmatprep.mubr.f32.mxu0 0.0
        %2731 = vmatmul.mubr.f32.gmra.mrb[0].mxu0 %v2577
        %v2732 = vpop.f32.mrb[0].mxu0
        %v2733 = vadd.f32 0.0, %v2732
        %v2734 = vpop.f32.mrb[0].mxu0
        %2735 = vmatprep.mubr.f32.mxu0 0.0
        %2736 = vmatmul.mubr.f32.gmra.mrb[0].mxu0 %v2578
        %v2737 = vpop.f32.mrb[0].mxu0
        %v2738 = vadd.f32 0.0, %v2737
        %v2739 = vpop.f32.mrb[0].mxu0
        %2740 = vmatprep.mubr.f32.mxu0 0.0
        %2741 = vmatmul.mubr.f32.gmra.mrb[0].mxu0 %v2579
        %v2742 = vpop.f32.mrb[0].mxu0
        %v2743 = vadd.f32 0.0, %v2742
        %v2744 = vpop.f32.mrb[0].mxu0
        %2745 = vmatprep.mubr.f32.mxu0 0.0
        %2746 = vmatmul.mubr.f32.gmra.mrb[0].mxu0 %v2580
        %v2747 = vpop.f32.mrb[0].mxu0
        %v2748 = vadd.f32 0.0, %v2747
        %v2749 = vpop.f32.mrb[0].mxu0
        %2750 = vmatprep.mubr.f32.mxu0 0.0
        %2751 = vmatmul.mubr.f32.gmra.mrb[0].mxu0 %v2581
        %v2752 = vpop.f32.mrb[0].mxu0
        %v2753 = vadd.f32 0.0, %v2752
        %v2754 = vpop.f32.mrb[0].mxu0
        %2755 = vmatprep.mubr.f32.mxu0 0.0
        %2756 = vmatmul.mubr.f32.gmra.mrb[0].mxu0 %v2582
        %v2757 = vpop.f32.mrb[0].mxu0
        %v2758 = vadd.f32 0.0, %v2757
        %v2759 = vpop.f32.mrb[0].mxu0
        %2760 = vmatprep.mubr.f32.mxu0 0.0
        %2761 = vmatmul.mubr.f32.gmra.mrb[0].mxu0 %v2583
        %v2762 = vpop.f32.mrb[0].mxu0
        %v2763 = vadd.f32 0.0, %v2762
        %v2764 = vpop.f32.mrb[0].mxu0
        %2765 = vmatprep.mubr.f32.mxu0 0.0
        %2766 = vmatmul.mubr.f32.gmra.mrb[0].mxu0 %v2584
        %v2767 = vpop.f32.mrb[0].mxu0
        %v2768 = vadd.f32 0.0, %v2767
        %v2769 = vpop.f32.mrb[0].mxu0
        %2770 = vmatprep.mubr.f32.mxu0 0.0
        %2771 = vmatmul.mubr.f32.gmra.mrb[0].mxu0 %v2585
        %v2772 = vpop.f32.mrb[0].mxu0
        %v2773 = vadd.f32 0.0, %v2772
        %v2774 = vpop.f32.mrb[0].mxu0
        %2775 = vmatprep.mubr.f32.mxu0 0.0
        %2776 = vmatmul.mubr.f32.gmra.mrb[0].mxu0 %v2586
        %v2777 = vpop.f32.mrb[0].mxu0
        %v2778 = vadd.f32 0.0, %v2777
        %v2779 = vpop.f32.mrb[0].mxu0
        %2780 = vmatprep.mubr.f32.mxu0 0.0
        %2781 = vmatmul.mubr.f32.gmra.mrb[0].mxu0 %v2587
        %v2782 = vpop.f32.mrb[0].mxu0
        %v2783 = vadd.f32 0.0, %v2782
        %v2784 = vpop.f32.mrb[0].mxu0
        %2785 = vmatprep.mubr.f32.mxu0 0.0
        %2786 = vmatmul.mubr.f32.gmra.mrb[0].mxu0 %v2588
        %v2787 = vpop.f32.mrb[0].mxu0
        %v2788 = vadd.f32 0.0, %v2787
        %v2789 = vpop.f32.mrb[0].mxu0
        %2790 = vmatprep.mubr.f32.mxu0 0.0
        %2791 = vmatmul.mubr.f32.gmra.mrb[0].mxu0 %v2589
        %v2792 = vpop.f32.mrb[0].mxu0
        %v2793 = vadd.f32 0.0, %v2792
        %v2794 = vpop.f32.mrb[0].mxu0
        %2795 = vmatprep.mubr.f32.mxu0 0.0
        %2796 = vmatmul.mubr.f32.gmra.mrb[0].mxu0 %v2590
        %v2797 = vpop.f32.mrb[0].mxu0
        %v2798 = vadd.f32 0.0, %v2797
        %v2799 = vpop.f32.mrb[0].mxu0
        %2800 = vmatprep.mubr.f32.mxu0 0.0
        %2801 = vmatmul.mubr.f32.gmra.mrb[0].mxu0 %v2591
        %v2802 = vpop.f32.mrb[0].mxu0
        %v2803 = vadd.f32 0.0, %v2802
        %v2804 = vpop.f32.mrb[0].mxu0
        %2805 = vmatprep.mubr.f32.mxu0 0.0
        %2806 = vmatmul.mubr.f32.gmra.mrb[0].mxu0 %v2592
        %v2807 = vpop.f32.mrb[0].mxu0
        %v2808 = vadd.f32 0.0, %v2807
        %v2809 = vpop.f32.mrb[0].mxu0
        %2810 = vmatprep.mubr.f32.mxu0 0.0
        %2811 = vmatmul.mubr.f32.gmra.mrb[0].mxu0 %v2593
        %v2812 = vpop.f32.mrb[0].mxu0
        %v2813 = vadd.f32 0.0, %v2812
        %v2814 = vpop.f32.mrb[0].mxu0
        %2815 = vmatprep.mubr.f32.mxu0 0.0
        %2816 = vmatmul.mubr.f32.gmra.mrb[0].mxu0 %v2594
        %v2817 = vpop.f32.mrb[0].mxu0
        %v2818 = vadd.f32 0.0, %v2817
        %v2819 = vpop.f32.mrb[0].mxu0
        %2820 = vmatprep.mubr.f32.mxu0 0.0
        %2821 = vmatmul.mubr.f32.gmra.mrb[0].mxu0 %v2595
        %v2822 = vpop.f32.mrb[0].mxu0
        %v2823 = vadd.f32 0.0, %v2822
        %v2824 = vpop.f32.mrb[0].mxu0
        %2825 = vmatprep.mubr.f32.mxu0 0.0
        %2826 = vmatmul.mubr.f32.gmra.mrb[0].mxu0 %v2596
        %v2827 = vpop.f32.mrb[0].mxu0
        %v2828 = vadd.f32 0.0, %v2827
        %v2829 = vpop.f32.mrb[0].mxu0
        %2830 = vmatprep.mubr.f32.mxu0 0.0
        %2831 = vmatmul.mubr.f32.gmra.mrb[0].mxu0 %v2597
        %v2832 = vpop.f32.mrb[0].mxu0
        %v2833 = vadd.f32 0.0, %v2832
        %v2834 = vpop.f32.mrb[0].mxu0
        %2835 = vmatprep.mubr.f32.mxu0 0.0
        %2836 = vmatmul.mubr.f32.gmra.mrb[0].mxu0 %v2598
        %v2837 = vpop.f32.mrb[0].mxu0
        %v2838 = vadd.f32 0.0, %v2837
        %v2839 = vpop.f32.mrb[0].mxu0
        %2840 = vdwg.mxu0
        %v2841 = vadd.f32 %v2535, %v2683
        %v2842 = vadd.f32 %v2536, %v2688
        %v2843 = vadd.f32 %v2537, %v2693
        %v2844 = vadd.f32 %v2538, %v2698
        %v2845 = vadd.f32 %v2539, %v2703
        %v2846 = vadd.f32 %v2540, %v2708
        %v2847 = vadd.f32 %v2541, %v2713
        %v2848 = vadd.f32 %v2542, %v2718
        %v2849 = vadd.f32 %v2543, %v2723
        %v2850 = vadd.f32 %v2544, %v2728
        %v2851 = vadd.f32 %v2545, %v2733
        %v2852 = vadd.f32 %v2546, %v2738
        %v2853 = vadd.f32 %v2547, %v2743
        %v2854 = vadd.f32 %v2548, %v2748
        %v2855 = vadd.f32 %v2549, %v2753
        %v2856 = vadd.f32 %v2550, %v2758
        %v2857 = vadd.f32 %v2551, %v2763
        %v2858 = vadd.f32 %v2552, %v2768
        %v2859 = vadd.f32 %v2553, %v2773
        %v2860 = vadd.f32 %v2554, %v2778
        %v2861 = vadd.f32 %v2555, %v2783
        %v2862 = vadd.f32 %v2556, %v2788
        %v2863 = vadd.f32 %v2557, %v2793
        %v2864 = vadd.f32 %v2558, %v2798
        %v2865 = vadd.f32 %v2559, %v2803
        %v2866 = vadd.f32 %v2560, %v2808
        %v2867 = vadd.f32 %v2561, %v2813
        %v2868 = vadd.f32 %v2562, %v2818
        %v2869 = vadd.f32 %v2563, %v2823
        %v2870 = vadd.f32 %v2564, %v2828
        %v2871 = vadd.f32 %v2565, %v2833
        %v2872 = vadd.f32 %v2566, %v2838
        %v2873 = vadd.f32 %v2841, %v2842
        %v2874 = vadd.f32 %v2873, %v2843
        %v2875 = vadd.f32 %v2874, %v2844
        %v2876 = vadd.f32 %v2875, %v2845
        %v2877 = vadd.f32 %v2876, %v2846
        %v2878 = vadd.f32 %v2877, %v2847
        %v2879 = vadd.f32 %v2878, %v2848
        %v2880 = vadd.f32 %v2879, %v2849
        %v2881 = vadd.f32 %v2880, %v2850
        %v2882 = vadd.f32 %v2881, %v2851
        %v2883 = vadd.f32 %v2882, %v2852
        %v2884 = vadd.f32 %v2883, %v2853
        %v2885 = vadd.f32 %v2884, %v2854
        %v2886 = vadd.f32 %v2885, %v2855
        %v2887 = vadd.f32 %v2886, %v2856
        %v2888 = vadd.f32 %v2887, %v2857
        %v2889 = vadd.f32 %v2888, %v2858
        %v2890 = vadd.f32 %v2889, %v2859
        %v2891 = vadd.f32 %v2890, %v2860
        %v2892 = vadd.f32 %v2891, %v2861
        %v2893 = vadd.f32 %v2892, %v2862
        %v2894 = vadd.f32 %v2893, %v2863
        %v2895 = vadd.f32 %v2894, %v2864
        %v2896 = vadd.f32 %v2895, %v2865
        %v2897 = vadd.f32 %v2896, %v2866
        %v2898 = vadd.f32 %v2897, %v2867
        %v2899 = vadd.f32 %v2898, %v2868
        %v2900 = vadd.f32 %v2899, %v2869
        %v2901 = vadd.f32 %v2900, %v2870
        %v2902 = vadd.f32 %v2901, %v2871
        %v2903 = vadd.f32 %v2902, %v2872
        %v2904 = vrot.slane %v2903, 4
        %v2905 = vadd.f32 %v2903, %v2904
        %v2906 = vrot.slane %v2905, 2
        %v2907 = vadd.f32 %v2905, %v2906
        %v2908 = vrot.slane %v2907, 1
        %v2909 = vadd.f32 %v2907, %v2908
        %2910 = vst [vmem:[%s171] sm:$0x1] %v2909
        %v2911 = vmul.f32 %v2841, %v2841
        %v2912 = vmul.f32 %v2842, %v2842
        %v2913 = vmul.f32 %v2843, %v2843
        %v2914 = vmul.f32 %v2844, %v2844
        %v2915 = vmul.f32 %v2845, %v2845
        %v2916 = vmul.f32 %v2846, %v2846
        %v2917 = vmul.f32 %v2847, %v2847
        %v2918 = vmul.f32 %v2848, %v2848
        %v2919 = vmul.f32 %v2849, %v2849
        %v2920 = vmul.f32 %v2850, %v2850
        %v2921 = vmul.f32 %v2851, %v2851
        %v2922 = vmul.f32 %v2852, %v2852
        %v2923 = vmul.f32 %v2853, %v2853
        %v2924 = vmul.f32 %v2854, %v2854
        %v2925 = vmul.f32 %v2855, %v2855
        %v2926 = vmul.f32 %v2856, %v2856
        %v2927 = vmul.f32 %v2857, %v2857
        %v2928 = vmul.f32 %v2858, %v2858
        %v2929 = vmul.f32 %v2859, %v2859
        %v2930 = vmul.f32 %v2860, %v2860
        %v2931 = vmul.f32 %v2861, %v2861
        %v2932 = vmul.f32 %v2862, %v2862
        %v2933 = vmul.f32 %v2863, %v2863
        %v2934 = vmul.f32 %v2864, %v2864
        %v2935 = vmul.f32 %v2865, %v2865
        %v2936 = vmul.f32 %v2866, %v2866
        %v2937 = vmul.f32 %v2867, %v2867
        %v2938 = vmul.f32 %v2868, %v2868
        %v2939 = vmul.f32 %v2869, %v2869
        %v2940 = vmul.f32 %v2870, %v2870
        %v2941 = vmul.f32 %v2871, %v2871
        %v2942 = vmul.f32 %v2872, %v2872
        %v2943 = vadd.f32 %v2911, %v2912
        %v2944 = vadd.f32 %v2943, %v2913
        %v2945 = vadd.f32 %v2944, %v2914
        %v2946 = vadd.f32 %v2945, %v2915
        %v2947 = vadd.f32 %v2946, %v2916
        %v2948 = vadd.f32 %v2947, %v2917
        %v2949 = vadd.f32 %v2948, %v2918
        %v2950 = vadd.f32 %v2949, %v2919
        %v2951 = vadd.f32 %v2950, %v2920
        %v2952 = vadd.f32 %v2951, %v2921
        %v2953 = vadd.f32 %v2952, %v2922
        %v2954 = vadd.f32 %v2953, %v2923
        %v2955 = vadd.f32 %v2954, %v2924
        %v2956 = vadd.f32 %v2955, %v2925
        %v2957 = vadd.f32 %v2956, %v2926
        %v2958 = vadd.f32 %v2957, %v2927
        %v2959 = vadd.f32 %v2958, %v2928
        %v2960 = vadd.f32 %v2959, %v2929
        %v2961 = vadd.f32 %v2960, %v2930
        %v2962 = vadd.f32 %v2961, %v2931
        %v2963 = vadd.f32 %v2962, %v2932
        %v2964 = vadd.f32 %v2963, %v2933
        %v2965 = vadd.f32 %v2964, %v2934
        %v2966 = vadd.f32 %v2965, %v2935
        %v2967 = vadd.f32 %v2966, %v2936
        %v2968 = vadd.f32 %v2967, %v2937
        %v2969 = vadd.f32 %v2968, %v2938
        %v2970 = vadd.f32 %v2969, %v2939
        %v2971 = vadd.f32 %v2970, %v2940
        %v2972 = vadd.f32 %v2971, %v2941
        %v2973 = vadd.f32 %v2972, %v2942
        %v2974 = vrot.slane %v2973, 4
        %v2975 = vadd.f32 %v2973, %v2974
        %v2976 = vrot.slane %v2975, 2
        %v2977 = vadd.f32 %v2975, %v2976
        %v2978 = vrot.slane %v2977, 1
        %v2979 = vadd.f32 %v2977, %v2978
        %2980 = vst [vmem:[%s171 + $0x1] sm:$0x1] %v2979
        %s2981 = scalar_lea.vmem %s181, 24
        %2982 = vst [vmem:[%s2981 + $0x1] sm:$0xff] %v2841
        %2983 = vst [vmem:[%s2981 + $0x9] sm:$0xff] %v2842
        %2984 = vst [vmem:[%s2981 + $0x19] sm:$0xff] %v2843
        %2985 = vst [vmem:[%s2981 + $0x21] sm:$0xff] %v2844
        %2986 = vst [vmem:[%s2981 + $0x31] sm:$0xff] %v2845
        %2987 = vst [vmem:[%s2981 + $0x39] sm:$0xff] %v2846
        %2988 = vst [vmem:[%s2981 + $0x49] sm:$0xff] %v2847
        %2989 = vst [vmem:[%s2981 + $0x51] sm:$0xff] %v2848
        %2990 = vst [vmem:[%s2981 + $0x61] sm:$0xff] %v2849
        %2991 = vst [vmem:[%s2981 + $0x69] sm:$0xff] %v2850
        %2992 = vst [vmem:[%s2981 + $0x79] sm:$0xff] %v2851
        %2993 = vst [vmem:[%s2981 + $0x81] sm:$0xff] %v2852
        %2994 = vst [vmem:[%s2981 + $0x91] sm:$0xff] %v2853
        %2995 = vst [vmem:[%s2981 + $0x99] sm:$0xff] %v2854
        %2996 = vst [vmem:[%s2981 + $0xa9] sm:$0xff] %v2855
        %2997 = vst [vmem:[%s2981 + $0xb1] sm:$0xff] %v2856
        %2998 = vst [vmem:[%s2981 + $0xc1] sm:$0xff] %v2857
        %2999 = vst [vmem:[%s2981 + $0xc9] sm:$0xff] %v2858
        %3000 = vst [vmem:[%s2981 + $0xd9] sm:$0xff] %v2859
        %3001 = vst [vmem:[%s2981 + $0xe1] sm:$0xff] %v2860
        %3002 = vst [vmem:[%s2981 + $0xf1] sm:$0xff] %v2861
        %3003 = vst [vmem:[%s2981 + $0xf9] sm:$0xff] %v2862
        %3004 = vst [vmem:[%s2981 + $0x109] sm:$0xff] %v2863
        %3005 = vst [vmem:[%s2981 + $0x111] sm:$0xff] %v2864
        %3006 = vst [vmem:[%s2981 + $0x121] sm:$0xff] %v2865
        %3007 = vst [vmem:[%s2981 + $0x129] sm:$0xff] %v2866
        %3008 = vst [vmem:[%s2981 + $0x139] sm:$0xff] %v2867
        %3009 = vst [vmem:[%s2981 + $0x141] sm:$0xff] %v2868
        %3010 = vst [vmem:[%s2981 + $0x151] sm:$0xff] %v2869
        %3011 = vst [vmem:[%s2981 + $0x159] sm:$0xff] %v2870
        %3012 = vst [vmem:[%s2981 + $0x169] sm:$0xff] %v2871
        %3013 = vst [vmem:[%s2981 + $0x171] sm:$0xff] %v2872
        %3014 = vst [vmem:[%s181] sm:$0xff] 0.0
        %3015 = vst [vmem:[%s181 + $0x8] sm:$0xff] 0.0
        %3016 = vst [vmem:[%s181 + $0x10] sm:$0x3] 0.0
        %s3017 = scalar_lea.vmem %s181, 408
        %3018 = vst [vmem:[%s3017] sm:$0xff] 0.0
        %3019 = vst [vmem:[%s3017 + $0x8] sm:$0xff] 0.0
        %3020 = vst [vmem:[%s3017 + $0x10] sm:$0x3] 0.0
        %3021 = vst [vmem:[%s181] sm:$0x1] 0.0
        %3022 = vst [vmem:[%s181 + $0x18] sm:$0x1] 0.0
        %3023 = vst [vmem:[%s181 + $0x30] sm:$0x1] 0.0
        %3024 = vst [vmem:[%s181 + $0x48] sm:$0x1] 0.0
        %3025 = vst [vmem:[%s181 + $0x60] sm:$0x1] 0.0
        %3026 = vst [vmem:[%s181 + $0x78] sm:$0x1] 0.0
        %3027 = vst [vmem:[%s181 + $0x90] sm:$0x1] 0.0
        %3028 = vst [vmem:[%s181 + $0xa8] sm:$0x1] 0.0
        %3029 = vst [vmem:[%s181 + $0xc0] sm:$0x1] 0.0
        %3030 = vst [vmem:[%s181 + $0xd8] sm:$0x1] 0.0
        %3031 = vst [vmem:[%s181 + $0xf0] sm:$0x1] 0.0
        %3032 = vst [vmem:[%s181 + $0x108] sm:$0x1] 0.0
        %3033 = vst [vmem:[%s181 + $0x120] sm:$0x1] 0.0
        %3034 = vst [vmem:[%s181 + $0x138] sm:$0x1] 0.0
        %3035 = vst [vmem:[%s181 + $0x150] sm:$0x1] 0.0
        %3036 = vst [vmem:[%s181 + $0x168] sm:$0x1] 0.0
        %3037 = vst [vmem:[%s181 + $0x180] sm:$0x1] 0.0
        %3038 = vst [vmem:[%s181 + $0x198] sm:$0x1] 0.0
        %3039 = vst [vmem:[%s181 + $0x11] sm:$0x1] 0.0
        %3040 = vst [vmem:[%s181 + $0x29] sm:$0x1] 0.0
        %3041 = vst [vmem:[%s181 + $0x41] sm:$0x1] 0.0
        %3042 = vst [vmem:[%s181 + $0x59] sm:$0x1] 0.0
        %3043 = vst [vmem:[%s181 + $0x71] sm:$0x1] 0.0
        %3044 = vst [vmem:[%s181 + $0x89] sm:$0x1] 0.0
        %3045 = vst [vmem:[%s181 + $0xa1] sm:$0x1] 0.0
        %3046 = vst [vmem:[%s181 + $0xb9] sm:$0x1] 0.0
        %3047 = vst [vmem:[%s181 + $0xd1] sm:$0x1] 0.0
        %3048 = vst [vmem:[%s181 + $0xe9] sm:$0x1] 0.0
        %3049 = vst [vmem:[%s181 + $0x101] sm:$0x1] 0.0
        %3050 = vst [vmem:[%s181 + $0x119] sm:$0x1] 0.0
        %3051 = vst [vmem:[%s181 + $0x131] sm:$0x1] 0.0
        %3052 = vst [vmem:[%s181 + $0x149] sm:$0x1] 0.0
        %3053 = vst [vmem:[%s181 + $0x161] sm:$0x1] 0.0
        %3054 = vst [vmem:[%s181 + $0x179] sm:$0x1] 0.0
        %3055 = vst [vmem:[%s181 + $0x191] sm:$0x1] 0.0
        %3056 = vst [vmem:[%s181 + $0x1a9] sm:$0x1] 0.0
        %p3057 = scmp.lt.s32.totalorder %s18, 1
        %s3058 = scalar_select %p3057, %s18, 1
        %s3059 = smul.addr %s3058, 54
        %s3060 = smul.addr %s3059, 8
        %s3061 = scalar_lea.vmem %s2, %s3060
        %s3062 = sand.u32 %s99, 1
        %s3063 = scalar_lea.sflag [#allocation3], %s3062
        %s3064 = sand.u32 %s99, 1
        %s3065 = smul.addr %s3064, 2
        %s3066 = scalar_lea.vmem [#allocation2], %s3065
        // Predicated region
        $region29: #{tpu_custom_call.1} parent=27 // pred_check
          %p3067 = pneg %p83
        $region30: #{tpu_custom_call.1} parent=27 // pred_check_branch
          %3069 = sbr.rel (%p3067) target = $region32
        $region31: #{tpu_custom_call.1} parent=27 // pred_region
          _
        $region32: #{tpu_custom_call.1} parent=27 // pred_fallthru
          _
        // Predicated region
        $region33: #{tpu_custom_call.1} parent=27 // pred_check
          %p3070 = pneg %p109
        $region34: #{tpu_custom_call.1} parent=27 // pred_check_branch
          %3072 = sbr.rel (%p3070) target = $region36
        $region35: #{tpu_custom_call.1} parent=27 // pred_region
          %s3074 = ssub.s32 32, 32
          %3075 = vsyncadd %s3063, %s3074
          %s3076 = smul.addr %s18, 32
          %s3077 = scalar_lea.hbm %s3, %s3076
          %s3079 = sshll.u32 %s3066, 4
          %s3080 = int_to_ptr.vmem [resolvable:$true] %s3079
          %3082 = dma.vmem_to_hbm [thread:$0]  %s3080, 32, %s3077, %s3063
        $region36: #{tpu_custom_call.1} parent=27 // pred_fallthru
          _
      $region28: #{tpu_custom_call.1} parent=5 // pred_fallthru
        _
      %p3083 = scmp.le.s32.totalorder 2, %s13
      // Predicated region
      $region37: #{tpu_custom_call.1} parent=5 // pred_check
        %p3084 = pneg %p3083
      $region38: #{tpu_custom_call.1} parent=5 // pred_check_branch
        %3086 = sbr.rel (%p3084) target = $region40
      $region39: #{tpu_custom_call.1} parent=5 // pred_region
        %s3087 = ssub.s32 %s13, 2
        // Predicated region
        $region41: #{tpu_custom_call.1} parent=39 // pred_check
          %p3088 = pneg %p89
        $region42: #{tpu_custom_call.1} parent=39 // pred_check_branch
          %3090 = sbr.rel (%p3088) target = $region44
        $region43: #{tpu_custom_call.1} parent=39 // pred_region
          %p3091 = scmp.lt.s32.totalorder %s19, 1
          %s3092 = scalar_select %p3091, %s19, 1
          %s3093 = smul.addr %s3092, 54
          %s3094 = smul.addr %s3093, 8
          %s3095 = scalar_lea.vmem %s2, %s3094
        $region44: #{tpu_custom_call.1} parent=39 // pred_fallthru
          _
        // Predicated region
        $region45: #{tpu_custom_call.1} parent=39 // pred_check
          %p3096 = pneg %p115
        $region46: #{tpu_custom_call.1} parent=39 // pred_check_branch
          %3098 = sbr.rel (%p3096) target = $region48
        $region47: #{tpu_custom_call.1} parent=39 // pred_region
          %s3099 = sand.u32 %s100, 1
          %s3100 = scalar_lea.sflag [#allocation3], %s3099
          %s3101 = sand.u32 %s100, 1
          %s3102 = smul.addr %s3101, 2
          %s3103 = scalar_lea.vmem [#allocation2], %s3102
          %3104 = dma.done %s3100, 32
        $region48: #{tpu_custom_call.1} parent=39 // pred_fallthru
          _
      $region40: #{tpu_custom_call.1} parent=5 // pred_fallthru
        _
    $region6: #{tpu_custom_call.1} parent=1 // loop_footer
      %s17 = sadd.s32 1, %s13
    $region7: #{tpu_custom_call.1} parent=1 // loop_footer_branch
      %12 = sbr.rel target = $region3
    $region8: #{tpu_custom_call.1} parent=1 // loop_exit
      _
    %3105 = vsyncpa [#allocation3], 1
    %s3106 = scalar_lea.sflag [#allocation3], 1
    %3107 = vsyncpa %s3106, 1

</llo_original>
